<compile_context>
chip_gen: v7x
topology: tpu7x:2x2x1
jax: 0.10.0
libtpu: 0.0.40
codegen_flags: <defaults>
</compile_context>

<pallas_src>
import functools

import jax
import jax.numpy as jnp
from jax.experimental import pallas as pl
from jax.experimental.pallas import tpu as pltpu


_VMEM = pl.BlockSpec(memory_space=pltpu.MemorySpace.VMEM)


def _round_up(n, m):
    return ((n + m - 1) // m) * m


# -----------------------------------------------------------------------------
# Fused kernel: all GRU layers + final Linear in one pallas_call
# -----------------------------------------------------------------------------

def _make_gru_kernel(num_layers, n_gx):
    def kernel(*refs):
        x_ref = refs[0]                                    # (T, Bp, Dp)
        layer_refs = refs[1:1 + 4 * num_layers]            # wxT, whT, gb, bhn / layer
        fcT_ref, fcb_ref, out_ref = refs[1 + 4 * num_layers:1 + 4 * num_layers + 3]
        gx_refs = refs[1 + 4 * num_layers + 3:]             # n_gx x (T, Bp, 3Hp) f32

        T, Bp, Dp = x_ref.shape
        Hp = layer_refs[3].shape[1]                          # bhn is (1, Hp)
        mm_dtype = layer_refs[1].dtype                       # bf16 (or f32 fallback)

        # Layer-0 input projection, hoisted out of the recurrence and staged
        # into VMEM scratch (weights read at the use site, not held in vregs).
        gx_refs[0][...] = (
            jnp.dot(x_ref[...].reshape(T * Bp, Dp), layer_refs[0][...],
                    preferred_element_type=jnp.float32)
            + layer_refs[2][...]
        ).reshape(T, Bp, 3 * Hp)

        h = None
        for l in range(num_layers):
            wh_ref = layer_refs[4 * l + 1]                   # (Hp, 3Hp)
            # Hoist the (1,Hp)->(Bp,Hp) broadcast out of the time loop
            # (JAX does not CSE broadcast_in_dim).
            bhn_b = jnp.broadcast_to(layer_refs[4 * l + 3][...], (Bp, Hp))
            is_last = l == num_layers - 1
            src = gx_refs[l % n_gx]
            if not is_last:
                dst = gx_refs[(l + 1) % n_gx]
                wx_next_ref = layer_refs[4 * (l + 1)]        # (Hp, 3Hp)
                gb_next_b = jnp.broadcast_to(
                    layer_refs[4 * (l + 1) + 2][...], (Bp, 3 * Hp))

            h = jnp.zeros((Bp, Hp), jnp.float32)             # h0 = 0, in-kernel
            # T is static & small -> fully unrolled serial recurrence.
            for t in range(T):
                gx = src[t]                                  # (Bp, 3Hp) f32 from VMEM
                gh = jnp.dot(h.astype(mm_dtype), wh_ref[...],
                             preferred_element_type=jnp.float32)
                # 128-lane aligned gate slices; gate math stays f32.
                r = jax.nn.sigmoid(gx[:, 0:Hp] + gh[:, 0:Hp])
                z = jax.nn.sigmoid(gx[:, Hp:2 * Hp] + gh[:, Hp:2 * Hp])
                n = jnp.tanh(gx[:, 2 * Hp:] + r * (gh[:, 2 * Hp:] + bhn_b))
                h = n + z * (h - n)
                if not is_last:
                    # Interleave next layer's input projection into this
                    # layer's recurrence (fills MXU slack under sigmoid/tanh,
                    # removes the seq scratch + per-layer bulk matmul).
                    dst[t] = (
                        jnp.dot(h.astype(mm_dtype), wx_next_ref[...],
                                preferred_element_type=jnp.float32)
                        + gb_next_b
                    )

        # Final Linear on the last layer's final hidden state.
        out_ref[...] = (
            jnp.dot(h.astype(fcT_ref.dtype), fcT_ref[...],
                    preferred_element_type=jnp.float32)
            + fcb_ref[...]
        )

    return kernel


# -----------------------------------------------------------------------------
# Wrapper
# -----------------------------------------------------------------------------

@functools.partial(jax.jit, static_argnames=("output_size",))
def gru_forward(x, kparams, output_size):
    """x: (B, T, input_size), batch-first like the PyTorch module."""
    B, T, Din = x.shape
    layers = kparams["layers"]
    num_layers = len(layers)
    Hp = layers[0]["whT"].shape[0]
    Dp = layers[0]["wxT"].shape[0]
    Op = kparams["fcT"].shape[1]
    Bp = max(8, _round_up(B, 8))
    mm_dtype = layers[0]["wxT"].dtype                      # bf16 or f32

    # TODO(synk): fold this transpose+pad into the kernel (or a BlockSpec
    # index_map) at large T*B; negligible (<32 KiB) at these shapes.
    x_tm = jnp.transpose(x, (1, 0, 2)).astype(jnp.float32)          # (T, B, Din)
    x_pad = jnp.zeros((T, Bp, Dp), jnp.float32).at[:, :B, :Din].set(x_tm)
    x_pad = x_pad.astype(mm_dtype)

    args = [x_pad]
    for lp in layers:
        args += [lp["wxT"], lp["whT"], lp["gb"], lp["bhn"]]
    args += [kparams["fcT"], kparams["fcb"]]

    n_gx = 2 if num_layers > 1 else 1                     # ping-pong gx staging
    out_pad = pl.pallas_call(
        _make_gru_kernel(num_layers, n_gx),
        out_shape=jax.ShapeDtypeStruct((Bp, Op), jnp.float32),
        in_specs=[_VMEM] * len(args),
        out_specs=_VMEM,
        scratch_shapes=[pltpu.VMEM((T, Bp, 3 * Hp), jnp.float32)
                        for _ in range(n_gx)],
    )(*args)

    out = out_pad[:B, :output_size]
    if B == 1:
        out = out[0]   # match PyTorch `outs[-1].squeeze()` for batch==1
    return out


# -----------------------------------------------------------------------------
# Parameters: PyTorch-layout raw params + padded/transposed kernel params
# -----------------------------------------------------------------------------

def init_params(key, input_size, hidden_size, num_layers, output_size):
    """PyTorch GRUCell-style uniform(-1/sqrt(H), 1/sqrt(H)) init; raw layout."""
    std = 1.0 / jnp.sqrt(jnp.float32(hidden_size))
    cells = []
    for layer in range(num_layers):
        din = input_size if layer == 0 else hidden_size
        key, k1, k2, k3, k4 = jax.random.split(key, 5)
        cells.append(dict(
            wx=jax.random.uniform(k1, (3 * hidden_size, din), jnp.float32, -std, std),
            wh=jax.random.uniform(k2, (3 * hidden_size, hidden_size), jnp.float32, -std, std),
            bx=jax.random.uniform(k3, (3 * hidden_size,), jnp.float32, -std, std),
            bh=jax.random.uniform(k4, (3 * hidden_size,), jnp.float32, -std, std),
        ))
    key, k5, k6 = jax.random.split(key, 3)
    fcw = jax.random.uniform(k5, (output_size, hidden_size), jnp.float32, -std, std)
    fcb = jax.random.uniform(k6, (output_size,), jnp.float32, -std, std)
    return dict(cells=cells, fcw=fcw, fcb=fcb)


def prepare_params(raw, input_size, hidden_size, output_size, use_bf16=True):
    """Pad/transpose raw params to MXU/vreg-friendly layout for the kernel.

    use_bf16=True pre-casts matmul weights to bf16 (MXU-native on v6e/v7x,
    avoids multi-pass f32 emulation on v5e); biases stay f32, gate math stays
    f32, accumulation is f32.  Padded columns/entries are zero so padded
    hidden lanes remain exactly 0 (0 is exact in bf16).
    """
    H = hidden_size
    Hp = _round_up(max(H, 128), 128)
    Op = _round_up(max(output_size, 128), 128)
    mm_dtype = jnp.bfloat16 if use_bf16 else jnp.float32
    layers = []
    for l, cell in enumerate(raw["cells"]):
        din = input_size if l == 0 else H
        dpin = _round_up(max(din, 128), 128) if l == 0 else Hp
        wx, wh, bx, bh = cell["wx"], cell["wh"], cell["bx"], cell["bh"]
        wxT = jnp.zeros((dpin, 3 * Hp), jnp.float32)
        whT = jnp.zeros((Hp, 3 * Hp), jnp.float32)
        for g in range(3):
            wxT = wxT.at[:din, g * Hp:g * Hp + H].set(wx[g * H:(g + 1) * H, :].T)
            whT = whT.at[:H, g * Hp:g * Hp + H].set(wh[g * H:(g + 1) * H, :].T)
        gb = jnp.zeros((1, 3 * Hp), jnp.float32)
        gb = gb.at[0, 0:H].set(bx[0:H] + bh[0:H])                    # r: bx_r + bh_r
        gb = gb.at[0, Hp:Hp + H].set(bx[H:2 * H] + bh[H:2 * H])      # z: bx_z + bh_z
        gb = gb.at[0, 2 * Hp:2 * Hp + H].set(bx[2 * H:3 * H])        # n: bx_n only
        bhn = jnp.zeros((1, Hp), jnp.float32).at[0, :H].set(bh[2 * H:3 * H])
        layers.append(dict(wxT=wxT.astype(mm_dtype), whT=whT.astype(mm_dtype),
                           gb=gb, bhn=bhn))
    fcT = jnp.zeros((Hp, Op), jnp.float32).at[:H, :output_size].set(raw["fcw"].T)
    fcb = jnp.zeros((1, Op), jnp.float32).at[0, :output_size].set(raw["fcb"])
    return dict(layers=layers, fcT=fcT.astype(mm_dtype), fcb=fcb)


# -----------------------------------------------------------------------------
# Pure-JAX reference (raw f32 params) for correctness check
# -----------------------------------------------------------------------------

def gru_forward_ref(x, raw):
    B, T, _ = x.shape
    H = raw["cells"][0]["wh"].shape[1]
    hidden = [jnp.zeros((B, H), jnp.float32) for _ in raw["cells"]]
    for t in range(T):
        inp = x[:, t, :]
        for l, c in enumerate(raw["cells"]):
            gx = inp @ c["wx"].T + c["bx"]
            gh = hidden[l] @ c["wh"].T + c["bh"]
            r = jax.nn.sigmoid(gx[:, :H] + gh[:, :H])
            z = jax.nn.sigmoid(gx[:, H:2 * H] + gh[:, H:2 * H])
            n = jnp.tanh(gx[:, 2 * H:] + r * gh[:, 2 * H:])
            hidden[l] = n + z * (hidden[l] - n)
            inp = hidden[l]
    last = hidden[-1]
    if B == 1:
        last = last[0]
    return last @ raw["fcw"].T + raw["fcb"]


# -----------------------------------------------------------------------------

if __name__ == "__main__":
    INPUT_SIZE = 16
    HIDDEN_SIZE = 32
    NUM_LAYERS = 2
    OUTPUT_SIZE = 8
    BATCH = 2
    SEQ = 8
    USE_BF16 = True   # bf16 MXU operands (f32 accum + f32 gate math)

    key = jax.random.PRNGKey(0)
    key, pkey, xkey = jax.random.split(key, 3)
    raw = init_params(pkey, INPUT_SIZE, HIDDEN_SIZE, NUM_LAYERS, OUTPUT_SIZE)
    kparams = prepare_params(raw, INPUT_SIZE, HIDDEN_SIZE, OUTPUT_SIZE,
                             use_bf16=USE_BF16)
    x = jax.random.normal(xkey, (BATCH, SEQ, INPUT_SIZE), jnp.float32)

    out = gru_forward(x, kparams, output_size=OUTPUT_SIZE)
    out = jax.block_until_ready(out)

    ref = gru_forward_ref(x, raw)
    tol = 5e-2 if USE_BF16 else 1e-4   # bf16 matmul operands -> looser tolerance
    assert out.shape == ref.shape, (out.shape, ref.shape)
    assert jnp.allclose(out, ref, atol=tol, rtol=tol), "mismatch vs reference"

    print("KERNEL_OK")
</pallas_src>

<mosaic_0001>
module attributes {stable_mosaic.version = 11 : i64} {
  func.func @kernel(%arg0: memref<8x8x128xbf16, #tpu.memory_space<vmem>>, %arg1: memref<128x384xbf16, #tpu.memory_space<vmem>>, %arg2: memref<128x384xbf16, #tpu.memory_space<vmem>>, %arg3: memref<1x384xf32, #tpu.memory_space<vmem>>, %arg4: memref<1x128xf32, #tpu.memory_space<vmem>>, %arg5: memref<128x384xbf16, #tpu.memory_space<vmem>>, %arg6: memref<128x384xbf16, #tpu.memory_space<vmem>>, %arg7: memref<1x384xf32, #tpu.memory_space<vmem>>, %arg8: memref<1x128xf32, #tpu.memory_space<vmem>>, %arg9: memref<128x128xbf16, #tpu.memory_space<vmem>>, %arg10: memref<1x128xf32, #tpu.memory_space<vmem>>, %arg11: memref<8x128xf32, #tpu.memory_space<vmem>>, %arg12: memref<8x8x384xf32, #tpu.memory_space<vmem>>, %arg13: memref<8x8x384xf32, #tpu.memory_space<vmem>>) attributes {dimension_semantics = [], scalar_prefetch = 0 : i64, scratch_operands = 2 : i64, tpu.core_type = #tpu.core_type<tc>} {
    %c0 = arith.constant 0 : index
    %c0_0 = arith.constant 0 : index
    %c0_1 = arith.constant 0 : index
    %0 = vector.load %arg0[%c0, %c0_0, %c0_1] : memref<8x8x128xbf16, #tpu.memory_space<vmem>>, vector<8x8x128xbf16>
    %1 = vector.shape_cast %0 : vector<8x8x128xbf16> to vector<64x128xbf16>
    %c0_2 = arith.constant 0 : index
    %c0_3 = arith.constant 0 : index
    %2 = vector.load %arg1[%c0_2, %c0_3] : memref<128x384xbf16, #tpu.memory_space<vmem>>, vector<128x384xbf16>
    %cst = arith.constant dense<0.000000e+00> : vector<64x384xf32>
    %3 = tpu.matmul %1, %2, %cst {dimension_numbers = #tpu.dot_dimension_numbers<[1], [0], [0], [1], [0, 0, 1, 1], [], []>} : vector<64x128xbf16>, vector<128x384xbf16>, vector<64x384xf32> -> vector<64x384xf32>
    %c0_4 = arith.constant 0 : index
    %c0_5 = arith.constant 0 : index
    %4 = vector.load %arg3[%c0_4, %c0_5] : memref<1x384xf32, #tpu.memory_space<vmem>>, vector<1x384xf32>
    %5 = vector.broadcast %4 : vector<1x384xf32> to vector<64x384xf32>
    %6 = arith.addf %3, %5 : vector<64x384xf32>
    %7 = vector.shape_cast %6 : vector<64x384xf32> to vector<8x8x384xf32>
    %c0_6 = arith.constant 0 : index
    %c0_7 = arith.constant 0 : index
    %c0_8 = arith.constant 0 : index
    %8 = vector.load %arg12[%c0_6, %c0_7, %c0_8] : memref<8x8x384xf32, #tpu.memory_space<vmem>>, vector<8x8x384xf32>
    tpu.vector_store %arg12[%c0_6, %c0_7, %c0_8], %7 {strides = array<i32>} : memref<8x8x384xf32, #tpu.memory_space<vmem>>, vector<8x8x384xf32>,
    %c0_9 = arith.constant 0 : index
    %c0_10 = arith.constant 0 : index
    %9 = vector.load %arg4[%c0_9, %c0_10] : memref<1x128xf32, #tpu.memory_space<vmem>>, vector<1x128xf32>
    %10 = vector.shape_cast %9 : vector<1x128xf32> to vector<1x128xf32>
    %11 = vector.broadcast %10 : vector<1x128xf32> to vector<8x128xf32>
    %c0_11 = arith.constant 0 : index
    %c0_12 = arith.constant 0 : index
    %12 = vector.load %arg7[%c0_11, %c0_12] : memref<1x384xf32, #tpu.memory_space<vmem>>, vector<1x384xf32>
    %13 = vector.shape_cast %12 : vector<1x384xf32> to vector<1x384xf32>
    %14 = vector.broadcast %13 : vector<1x384xf32> to vector<8x384xf32>
    %cst_13 = arith.constant 0.000000e+00 : f32
    %15 = vector.broadcast %cst_13 : f32 to vector<8x128xf32>
    %c0_14 = arith.constant 0 : index
    %c0_15 = arith.constant 0 : index
    %c0_16 = arith.constant 0 : index
    %16 = vector.load %arg12[%c0_14, %c0_15, %c0_16] : memref<8x8x384xf32, #tpu.memory_space<vmem>>, vector<1x8x384xf32>
    %17 = vector.shape_cast %16 : vector<1x8x384xf32> to vector<8x384xf32>
    %18 = arith.truncf %15 : vector<8x128xf32> to vector<8x128xbf16>
    %c0_17 = arith.constant 0 : index
    %c0_18 = arith.constant 0 : index
    %19 = vector.load %arg2[%c0_17, %c0_18] : memref<128x384xbf16, #tpu.memory_space<vmem>>, vector<128x384xbf16>
    %cst_19 = arith.constant dense<0.000000e+00> : vector<8x384xf32>
    %20 = tpu.matmul %18, %19, %cst_19 {dimension_numbers = #tpu.dot_dimension_numbers<[1], [0], [0], [1], [0, 0, 1, 1], [], []>} : vector<8x128xbf16>, vector<128x384xbf16>, vector<8x384xf32> -> vector<8x384xf32>
    %21 = vector.extract_strided_slice %17 {offsets = [0, 0], sizes = [8, 128], strides = [1, 1]} : vector<8x384xf32> to vector<8x128xf32>
    %22 = vector.extract_strided_slice %20 {offsets = [0, 0], sizes = [8, 128], strides = [1, 1]} : vector<8x384xf32> to vector<8x128xf32>
    %23 = arith.addf %21, %22 : vector<8x128xf32>
    %24 = arith.negf %23 : vector<8x128xf32>
    %25 = math.exp %24 : vector<8x128xf32>
    %cst_20 = arith.constant 1.000000e+00 : f32
    %26 = vector.broadcast %cst_20 : f32 to vector<8x128xf32>
    %27 = arith.addf %26, %25 : vector<8x128xf32>
    %28 = arith.divf %26, %27 : vector<8x128xf32>
    %29 = vector.extract_strided_slice %17 {offsets = [0, 128], sizes = [8, 128], strides = [1, 1]} : vector<8x384xf32> to vector<8x128xf32>
    %30 = vector.extract_strided_slice %20 {offsets = [0, 128], sizes = [8, 128], strides = [1, 1]} : vector<8x384xf32> to vector<8x128xf32>
    %31 = arith.addf %29, %30 : vector<8x128xf32>
    %32 = arith.negf %31 : vector<8x128xf32>
    %33 = math.exp %32 : vector<8x128xf32>
    %cst_21 = arith.constant 1.000000e+00 : f32
    %34 = vector.broadcast %cst_21 : f32 to vector<8x128xf32>
    %35 = arith.addf %34, %33 : vector<8x128xf32>
    %36 = arith.divf %34, %35 : vector<8x128xf32>
    %37 = vector.extract_strided_slice %17 {offsets = [0, 256], sizes = [8, 128], strides = [1, 1]} : vector<8x384xf32> to vector<8x128xf32>
    %38 = vector.extract_strided_slice %20 {offsets = [0, 256], sizes = [8, 128], strides = [1, 1]} : vector<8x384xf32> to vector<8x128xf32>
    %39 = arith.addf %38, %11 : vector<8x128xf32>
    %40 = arith.mulf %28, %39 : vector<8x128xf32>
    %41 = arith.addf %37, %40 : vector<8x128xf32>
    %42 = math.tanh %41 : vector<8x128xf32>
    %43 = arith.subf %15, %42 : vector<8x128xf32>
    %44 = arith.mulf %36, %43 : vector<8x128xf32>
    %45 = arith.addf %42, %44 : vector<8x128xf32>
    %46 = arith.truncf %45 : vector<8x128xf32> to vector<8x128xbf16>
    %c0_22 = arith.constant 0 : index
    %c0_23 = arith.constant 0 : index
    %47 = vector.load %arg5[%c0_22, %c0_23] : memref<128x384xbf16, #tpu.memory_space<vmem>>, vector<128x384xbf16>
    %cst_24 = arith.constant dense<0.000000e+00> : vector<8x384xf32>
    %48 = tpu.matmul %46, %47, %cst_24 {dimension_numbers = #tpu.dot_dimension_numbers<[1], [0], [0], [1], [0, 0, 1, 1], [], []>} : vector<8x128xbf16>, vector<128x384xbf16>, vector<8x384xf32> -> vector<8x384xf32>
    %49 = arith.addf %48, %14 : vector<8x384xf32>
    %c0_25 = arith.constant 0 : index
    %c0_26 = arith.constant 0 : index
    %c0_27 = arith.constant 0 : index
    %50 = vector.load %arg13[%c0_25, %c0_26, %c0_27] : memref<8x8x384xf32, #tpu.memory_space<vmem>>, vector<1x8x384xf32>
    %51 = vector.shape_cast %50 : vector<1x8x384xf32> to vector<8x384xf32>
    %52 = vector.shape_cast %49 : vector<8x384xf32> to vector<1x8x384xf32>
    tpu.vector_store %arg13[%c0_25, %c0_26, %c0_27], %52 {strides = array<i32>} : memref<8x8x384xf32, #tpu.memory_space<vmem>>, vector<1x8x384xf32>,
    %c1 = arith.constant 1 : index
    %c0_28 = arith.constant 0 : index
    %c0_29 = arith.constant 0 : index
    %53 = vector.load %arg12[%c1, %c0_28, %c0_29] : memref<8x8x384xf32, #tpu.memory_space<vmem>>, vector<1x8x384xf32>
    %54 = vector.shape_cast %53 : vector<1x8x384xf32> to vector<8x384xf32>
    %55 = arith.truncf %45 : vector<8x128xf32> to vector<8x128xbf16>
    %c0_30 = arith.constant 0 : index
    %c0_31 = arith.constant 0 : index
    %56 = vector.load %arg2[%c0_30, %c0_31] : memref<128x384xbf16, #tpu.memory_space<vmem>>, vector<128x384xbf16>
    %cst_32 = arith.constant dense<0.000000e+00> : vector<8x384xf32>
    %57 = tpu.matmul %55, %56, %cst_32 {dimension_numbers = #tpu.dot_dimension_numbers<[1], [0], [0], [1], [0, 0, 1, 1], [], []>} : vector<8x128xbf16>, vector<128x384xbf16>, vector<8x384xf32> -> vector<8x384xf32>
    %58 = vector.extract_strided_slice %54 {offsets = [0, 0], sizes = [8, 128], strides = [1, 1]} : vector<8x384xf32> to vector<8x128xf32>
    %59 = vector.extract_strided_slice %57 {offsets = [0, 0], sizes = [8, 128], strides = [1, 1]} : vector<8x384xf32> to vector<8x128xf32>
    %60 = arith.addf %58, %59 : vector<8x128xf32>
    %61 = arith.negf %60 : vector<8x128xf32>
    %62 = math.exp %61 : vector<8x128xf32>
    %cst_33 = arith.constant 1.000000e+00 : f32
    %63 = vector.broadcast %cst_33 : f32 to vector<8x128xf32>
    %64 = arith.addf %63, %62 : vector<8x128xf32>
    %65 = arith.divf %63, %64 : vector<8x128xf32>
    %66 = vector.extract_strided_slice %54 {offsets = [0, 128], sizes = [8, 128], strides = [1, 1]} : vector<8x384xf32> to vector<8x128xf32>
    %67 = vector.extract_strided_slice %57 {offsets = [0, 128], sizes = [8, 128], strides = [1, 1]} : vector<8x384xf32> to vector<8x128xf32>
    %68 = arith.addf %66, %67 : vector<8x128xf32>
    %69 = arith.negf %68 : vector<8x128xf32>
    %70 = math.exp %69 : vector<8x128xf32>
    %cst_34 = arith.constant 1.000000e+00 : f32
    %71 = vector.broadcast %cst_34 : f32 to vector<8x128xf32>
    %72 = arith.addf %71, %70 : vector<8x128xf32>
    %73 = arith.divf %71, %72 : vector<8x128xf32>
    %74 = vector.extract_strided_slice %54 {offsets = [0, 256], sizes = [8, 128], strides = [1, 1]} : vector<8x384xf32> to vector<8x128xf32>
    %75 = vector.extract_strided_slice %57 {offsets = [0, 256], sizes = [8, 128], strides = [1, 1]} : vector<8x384xf32> to vector<8x128xf32>
    %76 = arith.addf %75, %11 : vector<8x128xf32>
    %77 = arith.mulf %65, %76 : vector<8x128xf32>
    %78 = arith.addf %74, %77 : vector<8x128xf32>
    %79 = math.tanh %78 : vector<8x128xf32>
    %80 = arith.subf %45, %79 : vector<8x128xf32>
    %81 = arith.mulf %73, %80 : vector<8x128xf32>
    %82 = arith.addf %79, %81 : vector<8x128xf32>
    %83 = arith.truncf %82 : vector<8x128xf32> to vector<8x128xbf16>
    %c0_35 = arith.constant 0 : index
    %c0_36 = arith.constant 0 : index
    %84 = vector.load %arg5[%c0_35, %c0_36] : memref<128x384xbf16, #tpu.memory_space<vmem>>, vector<128x384xbf16>
    %cst_37 = arith.constant dense<0.000000e+00> : vector<8x384xf32>
    %85 = tpu.matmul %83, %84, %cst_37 {dimension_numbers = #tpu.dot_dimension_numbers<[1], [0], [0], [1], [0, 0, 1, 1], [], []>} : vector<8x128xbf16>, vector<128x384xbf16>, vector<8x384xf32> -> vector<8x384xf32>
    %86 = arith.addf %85, %14 : vector<8x384xf32>
    %c1_38 = arith.constant 1 : index
    %c0_39 = arith.constant 0 : index
    %c0_40 = arith.constant 0 : index
    %87 = vector.load %arg13[%c1_38, %c0_39, %c0_40] : memref<8x8x384xf32, #tpu.memory_space<vmem>>, vector<1x8x384xf32>
    %88 = vector.shape_cast %87 : vector<1x8x384xf32> to vector<8x384xf32>
    %89 = vector.shape_cast %86 : vector<8x384xf32> to vector<1x8x384xf32>
    tpu.vector_store %arg13[%c1_38, %c0_39, %c0_40], %89 {strides = array<i32>} : memref<8x8x384xf32, #tpu.memory_space<vmem>>, vector<1x8x384xf32>,
    %c2 = arith.constant 2 : index
    %c0_41 = arith.constant 0 : index
    %c0_42 = arith.constant 0 : index
    %90 = vector.load %arg12[%c2, %c0_41, %c0_42] : memref<8x8x384xf32, #tpu.memory_space<vmem>>, vector<1x8x384xf32>
    %91 = vector.shape_cast %90 : vector<1x8x384xf32> to vector<8x384xf32>
    %92 = arith.truncf %82 : vector<8x128xf32> to vector<8x128xbf16>
    %c0_43 = arith.constant 0 : index
    %c0_44 = arith.constant 0 : index
    %93 = vector.load %arg2[%c0_43, %c0_44] : memref<128x384xbf16, #tpu.memory_space<vmem>>, vector<128x384xbf16>
    %cst_45 = arith.constant dense<0.000000e+00> : vector<8x384xf32>
    %94 = tpu.matmul %92, %93, %cst_45 {dimension_numbers = #tpu.dot_dimension_numbers<[1], [0], [0], [1], [0, 0, 1, 1], [], []>} : vector<8x128xbf16>, vector<128x384xbf16>, vector<8x384xf32> -> vector<8x384xf32>
    %95 = vector.extract_strided_slice %91 {offsets = [0, 0], sizes = [8, 128], strides = [1, 1]} : vector<8x384xf32> to vector<8x128xf32>
    %96 = vector.extract_strided_slice %94 {offsets = [0, 0], sizes = [8, 128], strides = [1, 1]} : vector<8x384xf32> to vector<8x128xf32>
    %97 = arith.addf %95, %96 : vector<8x128xf32>
    %98 = arith.negf %97 : vector<8x128xf32>
    %99 = math.exp %98 : vector<8x128xf32>
    %cst_46 = arith.constant 1.000000e+00 : f32
    %100 = vector.broadcast %cst_46 : f32 to vector<8x128xf32>
    %101 = arith.addf %100, %99 : vector<8x128xf32>
    %102 = arith.divf %100, %101 : vector<8x128xf32>
    %103 = vector.extract_strided_slice %91 {offsets = [0, 128], sizes = [8, 128], strides = [1, 1]} : vector<8x384xf32> to vector<8x128xf32>
    %104 = vector.extract_strided_slice %94 {offsets = [0, 128], sizes = [8, 128], strides = [1, 1]} : vector<8x384xf32> to vector<8x128xf32>
    %105 = arith.addf %103, %104 : vector<8x128xf32>
    %106 = arith.negf %105 : vector<8x128xf32>
    %107 = math.exp %106 : vector<8x128xf32>
    %cst_47 = arith.constant 1.000000e+00 : f32
    %108 = vector.broadcast %cst_47 : f32 to vector<8x128xf32>
    %109 = arith.addf %108, %107 : vector<8x128xf32>
    %110 = arith.divf %108, %109 : vector<8x128xf32>
    %111 = vector.extract_strided_slice %91 {offsets = [0, 256], sizes = [8, 128], strides = [1, 1]} : vector<8x384xf32> to vector<8x128xf32>
    %112 = vector.extract_strided_slice %94 {offsets = [0, 256], sizes = [8, 128], strides = [1, 1]} : vector<8x384xf32> to vector<8x128xf32>
    %113 = arith.addf %112, %11 : vector<8x128xf32>
    %114 = arith.mulf %102, %113 : vector<8x128xf32>
    %115 = arith.addf %111, %114 : vector<8x128xf32>
    %116 = math.tanh %115 : vector<8x128xf32>
    %117 = arith.subf %82, %116 : vector<8x128xf32>
    %118 = arith.mulf %110, %117 : vector<8x128xf32>
    %119 = arith.addf %116, %118 : vector<8x128xf32>
    %120 = arith.truncf %119 : vector<8x128xf32> to vector<8x128xbf16>
    %c0_48 = arith.constant 0 : index
    %c0_49 = arith.constant 0 : index
    %121 = vector.load %arg5[%c0_48, %c0_49] : memref<128x384xbf16, #tpu.memory_space<vmem>>, vector<128x384xbf16>
    %cst_50 = arith.constant dense<0.000000e+00> : vector<8x384xf32>
    %122 = tpu.matmul %120, %121, %cst_50 {dimension_numbers = #tpu.dot_dimension_numbers<[1], [0], [0], [1], [0, 0, 1, 1], [], []>} : vector<8x128xbf16>, vector<128x384xbf16>, vector<8x384xf32> -> vector<8x384xf32>
    %123 = arith.addf %122, %14 : vector<8x384xf32>
    %c2_51 = arith.constant 2 : index
    %c0_52 = arith.constant 0 : index
    %c0_53 = arith.constant 0 : index
    %124 = vector.load %arg13[%c2_51, %c0_52, %c0_53] : memref<8x8x384xf32, #tpu.memory_space<vmem>>, vector<1x8x384xf32>
    %125 = vector.shape_cast %124 : vector<1x8x384xf32> to vector<8x384xf32>
    %126 = vector.shape_cast %123 : vector<8x384xf32> to vector<1x8x384xf32>
    tpu.vector_store %arg13[%c2_51, %c0_52, %c0_53], %126 {strides = array<i32>} : memref<8x8x384xf32, #tpu.memory_space<vmem>>, vector<1x8x384xf32>,
    %c3 = arith.constant 3 : index
    %c0_54 = arith.constant 0 : index
    %c0_55 = arith.constant 0 : index
    %127 = vector.load %arg12[%c3, %c0_54, %c0_55] : memref<8x8x384xf32, #tpu.memory_space<vmem>>, vector<1x8x384xf32>
    %128 = vector.shape_cast %127 : vector<1x8x384xf32> to vector<8x384xf32>
    %129 = arith.truncf %119 : vector<8x128xf32> to vector<8x128xbf16>
    %c0_56 = arith.constant 0 : index
    %c0_57 = arith.constant 0 : index
    %130 = vector.load %arg2[%c0_56, %c0_57] : memref<128x384xbf16, #tpu.memory_space<vmem>>, vector<128x384xbf16>
    %cst_58 = arith.constant dense<0.000000e+00> : vector<8x384xf32>
    %131 = tpu.matmul %129, %130, %cst_58 {dimension_numbers = #tpu.dot_dimension_numbers<[1], [0], [0], [1], [0, 0, 1, 1], [], []>} : vector<8x128xbf16>, vector<128x384xbf16>, vector<8x384xf32> -> vector<8x384xf32>
    %132 = vector.extract_strided_slice %128 {offsets = [0, 0], sizes = [8, 128], strides = [1, 1]} : vector<8x384xf32> to vector<8x128xf32>
    %133 = vector.extract_strided_slice %131 {offsets = [0, 0], sizes = [8, 128], strides = [1, 1]} : vector<8x384xf32> to vector<8x128xf32>
    %134 = arith.addf %132, %133 : vector<8x128xf32>
    %135 = arith.negf %134 : vector<8x128xf32>
    %136 = math.exp %135 : vector<8x128xf32>
    %cst_59 = arith.constant 1.000000e+00 : f32
    %137 = vector.broadcast %cst_59 : f32 to vector<8x128xf32>
    %138 = arith.addf %137, %136 : vector<8x128xf32>
    %139 = arith.divf %137, %138 : vector<8x128xf32>
    %140 = vector.extract_strided_slice %128 {offsets = [0, 128], sizes = [8, 128], strides = [1, 1]} : vector<8x384xf32> to vector<8x128xf32>
    %141 = vector.extract_strided_slice %131 {offsets = [0, 128], sizes = [8, 128], strides = [1, 1]} : vector<8x384xf32> to vector<8x128xf32>
    %142 = arith.addf %140, %141 : vector<8x128xf32>
    %143 = arith.negf %142 : vector<8x128xf32>
    %144 = math.exp %143 : vector<8x128xf32>
    %cst_60 = arith.constant 1.000000e+00 : f32
    %145 = vector.broadcast %cst_60 : f32 to vector<8x128xf32>
    %146 = arith.addf %145, %144 : vector<8x128xf32>
    %147 = arith.divf %145, %146 : vector<8x128xf32>
    %148 = vector.extract_strided_slice %128 {offsets = [0, 256], sizes = [8, 128], strides = [1, 1]} : vector<8x384xf32> to vector<8x128xf32>
    %149 = vector.extract_strided_slice %131 {offsets = [0, 256], sizes = [8, 128], strides = [1, 1]} : vector<8x384xf32> to vector<8x128xf32>
    %150 = arith.addf %149, %11 : vector<8x128xf32>
    %151 = arith.mulf %139, %150 : vector<8x128xf32>
    %152 = arith.addf %148, %151 : vector<8x128xf32>
    %153 = math.tanh %152 : vector<8x128xf32>
    %154 = arith.subf %119, %153 : vector<8x128xf32>
    %155 = arith.mulf %147, %154 : vector<8x128xf32>
    %156 = arith.addf %153, %155 : vector<8x128xf32>
    %157 = arith.truncf %156 : vector<8x128xf32> to vector<8x128xbf16>
    %c0_61 = arith.constant 0 : index
    %c0_62 = arith.constant 0 : index
    %158 = vector.load %arg5[%c0_61, %c0_62] : memref<128x384xbf16, #tpu.memory_space<vmem>>, vector<128x384xbf16>
    %cst_63 = arith.constant dense<0.000000e+00> : vector<8x384xf32>
    %159 = tpu.matmul %157, %158, %cst_63 {dimension_numbers = #tpu.dot_dimension_numbers<[1], [0], [0], [1], [0, 0, 1, 1], [], []>} : vector<8x128xbf16>, vector<128x384xbf16>, vector<8x384xf32> -> vector<8x384xf32>
    %160 = arith.addf %159, %14 : vector<8x384xf32>
    %c3_64 = arith.constant 3 : index
    %c0_65 = arith.constant 0 : index
    %c0_66 = arith.constant 0 : index
    %161 = vector.load %arg13[%c3_64, %c0_65, %c0_66] : memref<8x8x384xf32, #tpu.memory_space<vmem>>, vector<1x8x384xf32>
    %162 = vector.shape_cast %161 : vector<1x8x384xf32> to vector<8x384xf32>
    %163 = vector.shape_cast %160 : vector<8x384xf32> to vector<1x8x384xf32>
    tpu.vector_store %arg13[%c3_64, %c0_65, %c0_66], %163 {strides = array<i32>} : memref<8x8x384xf32, #tpu.memory_space<vmem>>, vector<1x8x384xf32>,
    %c4 = arith.constant 4 : index
    %c0_67 = arith.constant 0 : index
    %c0_68 = arith.constant 0 : index
    %164 = vector.load %arg12[%c4, %c0_67, %c0_68] : memref<8x8x384xf32, #tpu.memory_space<vmem>>, vector<1x8x384xf32>
    %165 = vector.shape_cast %164 : vector<1x8x384xf32> to vector<8x384xf32>
    %166 = arith.truncf %156 : vector<8x128xf32> to vector<8x128xbf16>
    %c0_69 = arith.constant 0 : index
    %c0_70 = arith.constant 0 : index
    %167 = vector.load %arg2[%c0_69, %c0_70] : memref<128x384xbf16, #tpu.memory_space<vmem>>, vector<128x384xbf16>
    %cst_71 = arith.constant dense<0.000000e+00> : vector<8x384xf32>
    %168 = tpu.matmul %166, %167, %cst_71 {dimension_numbers = #tpu.dot_dimension_numbers<[1], [0], [0], [1], [0, 0, 1, 1], [], []>} : vector<8x128xbf16>, vector<128x384xbf16>, vector<8x384xf32> -> vector<8x384xf32>
    %169 = vector.extract_strided_slice %165 {offsets = [0, 0], sizes = [8, 128], strides = [1, 1]} : vector<8x384xf32> to vector<8x128xf32>
    %170 = vector.extract_strided_slice %168 {offsets = [0, 0], sizes = [8, 128], strides = [1, 1]} : vector<8x384xf32> to vector<8x128xf32>
    %171 = arith.addf %169, %170 : vector<8x128xf32>
    %172 = arith.negf %171 : vector<8x128xf32>
    %173 = math.exp %172 : vector<8x128xf32>
    %cst_72 = arith.constant 1.000000e+00 : f32
    %174 = vector.broadcast %cst_72 : f32 to vector<8x128xf32>
    %175 = arith.addf %174, %173 : vector<8x128xf32>
    %176 = arith.divf %174, %175 : vector<8x128xf32>
    %177 = vector.extract_strided_slice %165 {offsets = [0, 128], sizes = [8, 128], strides = [1, 1]} : vector<8x384xf32> to vector<8x128xf32>
    %178 = vector.extract_strided_slice %168 {offsets = [0, 128], sizes = [8, 128], strides = [1, 1]} : vector<8x384xf32> to vector<8x128xf32>
    %179 = arith.addf %177, %178 : vector<8x128xf32>
    %180 = arith.negf %179 : vector<8x128xf32>
    %181 = math.exp %180 : vector<8x128xf32>
    %cst_73 = arith.constant 1.000000e+00 : f32
    %182 = vector.broadcast %cst_73 : f32 to vector<8x128xf32>
    %183 = arith.addf %182, %181 : vector<8x128xf32>
    %184 = arith.divf %182, %183 : vector<8x128xf32>
    %185 = vector.extract_strided_slice %165 {offsets = [0, 256], sizes = [8, 128], strides = [1, 1]} : vector<8x384xf32> to vector<8x128xf32>
    %186 = vector.extract_strided_slice %168 {offsets = [0, 256], sizes = [8, 128], strides = [1, 1]} : vector<8x384xf32> to vector<8x128xf32>
    %187 = arith.addf %186, %11 : vector<8x128xf32>
    %188 = arith.mulf %176, %187 : vector<8x128xf32>
    %189 = arith.addf %185, %188 : vector<8x128xf32>
    %190 = math.tanh %189 : vector<8x128xf32>
    %191 = arith.subf %156, %190 : vector<8x128xf32>
    %192 = arith.mulf %184, %191 : vector<8x128xf32>
    %193 = arith.addf %190, %192 : vector<8x128xf32>
    %194 = arith.truncf %193 : vector<8x128xf32> to vector<8x128xbf16>
    %c0_74 = arith.constant 0 : index
    %c0_75 = arith.constant 0 : index
    %195 = vector.load %arg5[%c0_74, %c0_75] : memref<128x384xbf16, #tpu.memory_space<vmem>>, vector<128x384xbf16>
    %cst_76 = arith.constant dense<0.000000e+00> : vector<8x384xf32>
    %196 = tpu.matmul %194, %195, %cst_76 {dimension_numbers = #tpu.dot_dimension_numbers<[1], [0], [0], [1], [0, 0, 1, 1], [], []>} : vector<8x128xbf16>, vector<128x384xbf16>, vector<8x384xf32> -> vector<8x384xf32>
    %197 = arith.addf %196, %14 : vector<8x384xf32>
    %c4_77 = arith.constant 4 : index
    %c0_78 = arith.constant 0 : index
    %c0_79 = arith.constant 0 : index
    %198 = vector.load %arg13[%c4_77, %c0_78, %c0_79] : memref<8x8x384xf32, #tpu.memory_space<vmem>>, vector<1x8x384xf32>
    %199 = vector.shape_cast %198 : vector<1x8x384xf32> to vector<8x384xf32>
    %200 = vector.shape_cast %197 : vector<8x384xf32> to vector<1x8x384xf32>
    tpu.vector_store %arg13[%c4_77, %c0_78, %c0_79], %200 {strides = array<i32>} : memref<8x8x384xf32, #tpu.memory_space<vmem>>, vector<1x8x384xf32>,
    %c5 = arith.constant 5 : index
    %c0_80 = arith.constant 0 : index
    %c0_81 = arith.constant 0 : index
    %201 = vector.load %arg12[%c5, %c0_80, %c0_81] : memref<8x8x384xf32, #tpu.memory_space<vmem>>, vector<1x8x384xf32>
    %202 = vector.shape_cast %201 : vector<1x8x384xf32> to vector<8x384xf32>
    %203 = arith.truncf %193 : vector<8x128xf32> to vector<8x128xbf16>
    %c0_82 = arith.constant 0 : index
    %c0_83 = arith.constant 0 : index
    %204 = vector.load %arg2[%c0_82, %c0_83] : memref<128x384xbf16, #tpu.memory_space<vmem>>, vector<128x384xbf16>
    %cst_84 = arith.constant dense<0.000000e+00> : vector<8x384xf32>
    %205 = tpu.matmul %203, %204, %cst_84 {dimension_numbers = #tpu.dot_dimension_numbers<[1], [0], [0], [1], [0, 0, 1, 1], [], []>} : vector<8x128xbf16>, vector<128x384xbf16>, vector<8x384xf32> -> vector<8x384xf32>
    %206 = vector.extract_strided_slice %202 {offsets = [0, 0], sizes = [8, 128], strides = [1, 1]} : vector<8x384xf32> to vector<8x128xf32>
    %207 = vector.extract_strided_slice %205 {offsets = [0, 0], sizes = [8, 128], strides = [1, 1]} : vector<8x384xf32> to vector<8x128xf32>
    %208 = arith.addf %206, %207 : vector<8x128xf32>
    %209 = arith.negf %208 : vector<8x128xf32>
    %210 = math.exp %209 : vector<8x128xf32>
    %cst_85 = arith.constant 1.000000e+00 : f32
    %211 = vector.broadcast %cst_85 : f32 to vector<8x128xf32>
    %212 = arith.addf %211, %210 : vector<8x128xf32>
    %213 = arith.divf %211, %212 : vector<8x128xf32>
    %214 = vector.extract_strided_slice %202 {offsets = [0, 128], sizes = [8, 128], strides = [1, 1]} : vector<8x384xf32> to vector<8x128xf32>
    %215 = vector.extract_strided_slice %205 {offsets = [0, 128], sizes = [8, 128], strides = [1, 1]} : vector<8x384xf32> to vector<8x128xf32>
    %216 = arith.addf %214, %215 : vector<8x128xf32>
    %217 = arith.negf %216 : vector<8x128xf32>
    %218 = math.exp %217 : vector<8x128xf32>
    %cst_86 = arith.constant 1.000000e+00 : f32
    %219 = vector.broadcast %cst_86 : f32 to vector<8x128xf32>
    %220 = arith.addf %219, %218 : vector<8x128xf32>
    %221 = arith.divf %219, %220 : vector<8x128xf32>
    %222 = vector.extract_strided_slice %202 {offsets = [0, 256], sizes = [8, 128], strides = [1, 1]} : vector<8x384xf32> to vector<8x128xf32>
    %223 = vector.extract_strided_slice %205 {offsets = [0, 256], sizes = [8, 128], strides = [1, 1]} : vector<8x384xf32> to vector<8x128xf32>
    %224 = arith.addf %223, %11 : vector<8x128xf32>
    %225 = arith.mulf %213, %224 : vector<8x128xf32>
    %226 = arith.addf %222, %225 : vector<8x128xf32>
    %227 = math.tanh %226 : vector<8x128xf32>
    %228 = arith.subf %193, %227 : vector<8x128xf32>
    %229 = arith.mulf %221, %228 : vector<8x128xf32>
    %230 = arith.addf %227, %229 : vector<8x128xf32>
    %231 = arith.truncf %230 : vector<8x128xf32> to vector<8x128xbf16>
    %c0_87 = arith.constant 0 : index
    %c0_88 = arith.constant 0 : index
    %232 = vector.load %arg5[%c0_87, %c0_88] : memref<128x384xbf16, #tpu.memory_space<vmem>>, vector<128x384xbf16>
    %cst_89 = arith.constant dense<0.000000e+00> : vector<8x384xf32>
    %233 = tpu.matmul %231, %232, %cst_89 {dimension_numbers = #tpu.dot_dimension_numbers<[1], [0], [0], [1], [0, 0, 1, 1], [], []>} : vector<8x128xbf16>, vector<128x384xbf16>, vector<8x384xf32> -> vector<8x384xf32>
    %234 = arith.addf %233, %14 : vector<8x384xf32>
    %c5_90 = arith.constant 5 : index
    %c0_91 = arith.constant 0 : index
    %c0_92 = arith.constant 0 : index
    %235 = vector.load %arg13[%c5_90, %c0_91, %c0_92] : memref<8x8x384xf32, #tpu.memory_space<vmem>>, vector<1x8x384xf32>
    %236 = vector.shape_cast %235 : vector<1x8x384xf32> to vector<8x384xf32>
    %237 = vector.shape_cast %234 : vector<8x384xf32> to vector<1x8x384xf32>
    tpu.vector_store %arg13[%c5_90, %c0_91, %c0_92], %237 {strides = array<i32>} : memref<8x8x384xf32, #tpu.memory_space<vmem>>, vector<1x8x384xf32>,
    %c6 = arith.constant 6 : index
    %c0_93 = arith.constant 0 : index
    %c0_94 = arith.constant 0 : index
    %238 = vector.load %arg12[%c6, %c0_93, %c0_94] : memref<8x8x384xf32, #tpu.memory_space<vmem>>, vector<1x8x384xf32>
    %239 = vector.shape_cast %238 : vector<1x8x384xf32> to vector<8x384xf32>
    %240 = arith.truncf %230 : vector<8x128xf32> to vector<8x128xbf16>
    %c0_95 = arith.constant 0 : index
    %c0_96 = arith.constant 0 : index
    %241 = vector.load %arg2[%c0_95, %c0_96] : memref<128x384xbf16, #tpu.memory_space<vmem>>, vector<128x384xbf16>
    %cst_97 = arith.constant dense<0.000000e+00> : vector<8x384xf32>
    %242 = tpu.matmul %240, %241, %cst_97 {dimension_numbers = #tpu.dot_dimension_numbers<[1], [0], [0], [1], [0, 0, 1, 1], [], []>} : vector<8x128xbf16>, vector<128x384xbf16>, vector<8x384xf32> -> vector<8x384xf32>
    %243 = vector.extract_strided_slice %239 {offsets = [0, 0], sizes = [8, 128], strides = [1, 1]} : vector<8x384xf32> to vector<8x128xf32>
    %244 = vector.extract_strided_slice %242 {offsets = [0, 0], sizes = [8, 128], strides = [1, 1]} : vector<8x384xf32> to vector<8x128xf32>
    %245 = arith.addf %243, %244 : vector<8x128xf32>
    %246 = arith.negf %245 : vector<8x128xf32>
    %247 = math.exp %246 : vector<8x128xf32>
    %cst_98 = arith.constant 1.000000e+00 : f32
    %248 = vector.broadcast %cst_98 : f32 to vector<8x128xf32>
    %249 = arith.addf %248, %247 : vector<8x128xf32>
    %250 = arith.divf %248, %249 : vector<8x128xf32>
    %251 = vector.extract_strided_slice %239 {offsets = [0, 128], sizes = [8, 128], strides = [1, 1]} : vector<8x384xf32> to vector<8x128xf32>
    %252 = vector.extract_strided_slice %242 {offsets = [0, 128], sizes = [8, 128], strides = [1, 1]} : vector<8x384xf32> to vector<8x128xf32>
    %253 = arith.addf %251, %252 : vector<8x128xf32>
    %254 = arith.negf %253 : vector<8x128xf32>
    %255 = math.exp %254 : vector<8x128xf32>
    %cst_99 = arith.constant 1.000000e+00 : f32
    %256 = vector.broadcast %cst_99 : f32 to vector<8x128xf32>
    %257 = arith.addf %256, %255 : vector<8x128xf32>
    %258 = arith.divf %256, %257 : vector<8x128xf32>
    %259 = vector.extract_strided_slice %239 {offsets = [0, 256], sizes = [8, 128], strides = [1, 1]} : vector<8x384xf32> to vector<8x128xf32>
    %260 = vector.extract_strided_slice %242 {offsets = [0, 256], sizes = [8, 128], strides = [1, 1]} : vector<8x384xf32> to vector<8x128xf32>
    %261 = arith.addf %260, %11 : vector<8x128xf32>
    %262 = arith.mulf %250, %261 : vector<8x128xf32>
    %263 = arith.addf %259, %262 : vector<8x128xf32>
    %264 = math.tanh %263 : vector<8x128xf32>
    %265 = arith.subf %230, %264 : vector<8x128xf32>
    %266 = arith.mulf %258, %265 : vector<8x128xf32>
    %267 = arith.addf %264, %266 : vector<8x128xf32>
    %268 = arith.truncf %267 : vector<8x128xf32> to vector<8x128xbf16>
    %c0_100 = arith.constant 0 : index
    %c0_101 = arith.constant 0 : index
    %269 = vector.load %arg5[%c0_100, %c0_101] : memref<128x384xbf16, #tpu.memory_space<vmem>>, vector<128x384xbf16>
    %cst_102 = arith.constant dense<0.000000e+00> : vector<8x384xf32>
    %270 = tpu.matmul %268, %269, %cst_102 {dimension_numbers = #tpu.dot_dimension_numbers<[1], [0], [0], [1], [0, 0, 1, 1], [], []>} : vector<8x128xbf16>, vector<128x384xbf16>, vector<8x384xf32> -> vector<8x384xf32>
    %271 = arith.addf %270, %14 : vector<8x384xf32>
    %c6_103 = arith.constant 6 : index
    %c0_104 = arith.constant 0 : index
    %c0_105 = arith.constant 0 : index
    %272 = vector.load %arg13[%c6_103, %c0_104, %c0_105] : memref<8x8x384xf32, #tpu.memory_space<vmem>>, vector<1x8x384xf32>
    %273 = vector.shape_cast %272 : vector<1x8x384xf32> to vector<8x384xf32>
    %274 = vector.shape_cast %271 : vector<8x384xf32> to vector<1x8x384xf32>
    tpu.vector_store %arg13[%c6_103, %c0_104, %c0_105], %274 {strides = array<i32>} : memref<8x8x384xf32, #tpu.memory_space<vmem>>, vector<1x8x384xf32>,
    %c7 = arith.constant 7 : index
    %c0_106 = arith.constant 0 : index
    %c0_107 = arith.constant 0 : index
    %275 = vector.load %arg12[%c7, %c0_106, %c0_107] : memref<8x8x384xf32, #tpu.memory_space<vmem>>, vector<1x8x384xf32>
    %276 = vector.shape_cast %275 : vector<1x8x384xf32> to vector<8x384xf32>
    %277 = arith.truncf %267 : vector<8x128xf32> to vector<8x128xbf16>
    %c0_108 = arith.constant 0 : index
    %c0_109 = arith.constant 0 : index
    %278 = vector.load %arg2[%c0_108, %c0_109] : memref<128x384xbf16, #tpu.memory_space<vmem>>, vector<128x384xbf16>
    %cst_110 = arith.constant dense<0.000000e+00> : vector<8x384xf32>
    %279 = tpu.matmul %277, %278, %cst_110 {dimension_numbers = #tpu.dot_dimension_numbers<[1], [0], [0], [1], [0, 0, 1, 1], [], []>} : vector<8x128xbf16>, vector<128x384xbf16>, vector<8x384xf32> -> vector<8x384xf32>
    %280 = vector.extract_strided_slice %276 {offsets = [0, 0], sizes = [8, 128], strides = [1, 1]} : vector<8x384xf32> to vector<8x128xf32>
    %281 = vector.extract_strided_slice %279 {offsets = [0, 0], sizes = [8, 128], strides = [1, 1]} : vector<8x384xf32> to vector<8x128xf32>
    %282 = arith.addf %280, %281 : vector<8x128xf32>
    %283 = arith.negf %282 : vector<8x128xf32>
    %284 = math.exp %283 : vector<8x128xf32>
    %cst_111 = arith.constant 1.000000e+00 : f32
    %285 = vector.broadcast %cst_111 : f32 to vector<8x128xf32>
    %286 = arith.addf %285, %284 : vector<8x128xf32>
    %287 = arith.divf %285, %286 : vector<8x128xf32>
    %288 = vector.extract_strided_slice %276 {offsets = [0, 128], sizes = [8, 128], strides = [1, 1]} : vector<8x384xf32> to vector<8x128xf32>
    %289 = vector.extract_strided_slice %279 {offsets = [0, 128], sizes = [8, 128], strides = [1, 1]} : vector<8x384xf32> to vector<8x128xf32>
    %290 = arith.addf %288, %289 : vector<8x128xf32>
    %291 = arith.negf %290 : vector<8x128xf32>
    %292 = math.exp %291 : vector<8x128xf32>
    %cst_112 = arith.constant 1.000000e+00 : f32
    %293 = vector.broadcast %cst_112 : f32 to vector<8x128xf32>
    %294 = arith.addf %293, %292 : vector<8x128xf32>
    %295 = arith.divf %293, %294 : vector<8x128xf32>
    %296 = vector.extract_strided_slice %276 {offsets = [0, 256], sizes = [8, 128], strides = [1, 1]} : vector<8x384xf32> to vector<8x128xf32>
    %297 = vector.extract_strided_slice %279 {offsets = [0, 256], sizes = [8, 128], strides = [1, 1]} : vector<8x384xf32> to vector<8x128xf32>
    %298 = arith.addf %297, %11 : vector<8x128xf32>
    %299 = arith.mulf %287, %298 : vector<8x128xf32>
    %300 = arith.addf %296, %299 : vector<8x128xf32>
    %301 = math.tanh %300 : vector<8x128xf32>
    %302 = arith.subf %267, %301 : vector<8x128xf32>
    %303 = arith.mulf %295, %302 : vector<8x128xf32>
    %304 = arith.addf %301, %303 : vector<8x128xf32>
    %305 = arith.truncf %304 : vector<8x128xf32> to vector<8x128xbf16>
    %c0_113 = arith.constant 0 : index
    %c0_114 = arith.constant 0 : index
    %306 = vector.load %arg5[%c0_113, %c0_114] : memref<128x384xbf16, #tpu.memory_space<vmem>>, vector<128x384xbf16>
    %cst_115 = arith.constant dense<0.000000e+00> : vector<8x384xf32>
    %307 = tpu.matmul %305, %306, %cst_115 {dimension_numbers = #tpu.dot_dimension_numbers<[1], [0], [0], [1], [0, 0, 1, 1], [], []>} : vector<8x128xbf16>, vector<128x384xbf16>, vector<8x384xf32> -> vector<8x384xf32>
    %308 = arith.addf %307, %14 : vector<8x384xf32>
    %c7_116 = arith.constant 7 : index
    %c0_117 = arith.constant 0 : index
    %c0_118 = arith.constant 0 : index
    %309 = vector.load %arg13[%c7_116, %c0_117, %c0_118] : memref<8x8x384xf32, #tpu.memory_space<vmem>>, vector<1x8x384xf32>
    %310 = vector.shape_cast %309 : vector<1x8x384xf32> to vector<8x384xf32>
    %311 = vector.shape_cast %308 : vector<8x384xf32> to vector<1x8x384xf32>
    tpu.vector_store %arg13[%c7_116, %c0_117, %c0_118], %311 {strides = array<i32>} : memref<8x8x384xf32, #tpu.memory_space<vmem>>, vector<1x8x384xf32>,
    %c0_119 = arith.constant 0 : index
    %c0_120 = arith.constant 0 : index
    %312 = vector.load %arg8[%c0_119, %c0_120] : memref<1x128xf32, #tpu.memory_space<vmem>>, vector<1x128xf32>
    %313 = vector.shape_cast %312 : vector<1x128xf32> to vector<1x128xf32>
    %314 = vector.broadcast %313 : vector<1x128xf32> to vector<8x128xf32>
    %cst_121 = arith.constant 0.000000e+00 : f32
    %315 = vector.broadcast %cst_121 : f32 to vector<8x128xf32>
    %c0_122 = arith.constant 0 : index
    %c0_123 = arith.constant 0 : index
    %c0_124 = arith.constant 0 : index
    %316 = vector.load %arg13[%c0_122, %c0_123, %c0_124] : memref<8x8x384xf32, #tpu.memory_space<vmem>>, vector<1x8x384xf32>
    %317 = vector.shape_cast %316 : vector<1x8x384xf32> to vector<8x384xf32>
    %318 = arith.truncf %315 : vector<8x128xf32> to vector<8x128xbf16>
    %c0_125 = arith.constant 0 : index
    %c0_126 = arith.constant 0 : index
    %319 = vector.load %arg6[%c0_125, %c0_126] : memref<128x384xbf16, #tpu.memory_space<vmem>>, vector<128x384xbf16>
    %cst_127 = arith.constant dense<0.000000e+00> : vector<8x384xf32>
    %320 = tpu.matmul %318, %319, %cst_127 {dimension_numbers = #tpu.dot_dimension_numbers<[1], [0], [0], [1], [0, 0, 1, 1], [], []>} : vector<8x128xbf16>, vector<128x384xbf16>, vector<8x384xf32> -> vector<8x384xf32>
    %321 = vector.extract_strided_slice %317 {offsets = [0, 0], sizes = [8, 128], strides = [1, 1]} : vector<8x384xf32> to vector<8x128xf32>
    %322 = vector.extract_strided_slice %320 {offsets = [0, 0], sizes = [8, 128], strides = [1, 1]} : vector<8x384xf32> to vector<8x128xf32>
    %323 = arith.addf %321, %322 : vector<8x128xf32>
    %324 = arith.negf %323 : vector<8x128xf32>
    %325 = math.exp %324 : vector<8x128xf32>
    %cst_128 = arith.constant 1.000000e+00 : f32
    %326 = vector.broadcast %cst_128 : f32 to vector<8x128xf32>
    %327 = arith.addf %326, %325 : vector<8x128xf32>
    %328 = arith.divf %326, %327 : vector<8x128xf32>
    %329 = vector.extract_strided_slice %317 {offsets = [0, 128], sizes = [8, 128], strides = [1, 1]} : vector<8x384xf32> to vector<8x128xf32>
    %330 = vector.extract_strided_slice %320 {offsets = [0, 128], sizes = [8, 128], strides = [1, 1]} : vector<8x384xf32> to vector<8x128xf32>
    %331 = arith.addf %329, %330 : vector<8x128xf32>
    %332 = arith.negf %331 : vector<8x128xf32>
    %333 = math.exp %332 : vector<8x128xf32>
    %cst_129 = arith.constant 1.000000e+00 : f32
    %334 = vector.broadcast %cst_129 : f32 to vector<8x128xf32>
    %335 = arith.addf %334, %333 : vector<8x128xf32>
    %336 = arith.divf %334, %335 : vector<8x128xf32>
    %337 = vector.extract_strided_slice %317 {offsets = [0, 256], sizes = [8, 128], strides = [1, 1]} : vector<8x384xf32> to vector<8x128xf32>
    %338 = vector.extract_strided_slice %320 {offsets = [0, 256], sizes = [8, 128], strides = [1, 1]} : vector<8x384xf32> to vector<8x128xf32>
    %339 = arith.addf %338, %314 : vector<8x128xf32>
    %340 = arith.mulf %328, %339 : vector<8x128xf32>
    %341 = arith.addf %337, %340 : vector<8x128xf32>
    %342 = math.tanh %341 : vector<8x128xf32>
    %343 = arith.subf %315, %342 : vector<8x128xf32>
    %344 = arith.mulf %336, %343 : vector<8x128xf32>
    %345 = arith.addf %342, %344 : vector<8x128xf32>
    %c1_130 = arith.constant 1 : index
    %c0_131 = arith.constant 0 : index
    %c0_132 = arith.constant 0 : index
    %346 = vector.load %arg13[%c1_130, %c0_131, %c0_132] : memref<8x8x384xf32, #tpu.memory_space<vmem>>, vector<1x8x384xf32>
    %347 = vector.shape_cast %346 : vector<1x8x384xf32> to vector<8x384xf32>
    %348 = arith.truncf %345 : vector<8x128xf32> to vector<8x128xbf16>
    %c0_133 = arith.constant 0 : index
    %c0_134 = arith.constant 0 : index
    %349 = vector.load %arg6[%c0_133, %c0_134] : memref<128x384xbf16, #tpu.memory_space<vmem>>, vector<128x384xbf16>
    %cst_135 = arith.constant dense<0.000000e+00> : vector<8x384xf32>
    %350 = tpu.matmul %348, %349, %cst_135 {dimension_numbers = #tpu.dot_dimension_numbers<[1], [0], [0], [1], [0, 0, 1, 1], [], []>} : vector<8x128xbf16>, vector<128x384xbf16>, vector<8x384xf32> -> vector<8x384xf32>
    %351 = vector.extract_strided_slice %347 {offsets = [0, 0], sizes = [8, 128], strides = [1, 1]} : vector<8x384xf32> to vector<8x128xf32>
    %352 = vector.extract_strided_slice %350 {offsets = [0, 0], sizes = [8, 128], strides = [1, 1]} : vector<8x384xf32> to vector<8x128xf32>
    %353 = arith.addf %351, %352 : vector<8x128xf32>
    %354 = arith.negf %353 : vector<8x128xf32>
    %355 = math.exp %354 : vector<8x128xf32>
    %cst_136 = arith.constant 1.000000e+00 : f32
    %356 = vector.broadcast %cst_136 : f32 to vector<8x128xf32>
    %357 = arith.addf %356, %355 : vector<8x128xf32>
    %358 = arith.divf %356, %357 : vector<8x128xf32>
    %359 = vector.extract_strided_slice %347 {offsets = [0, 128], sizes = [8, 128], strides = [1, 1]} : vector<8x384xf32> to vector<8x128xf32>
    %360 = vector.extract_strided_slice %350 {offsets = [0, 128], sizes = [8, 128], strides = [1, 1]} : vector<8x384xf32> to vector<8x128xf32>
    %361 = arith.addf %359, %360 : vector<8x128xf32>
    %362 = arith.negf %361 : vector<8x128xf32>
    %363 = math.exp %362 : vector<8x128xf32>
    %cst_137 = arith.constant 1.000000e+00 : f32
    %364 = vector.broadcast %cst_137 : f32 to vector<8x128xf32>
    %365 = arith.addf %364, %363 : vector<8x128xf32>
    %366 = arith.divf %364, %365 : vector<8x128xf32>
    %367 = vector.extract_strided_slice %347 {offsets = [0, 256], sizes = [8, 128], strides = [1, 1]} : vector<8x384xf32> to vector<8x128xf32>
    %368 = vector.extract_strided_slice %350 {offsets = [0, 256], sizes = [8, 128], strides = [1, 1]} : vector<8x384xf32> to vector<8x128xf32>
    %369 = arith.addf %368, %314 : vector<8x128xf32>
    %370 = arith.mulf %358, %369 : vector<8x128xf32>
    %371 = arith.addf %367, %370 : vector<8x128xf32>
    %372 = math.tanh %371 : vector<8x128xf32>
    %373 = arith.subf %345, %372 : vector<8x128xf32>
    %374 = arith.mulf %366, %373 : vector<8x128xf32>
    %375 = arith.addf %372, %374 : vector<8x128xf32>
    %c2_138 = arith.constant 2 : index
    %c0_139 = arith.constant 0 : index
    %c0_140 = arith.constant 0 : index
    %376 = vector.load %arg13[%c2_138, %c0_139, %c0_140] : memref<8x8x384xf32, #tpu.memory_space<vmem>>, vector<1x8x384xf32>
    %377 = vector.shape_cast %376 : vector<1x8x384xf32> to vector<8x384xf32>
    %378 = arith.truncf %375 : vector<8x128xf32> to vector<8x128xbf16>
    %c0_141 = arith.constant 0 : index
    %c0_142 = arith.constant 0 : index
    %379 = vector.load %arg6[%c0_141, %c0_142] : memref<128x384xbf16, #tpu.memory_space<vmem>>, vector<128x384xbf16>
    %cst_143 = arith.constant dense<0.000000e+00> : vector<8x384xf32>
    %380 = tpu.matmul %378, %379, %cst_143 {dimension_numbers = #tpu.dot_dimension_numbers<[1], [0], [0], [1], [0, 0, 1, 1], [], []>} : vector<8x128xbf16>, vector<128x384xbf16>, vector<8x384xf32> -> vector<8x384xf32>
    %381 = vector.extract_strided_slice %377 {offsets = [0, 0], sizes = [8, 128], strides = [1, 1]} : vector<8x384xf32> to vector<8x128xf32>
    %382 = vector.extract_strided_slice %380 {offsets = [0, 0], sizes = [8, 128], strides = [1, 1]} : vector<8x384xf32> to vector<8x128xf32>
    %383 = arith.addf %381, %382 : vector<8x128xf32>
    %384 = arith.negf %383 : vector<8x128xf32>
    %385 = math.exp %384 : vector<8x128xf32>
    %cst_144 = arith.constant 1.000000e+00 : f32
    %386 = vector.broadcast %cst_144 : f32 to vector<8x128xf32>
    %387 = arith.addf %386, %385 : vector<8x128xf32>
    %388 = arith.divf %386, %387 : vector<8x128xf32>
    %389 = vector.extract_strided_slice %377 {offsets = [0, 128], sizes = [8, 128], strides = [1, 1]} : vector<8x384xf32> to vector<8x128xf32>
    %390 = vector.extract_strided_slice %380 {offsets = [0, 128], sizes = [8, 128], strides = [1, 1]} : vector<8x384xf32> to vector<8x128xf32>
    %391 = arith.addf %389, %390 : vector<8x128xf32>
    %392 = arith.negf %391 : vector<8x128xf32>
    %393 = math.exp %392 : vector<8x128xf32>
    %cst_145 = arith.constant 1.000000e+00 : f32
    %394 = vector.broadcast %cst_145 : f32 to vector<8x128xf32>
    %395 = arith.addf %394, %393 : vector<8x128xf32>
    %396 = arith.divf %394, %395 : vector<8x128xf32>
    %397 = vector.extract_strided_slice %377 {offsets = [0, 256], sizes = [8, 128], strides = [1, 1]} : vector<8x384xf32> to vector<8x128xf32>
    %398 = vector.extract_strided_slice %380 {offsets = [0, 256], sizes = [8, 128], strides = [1, 1]} : vector<8x384xf32> to vector<8x128xf32>
    %399 = arith.addf %398, %314 : vector<8x128xf32>
    %400 = arith.mulf %388, %399 : vector<8x128xf32>
    %401 = arith.addf %397, %400 : vector<8x128xf32>
    %402 = math.tanh %401 : vector<8x128xf32>
    %403 = arith.subf %375, %402 : vector<8x128xf32>
    %404 = arith.mulf %396, %403 : vector<8x128xf32>
    %405 = arith.addf %402, %404 : vector<8x128xf32>
    %c3_146 = arith.constant 3 : index
    %c0_147 = arith.constant 0 : index
    %c0_148 = arith.constant 0 : index
    %406 = vector.load %arg13[%c3_146, %c0_147, %c0_148] : memref<8x8x384xf32, #tpu.memory_space<vmem>>, vector<1x8x384xf32>
    %407 = vector.shape_cast %406 : vector<1x8x384xf32> to vector<8x384xf32>
    %408 = arith.truncf %405 : vector<8x128xf32> to vector<8x128xbf16>
    %c0_149 = arith.constant 0 : index
    %c0_150 = arith.constant 0 : index
    %409 = vector.load %arg6[%c0_149, %c0_150] : memref<128x384xbf16, #tpu.memory_space<vmem>>, vector<128x384xbf16>
    %cst_151 = arith.constant dense<0.000000e+00> : vector<8x384xf32>
    %410 = tpu.matmul %408, %409, %cst_151 {dimension_numbers = #tpu.dot_dimension_numbers<[1], [0], [0], [1], [0, 0, 1, 1], [], []>} : vector<8x128xbf16>, vector<128x384xbf16>, vector<8x384xf32> -> vector<8x384xf32>
    %411 = vector.extract_strided_slice %407 {offsets = [0, 0], sizes = [8, 128], strides = [1, 1]} : vector<8x384xf32> to vector<8x128xf32>
    %412 = vector.extract_strided_slice %410 {offsets = [0, 0], sizes = [8, 128], strides = [1, 1]} : vector<8x384xf32> to vector<8x128xf32>
    %413 = arith.addf %411, %412 : vector<8x128xf32>
    %414 = arith.negf %413 : vector<8x128xf32>
    %415 = math.exp %414 : vector<8x128xf32>
    %cst_152 = arith.constant 1.000000e+00 : f32
    %416 = vector.broadcast %cst_152 : f32 to vector<8x128xf32>
    %417 = arith.addf %416, %415 : vector<8x128xf32>
    %418 = arith.divf %416, %417 : vector<8x128xf32>
    %419 = vector.extract_strided_slice %407 {offsets = [0, 128], sizes = [8, 128], strides = [1, 1]} : vector<8x384xf32> to vector<8x128xf32>
    %420 = vector.extract_strided_slice %410 {offsets = [0, 128], sizes = [8, 128], strides = [1, 1]} : vector<8x384xf32> to vector<8x128xf32>
    %421 = arith.addf %419, %420 : vector<8x128xf32>
    %422 = arith.negf %421 : vector<8x128xf32>
    %423 = math.exp %422 : vector<8x128xf32>
    %cst_153 = arith.constant 1.000000e+00 : f32
    %424 = vector.broadcast %cst_153 : f32 to vector<8x128xf32>
    %425 = arith.addf %424, %423 : vector<8x128xf32>
    %426 = arith.divf %424, %425 : vector<8x128xf32>
    %427 = vector.extract_strided_slice %407 {offsets = [0, 256], sizes = [8, 128], strides = [1, 1]} : vector<8x384xf32> to vector<8x128xf32>
    %428 = vector.extract_strided_slice %410 {offsets = [0, 256], sizes = [8, 128], strides = [1, 1]} : vector<8x384xf32> to vector<8x128xf32>
    %429 = arith.addf %428, %314 : vector<8x128xf32>
    %430 = arith.mulf %418, %429 : vector<8x128xf32>
    %431 = arith.addf %427, %430 : vector<8x128xf32>
    %432 = math.tanh %431 : vector<8x128xf32>
    %433 = arith.subf %405, %432 : vector<8x128xf32>
    %434 = arith.mulf %426, %433 : vector<8x128xf32>
    %435 = arith.addf %432, %434 : vector<8x128xf32>
    %c4_154 = arith.constant 4 : index
    %c0_155 = arith.constant 0 : index
    %c0_156 = arith.constant 0 : index
    %436 = vector.load %arg13[%c4_154, %c0_155, %c0_156] : memref<8x8x384xf32, #tpu.memory_space<vmem>>, vector<1x8x384xf32>
    %437 = vector.shape_cast %436 : vector<1x8x384xf32> to vector<8x384xf32>
    %438 = arith.truncf %435 : vector<8x128xf32> to vector<8x128xbf16>
    %c0_157 = arith.constant 0 : index
    %c0_158 = arith.constant 0 : index
    %439 = vector.load %arg6[%c0_157, %c0_158] : memref<128x384xbf16, #tpu.memory_space<vmem>>, vector<128x384xbf16>
    %cst_159 = arith.constant dense<0.000000e+00> : vector<8x384xf32>
    %440 = tpu.matmul %438, %439, %cst_159 {dimension_numbers = #tpu.dot_dimension_numbers<[1], [0], [0], [1], [0, 0, 1, 1], [], []>} : vector<8x128xbf16>, vector<128x384xbf16>, vector<8x384xf32> -> vector<8x384xf32>
    %441 = vector.extract_strided_slice %437 {offsets = [0, 0], sizes = [8, 128], strides = [1, 1]} : vector<8x384xf32> to vector<8x128xf32>
    %442 = vector.extract_strided_slice %440 {offsets = [0, 0], sizes = [8, 128], strides = [1, 1]} : vector<8x384xf32> to vector<8x128xf32>
    %443 = arith.addf %441, %442 : vector<8x128xf32>
    %444 = arith.negf %443 : vector<8x128xf32>
    %445 = math.exp %444 : vector<8x128xf32>
    %cst_160 = arith.constant 1.000000e+00 : f32
    %446 = vector.broadcast %cst_160 : f32 to vector<8x128xf32>
    %447 = arith.addf %446, %445 : vector<8x128xf32>
    %448 = arith.divf %446, %447 : vector<8x128xf32>
    %449 = vector.extract_strided_slice %437 {offsets = [0, 128], sizes = [8, 128], strides = [1, 1]} : vector<8x384xf32> to vector<8x128xf32>
    %450 = vector.extract_strided_slice %440 {offsets = [0, 128], sizes = [8, 128], strides = [1, 1]} : vector<8x384xf32> to vector<8x128xf32>
    %451 = arith.addf %449, %450 : vector<8x128xf32>
    %452 = arith.negf %451 : vector<8x128xf32>
    %453 = math.exp %452 : vector<8x128xf32>
    %cst_161 = arith.constant 1.000000e+00 : f32
    %454 = vector.broadcast %cst_161 : f32 to vector<8x128xf32>
    %455 = arith.addf %454, %453 : vector<8x128xf32>
    %456 = arith.divf %454, %455 : vector<8x128xf32>
    %457 = vector.extract_strided_slice %437 {offsets = [0, 256], sizes = [8, 128], strides = [1, 1]} : vector<8x384xf32> to vector<8x128xf32>
    %458 = vector.extract_strided_slice %440 {offsets = [0, 256], sizes = [8, 128], strides = [1, 1]} : vector<8x384xf32> to vector<8x128xf32>
    %459 = arith.addf %458, %314 : vector<8x128xf32>
    %460 = arith.mulf %448, %459 : vector<8x128xf32>
    %461 = arith.addf %457, %460 : vector<8x128xf32>
    %462 = math.tanh %461 : vector<8x128xf32>
    %463 = arith.subf %435, %462 : vector<8x128xf32>
    %464 = arith.mulf %456, %463 : vector<8x128xf32>
    %465 = arith.addf %462, %464 : vector<8x128xf32>
    %c5_162 = arith.constant 5 : index
    %c0_163 = arith.constant 0 : index
    %c0_164 = arith.constant 0 : index
    %466 = vector.load %arg13[%c5_162, %c0_163, %c0_164] : memref<8x8x384xf32, #tpu.memory_space<vmem>>, vector<1x8x384xf32>
    %467 = vector.shape_cast %466 : vector<1x8x384xf32> to vector<8x384xf32>
    %468 = arith.truncf %465 : vector<8x128xf32> to vector<8x128xbf16>
    %c0_165 = arith.constant 0 : index
    %c0_166 = arith.constant 0 : index
    %469 = vector.load %arg6[%c0_165, %c0_166] : memref<128x384xbf16, #tpu.memory_space<vmem>>, vector<128x384xbf16>
    %cst_167 = arith.constant dense<0.000000e+00> : vector<8x384xf32>
    %470 = tpu.matmul %468, %469, %cst_167 {dimension_numbers = #tpu.dot_dimension_numbers<[1], [0], [0], [1], [0, 0, 1, 1], [], []>} : vector<8x128xbf16>, vector<128x384xbf16>, vector<8x384xf32> -> vector<8x384xf32>
    %471 = vector.extract_strided_slice %467 {offsets = [0, 0], sizes = [8, 128], strides = [1, 1]} : vector<8x384xf32> to vector<8x128xf32>
    %472 = vector.extract_strided_slice %470 {offsets = [0, 0], sizes = [8, 128], strides = [1, 1]} : vector<8x384xf32> to vector<8x128xf32>
    %473 = arith.addf %471, %472 : vector<8x128xf32>
    %474 = arith.negf %473 : vector<8x128xf32>
    %475 = math.exp %474 : vector<8x128xf32>
    %cst_168 = arith.constant 1.000000e+00 : f32
    %476 = vector.broadcast %cst_168 : f32 to vector<8x128xf32>
    %477 = arith.addf %476, %475 : vector<8x128xf32>
    %478 = arith.divf %476, %477 : vector<8x128xf32>
    %479 = vector.extract_strided_slice %467 {offsets = [0, 128], sizes = [8, 128], strides = [1, 1]} : vector<8x384xf32> to vector<8x128xf32>
    %480 = vector.extract_strided_slice %470 {offsets = [0, 128], sizes = [8, 128], strides = [1, 1]} : vector<8x384xf32> to vector<8x128xf32>
    %481 = arith.addf %479, %480 : vector<8x128xf32>
    %482 = arith.negf %481 : vector<8x128xf32>
    %483 = math.exp %482 : vector<8x128xf32>
    %cst_169 = arith.constant 1.000000e+00 : f32
    %484 = vector.broadcast %cst_169 : f32 to vector<8x128xf32>
    %485 = arith.addf %484, %483 : vector<8x128xf32>
    %486 = arith.divf %484, %485 : vector<8x128xf32>
    %487 = vector.extract_strided_slice %467 {offsets = [0, 256], sizes = [8, 128], strides = [1, 1]} : vector<8x384xf32> to vector<8x128xf32>
    %488 = vector.extract_strided_slice %470 {offsets = [0, 256], sizes = [8, 128], strides = [1, 1]} : vector<8x384xf32> to vector<8x128xf32>
    %489 = arith.addf %488, %314 : vector<8x128xf32>
    %490 = arith.mulf %478, %489 : vector<8x128xf32>
    %491 = arith.addf %487, %490 : vector<8x128xf32>
    %492 = math.tanh %491 : vector<8x128xf32>
    %493 = arith.subf %465, %492 : vector<8x128xf32>
    %494 = arith.mulf %486, %493 : vector<8x128xf32>
    %495 = arith.addf %492, %494 : vector<8x128xf32>
    %c6_170 = arith.constant 6 : index
    %c0_171 = arith.constant 0 : index
    %c0_172 = arith.constant 0 : index
    %496 = vector.load %arg13[%c6_170, %c0_171, %c0_172] : memref<8x8x384xf32, #tpu.memory_space<vmem>>, vector<1x8x384xf32>
    %497 = vector.shape_cast %496 : vector<1x8x384xf32> to vector<8x384xf32>
    %498 = arith.truncf %495 : vector<8x128xf32> to vector<8x128xbf16>
    %c0_173 = arith.constant 0 : index
    %c0_174 = arith.constant 0 : index
    %499 = vector.load %arg6[%c0_173, %c0_174] : memref<128x384xbf16, #tpu.memory_space<vmem>>, vector<128x384xbf16>
    %cst_175 = arith.constant dense<0.000000e+00> : vector<8x384xf32>
    %500 = tpu.matmul %498, %499, %cst_175 {dimension_numbers = #tpu.dot_dimension_numbers<[1], [0], [0], [1], [0, 0, 1, 1], [], []>} : vector<8x128xbf16>, vector<128x384xbf16>, vector<8x384xf32> -> vector<8x384xf32>
    %501 = vector.extract_strided_slice %497 {offsets = [0, 0], sizes = [8, 128], strides = [1, 1]} : vector<8x384xf32> to vector<8x128xf32>
    %502 = vector.extract_strided_slice %500 {offsets = [0, 0], sizes = [8, 128], strides = [1, 1]} : vector<8x384xf32> to vector<8x128xf32>
    %503 = arith.addf %501, %502 : vector<8x128xf32>
    %504 = arith.negf %503 : vector<8x128xf32>
    %505 = math.exp %504 : vector<8x128xf32>
    %cst_176 = arith.constant 1.000000e+00 : f32
    %506 = vector.broadcast %cst_176 : f32 to vector<8x128xf32>
    %507 = arith.addf %506, %505 : vector<8x128xf32>
    %508 = arith.divf %506, %507 : vector<8x128xf32>
    %509 = vector.extract_strided_slice %497 {offsets = [0, 128], sizes = [8, 128], strides = [1, 1]} : vector<8x384xf32> to vector<8x128xf32>
    %510 = vector.extract_strided_slice %500 {offsets = [0, 128], sizes = [8, 128], strides = [1, 1]} : vector<8x384xf32> to vector<8x128xf32>
    %511 = arith.addf %509, %510 : vector<8x128xf32>
    %512 = arith.negf %511 : vector<8x128xf32>
    %513 = math.exp %512 : vector<8x128xf32>
    %cst_177 = arith.constant 1.000000e+00 : f32
    %514 = vector.broadcast %cst_177 : f32 to vector<8x128xf32>
    %515 = arith.addf %514, %513 : vector<8x128xf32>
    %516 = arith.divf %514, %515 : vector<8x128xf32>
    %517 = vector.extract_strided_slice %497 {offsets = [0, 256], sizes = [8, 128], strides = [1, 1]} : vector<8x384xf32> to vector<8x128xf32>
    %518 = vector.extract_strided_slice %500 {offsets = [0, 256], sizes = [8, 128], strides = [1, 1]} : vector<8x384xf32> to vector<8x128xf32>
    %519 = arith.addf %518, %314 : vector<8x128xf32>
    %520 = arith.mulf %508, %519 : vector<8x128xf32>
    %521 = arith.addf %517, %520 : vector<8x128xf32>
    %522 = math.tanh %521 : vector<8x128xf32>
    %523 = arith.subf %495, %522 : vector<8x128xf32>
    %524 = arith.mulf %516, %523 : vector<8x128xf32>
    %525 = arith.addf %522, %524 : vector<8x128xf32>
    %c7_178 = arith.constant 7 : index
    %c0_179 = arith.constant 0 : index
    %c0_180 = arith.constant 0 : index
    %526 = vector.load %arg13[%c7_178, %c0_179, %c0_180] : memref<8x8x384xf32, #tpu.memory_space<vmem>>, vector<1x8x384xf32>
    %527 = vector.shape_cast %526 : vector<1x8x384xf32> to vector<8x384xf32>
    %528 = arith.truncf %525 : vector<8x128xf32> to vector<8x128xbf16>
    %c0_181 = arith.constant 0 : index
    %c0_182 = arith.constant 0 : index
    %529 = vector.load %arg6[%c0_181, %c0_182] : memref<128x384xbf16, #tpu.memory_space<vmem>>, vector<128x384xbf16>
    %cst_183 = arith.constant dense<0.000000e+00> : vector<8x384xf32>
    %530 = tpu.matmul %528, %529, %cst_183 {dimension_numbers = #tpu.dot_dimension_numbers<[1], [0], [0], [1], [0, 0, 1, 1], [], []>} : vector<8x128xbf16>, vector<128x384xbf16>, vector<8x384xf32> -> vector<8x384xf32>
    %531 = vector.extract_strided_slice %527 {offsets = [0, 0], sizes = [8, 128], strides = [1, 1]} : vector<8x384xf32> to vector<8x128xf32>
    %532 = vector.extract_strided_slice %530 {offsets = [0, 0], sizes = [8, 128], strides = [1, 1]} : vector<8x384xf32> to vector<8x128xf32>
    %533 = arith.addf %531, %532 : vector<8x128xf32>
    %534 = arith.negf %533 : vector<8x128xf32>
    %535 = math.exp %534 : vector<8x128xf32>
    %cst_184 = arith.constant 1.000000e+00 : f32
    %536 = vector.broadcast %cst_184 : f32 to vector<8x128xf32>
    %537 = arith.addf %536, %535 : vector<8x128xf32>
    %538 = arith.divf %536, %537 : vector<8x128xf32>
    %539 = vector.extract_strided_slice %527 {offsets = [0, 128], sizes = [8, 128], strides = [1, 1]} : vector<8x384xf32> to vector<8x128xf32>
    %540 = vector.extract_strided_slice %530 {offsets = [0, 128], sizes = [8, 128], strides = [1, 1]} : vector<8x384xf32> to vector<8x128xf32>
    %541 = arith.addf %539, %540 : vector<8x128xf32>
    %542 = arith.negf %541 : vector<8x128xf32>
    %543 = math.exp %542 : vector<8x128xf32>
    %cst_185 = arith.constant 1.000000e+00 : f32
    %544 = vector.broadcast %cst_185 : f32 to vector<8x128xf32>
    %545 = arith.addf %544, %543 : vector<8x128xf32>
    %546 = arith.divf %544, %545 : vector<8x128xf32>
    %547 = vector.extract_strided_slice %527 {offsets = [0, 256], sizes = [8, 128], strides = [1, 1]} : vector<8x384xf32> to vector<8x128xf32>
    %548 = vector.extract_strided_slice %530 {offsets = [0, 256], sizes = [8, 128], strides = [1, 1]} : vector<8x384xf32> to vector<8x128xf32>
    %549 = arith.addf %548, %314 : vector<8x128xf32>
    %550 = arith.mulf %538, %549 : vector<8x128xf32>
    %551 = arith.addf %547, %550 : vector<8x128xf32>
    %552 = math.tanh %551 : vector<8x128xf32>
    %553 = arith.subf %525, %552 : vector<8x128xf32>
    %554 = arith.mulf %546, %553 : vector<8x128xf32>
    %555 = arith.addf %552, %554 : vector<8x128xf32>
    %556 = arith.truncf %555 : vector<8x128xf32> to vector<8x128xbf16>
    %c0_186 = arith.constant 0 : index
    %c0_187 = arith.constant 0 : index
    %557 = vector.load %arg9[%c0_186, %c0_187] : memref<128x128xbf16, #tpu.memory_space<vmem>>, vector<128x128xbf16>
    %cst_188 = arith.constant dense<0.000000e+00> : vector<8x128xf32>
    %558 = tpu.matmul %556, %557, %cst_188 {dimension_numbers = #tpu.dot_dimension_numbers<[1], [0], [0], [1], [0, 0, 1, 1], [], []>} : vector<8x128xbf16>, vector<128x128xbf16>, vector<8x128xf32> -> vector<8x128xf32>
    %c0_189 = arith.constant 0 : index
    %c0_190 = arith.constant 0 : index
    %559 = vector.load %arg10[%c0_189, %c0_190] : memref<1x128xf32, #tpu.memory_space<vmem>>, vector<1x128xf32>
    %560 = vector.broadcast %559 : vector<1x128xf32> to vector<8x128xf32>
    %561 = arith.addf %558, %560 : vector<8x128xf32>
    %c0_191 = arith.constant 0 : index
    %c0_192 = arith.constant 0 : index
    %562 = vector.load %arg11[%c0_191, %c0_192] : memref<8x128xf32, #tpu.memory_space<vmem>>, vector<8x128xf32>
    tpu.vector_store %arg11[%c0_191, %c0_192], %561 {strides = array<i32>} : memref<8x128xf32, #tpu.memory_space<vmem>>, vector<8x128xf32>,
    return
  }
}

</mosaic_0001>

<llo_original>
// kernel: gru_forward.1
$region0: #{gru_forward.1}
  #allocation0 [shape = 'u32[]', space=smem, size = 0x4, offset = 0x4, fixed_abs, tag = 'smem constant byte address 0x4 - core index']
  #allocation1 [shape = 'u32[144,128]{1,0:T(1,128)}', space=vmem, size = 0x12000, scoped, tag = 'internal scratch']
  #allocation2 [shape = 'f32[8,8,384]{2,1,0:T(8,128)}', space=vmem, size = 0x18000, scoped, tag = 'scratch operand']
  #allocation3 [shape = 'f32[8,8,384]{2,1,0:T(8,128)}', space=vmem, size = 0x18000, scoped, tag = 'scratch operand']
  %s0 = inlined_call_operand.vmem [shape: bf16[8,8,128], index: 0, kind: input, shape index: {}]
  %s1 = inlined_call_operand.hbm [shape: bf16[128,384], index: 1, kind: input, shape index: {}]
  %s2 = inlined_call_operand.hbm [shape: bf16[128,384], index: 2, kind: input, shape index: {}]
  %s3 = inlined_call_operand.vmem [shape: f32[1,384], index: 3, kind: input, shape index: {}]
  %s4 = inlined_call_operand.vmem [shape: f32[1,128], index: 4, kind: input, shape index: {}]
  %s5 = inlined_call_operand.hbm [shape: bf16[128,384], index: 5, kind: input, shape index: {}]
  %s6 = inlined_call_operand.hbm [shape: bf16[128,384], index: 6, kind: input, shape index: {}]
  %s7 = inlined_call_operand.vmem [shape: f32[1,384], index: 7, kind: input, shape index: {}]
  %s8 = inlined_call_operand.vmem [shape: f32[1,128], index: 8, kind: input, shape index: {}]
  %s9 = inlined_call_operand.vmem [shape: bf16[128,128], index: 9, kind: input, shape index: {}]
  %s10 = inlined_call_operand.hbm [shape: f32[1,128], index: 10, kind: input, shape index: {}]
  %s11 = inlined_call_operand.vmem [shape: f32[8,128], index: 11, kind: output, shape index: {}]
  %s12 = sld [smem:[#allocation0]]
  $region74: #{gru_forward.1} parent=0
    _
  %s14 = ssub.s32 1, %s12
  %s15 = scalar_select 0, %s14, %s12
  $region1: #{gru_forward.1} parent=0
    #allocation4 [shape = 'u8[98304]{0}', space=vmem, size = 0x18000, scoped, tag = 'input window, operand 1, single buffered']
    #allocation5 [shape = 's32[1]{0}', space=sflag, size = 0x4, scoped, tag = 'scoped memory for gru_forward.1']
    #allocation6 [shape = 'u8[98304]{0}', space=vmem, size = 0x18000, scoped, tag = 'input window, operand 2, single buffered']
    #allocation7 [shape = 's32[1]{0}', space=sflag, size = 0x4, scoped, tag = 'scoped memory for gru_forward.1']
    #allocation8 [shape = 'u8[98304]{0}', space=vmem, size = 0x18000, scoped, tag = 'input window, operand 5, single buffered']
    #allocation9 [shape = 'u8[98304]{0}', space=vmem, size = 0x18000, scoped, tag = 'input window, operand 6, single buffered']
    #allocation10 [shape = 's32[1]{0}', space=sflag, size = 0x4, scoped, tag = 'scoped memory for gru_forward.1']
    #allocation11 [shape = 'u8[512]{0}', space=vmem, size = 0x400, scoped, tag = 'input window, operand 10, single buffered']
    %16 = vsyncpa [#allocation5], 0
    %17 = vsyncpa [#allocation7], 0
    %18 = vsyncpa [#allocation10], 0
    // Predicated region
    $region2: #{gru_forward.1} parent=1 // pred_check
      _
    $region3: #{gru_forward.1} parent=1 // pred_check_branch
      %20 = sbr.rel (0) target = $region5
    $region4: #{gru_forward.1} parent=1 // pred_region
      _
    $region5: #{gru_forward.1} parent=1 // pred_fallthru
      _
    // Predicated region
    $region6: #{gru_forward.1} parent=1 // pred_check
      _
    $region7: #{gru_forward.1} parent=1 // pred_check_branch
      %22 = sbr.rel (0) target = $region9
    $region8: #{gru_forward.1} parent=1 // pred_region
      %s24 = ssub.s32 3072, 3072
      %25 = vsyncadd [#allocation5], %s24
      %s26 = sshll.u32 [#allocation4], 4
      %s27 = int_to_ptr.vmem [resolvable:$true] %s26
      %32 = dma.hbm_to_vmem [thread:$0]  %s1, 3072, %s27, [#allocation5], 192, 192, 12
    $region9: #{gru_forward.1} parent=1 // pred_fallthru
      _
    // Predicated region
    $region10: #{gru_forward.1} parent=1 // pred_check
      _
    $region11: #{gru_forward.1} parent=1 // pred_check_branch
      %34 = sbr.rel (0) target = $region13
    $region12: #{gru_forward.1} parent=1 // pred_region
      %s36 = ssub.s32 3072, 3072
      %37 = vsyncadd [#allocation7], %s36
      %s38 = sshll.u32 [#allocation6], 4
      %s39 = int_to_ptr.vmem [resolvable:$true] %s38
      %44 = dma.hbm_to_vmem [thread:$0]  %s2, 3072, %s39, [#allocation7], 192, 192, 12
    $region13: #{gru_forward.1} parent=1 // pred_fallthru
      _
    // Predicated region
    $region14: #{gru_forward.1} parent=1 // pred_check
      _
    $region15: #{gru_forward.1} parent=1 // pred_check_branch
      %46 = sbr.rel (0) target = $region17
    $region16: #{gru_forward.1} parent=1 // pred_region
      _
    $region17: #{gru_forward.1} parent=1 // pred_fallthru
      _
    // Predicated region
    $region18: #{gru_forward.1} parent=1 // pred_check
      _
    $region19: #{gru_forward.1} parent=1 // pred_check_branch
      %48 = sbr.rel (0) target = $region21
    $region20: #{gru_forward.1} parent=1 // pred_region
      _
    $region21: #{gru_forward.1} parent=1 // pred_fallthru
      _
    // Predicated region
    $region22: #{gru_forward.1} parent=1 // pred_check
      _
    $region23: #{gru_forward.1} parent=1 // pred_check_branch
      %50 = sbr.rel (0) target = $region25
    $region24: #{gru_forward.1} parent=1 // pred_region
      %s52 = ssub.s32 3072, 3072
      %53 = vsyncadd [#allocation7], %s52
      %s54 = sshll.u32 [#allocation8], 4
      %s55 = int_to_ptr.vmem [resolvable:$true] %s54
      %60 = dma.hbm_to_vmem [thread:$0]  %s5, 3072, %s55, [#allocation7], 192, 192, 12
    $region25: #{gru_forward.1} parent=1 // pred_fallthru
      _
    // Predicated region
    $region26: #{gru_forward.1} parent=1 // pred_check
      _
    $region27: #{gru_forward.1} parent=1 // pred_check_branch
      %62 = sbr.rel (0) target = $region29
    $region28: #{gru_forward.1} parent=1 // pred_region
      %s64 = ssub.s32 3072, 3072
      %65 = vsyncadd [#allocation10], %s64
      %s66 = sshll.u32 [#allocation9], 4
      %s67 = int_to_ptr.vmem [resolvable:$true] %s66
      %72 = dma.hbm_to_vmem [thread:$0]  %s6, 3072, %s67, [#allocation10], 192, 192, 12
    $region29: #{gru_forward.1} parent=1 // pred_fallthru
      _
    // Predicated region
    $region30: #{gru_forward.1} parent=1 // pred_check
      _
    $region31: #{gru_forward.1} parent=1 // pred_check_branch
      %74 = sbr.rel (0) target = $region33
    $region32: #{gru_forward.1} parent=1 // pred_region
      _
    $region33: #{gru_forward.1} parent=1 // pred_fallthru
      _
    // Predicated region
    $region34: #{gru_forward.1} parent=1 // pred_check
      _
    $region35: #{gru_forward.1} parent=1 // pred_check_branch
      %76 = sbr.rel (0) target = $region37
    $region36: #{gru_forward.1} parent=1 // pred_region
      _
    $region37: #{gru_forward.1} parent=1 // pred_fallthru
      _
    // Predicated region
    $region38: #{gru_forward.1} parent=1 // pred_check
      _
    $region39: #{gru_forward.1} parent=1 // pred_check_branch
      %78 = sbr.rel (0) target = $region41
    $region40: #{gru_forward.1} parent=1 // pred_region
      _
    $region41: #{gru_forward.1} parent=1 // pred_fallthru
      _
    // Predicated region
    $region42: #{gru_forward.1} parent=1 // pred_check
      _
    $region43: #{gru_forward.1} parent=1 // pred_check_branch
      %80 = sbr.rel (0) target = $region45
    $region44: #{gru_forward.1} parent=1 // pred_region
      %s82 = ssub.s32 16, 16
      %83 = vsyncadd [#allocation10], %s82
      %s85 = sshll.u32 [#allocation11], 4
      %s86 = int_to_ptr.vmem [resolvable:$true] %s85
      %88 = dma.hbm_to_vmem [thread:$0]  %s10, 16, %s86, [#allocation10]
    $region45: #{gru_forward.1} parent=1 // pred_fallthru
      _
    // Predicated region
    $region46: #{gru_forward.1} parent=1 // pred_check
      _
    $region47: #{gru_forward.1} parent=1 // pred_check_branch
      %90 = sbr.rel (0) target = $region49
    $region48: #{gru_forward.1} parent=1 // pred_region
      %91 = dma.done [#allocation5], 3072
    $region49: #{gru_forward.1} parent=1 // pred_fallthru
      _
    // Predicated region
    $region50: #{gru_forward.1} parent=1 // pred_check
      _
    $region51: #{gru_forward.1} parent=1 // pred_check_branch
      %93 = sbr.rel (0) target = $region53
    $region52: #{gru_forward.1} parent=1 // pred_region
      %94 = dma.done [#allocation7], 3072
    $region53: #{gru_forward.1} parent=1 // pred_fallthru
      _
    // Predicated region
    $region54: #{gru_forward.1} parent=1 // pred_check
      _
    $region55: #{gru_forward.1} parent=1 // pred_check_branch
      %96 = sbr.rel (0) target = $region57
    $region56: #{gru_forward.1} parent=1 // pred_region
      %97 = dma.done [#allocation7], 3072
    $region57: #{gru_forward.1} parent=1 // pred_fallthru
      _
    // Predicated region
    $region58: #{gru_forward.1} parent=1 // pred_check
      _
    $region59: #{gru_forward.1} parent=1 // pred_check_branch
      %99 = sbr.rel (0) target = $region61
    $region60: #{gru_forward.1} parent=1 // pred_region
      %100 = dma.done [#allocation10], 3072
    $region61: #{gru_forward.1} parent=1 // pred_fallthru
      _
    // Predicated region
    $region62: #{gru_forward.1} parent=1 // pred_check
      _
    $region63: #{gru_forward.1} parent=1 // pred_check_branch
      %102 = sbr.rel (0) target = $region65
    $region64: #{gru_forward.1} parent=1 // pred_region
      %103 = dma.done [#allocation10], 16
    $region65: #{gru_forward.1} parent=1 // pred_fallthru
      _
    %v105 = vld [vmem:[%s0] sm:$0xf]
    %v106 = vld [vmem:[%s0 + $0x4] sm:$0xf]
    %v107 = vld [vmem:[%s0 + $0x8] sm:$0xf]
    %v108 = vld [vmem:[%s0 + $0xc] sm:$0xf]
    %v109 = vld [vmem:[%s0 + $0x10] sm:$0xf]
    %v110 = vld [vmem:[%s0 + $0x14] sm:$0xf]
    %v111 = vld [vmem:[%s0 + $0x18] sm:$0xf]
    %v112 = vld [vmem:[%s0 + $0x1c] sm:$0xf]
    %v113 = vld [vmem:[#allocation4] sm:$0xff]
    %v114 = vld [vmem:[#allocation4 + $0x8] sm:$0xf]
    %v115 = vld [vmem:[#allocation4 + $0xc] sm:$0xff]
    %v116 = vld [vmem:[#allocation4 + $0x14] sm:$0xf]
    %v117 = vld [vmem:[#allocation4 + $0x18] sm:$0xff]
    %v118 = vld [vmem:[#allocation4 + $0x20] sm:$0xf]
    %v119 = vld [vmem:[#allocation4 + $0x24] sm:$0xff]
    %v120 = vld [vmem:[#allocation4 + $0x2c] sm:$0xf]
    %v121 = vld [vmem:[#allocation4 + $0x30] sm:$0xff]
    %v122 = vld [vmem:[#allocation4 + $0x38] sm:$0xf]
    %v123 = vld [vmem:[#allocation4 + $0x3c] sm:$0xff]
    %v124 = vld [vmem:[#allocation4 + $0x44] sm:$0xf]
    %v125 = vld [vmem:[#allocation4 + $0x48] sm:$0xff]
    %v126 = vld [vmem:[#allocation4 + $0x50] sm:$0xf]
    %v127 = vld [vmem:[#allocation4 + $0x54] sm:$0xff]
    %v128 = vld [vmem:[#allocation4 + $0x5c] sm:$0xf]
    %v129 = vld [vmem:[#allocation4 + $0x60] sm:$0xff]
    %v130 = vld [vmem:[#allocation4 + $0x68] sm:$0xf]
    %v131 = vld [vmem:[#allocation4 + $0x6c] sm:$0xff]
    %v132 = vld [vmem:[#allocation4 + $0x74] sm:$0xf]
    %v133 = vld [vmem:[#allocation4 + $0x78] sm:$0xff]
    %v134 = vld [vmem:[#allocation4 + $0x80] sm:$0xf]
    %v135 = vld [vmem:[#allocation4 + $0x84] sm:$0xff]
    %v136 = vld [vmem:[#allocation4 + $0x8c] sm:$0xf]
    %v137 = vld [vmem:[#allocation4 + $0x90] sm:$0xff]
    %v138 = vld [vmem:[#allocation4 + $0x98] sm:$0xf]
    %v139 = vld [vmem:[#allocation4 + $0x9c] sm:$0xff]
    %v140 = vld [vmem:[#allocation4 + $0xa4] sm:$0xf]
    %v141 = vld [vmem:[#allocation4 + $0xa8] sm:$0xff]
    %v142 = vld [vmem:[#allocation4 + $0xb0] sm:$0xf]
    %v143 = vld [vmem:[#allocation4 + $0xb4] sm:$0xff]
    %v144 = vld [vmem:[#allocation4 + $0xbc] sm:$0xf]
    %v145 = vld [vmem:[%s3] sm:$0x7]
    %v147 = vlaneseq
    %v148 = vshrl.u32 %v147, 7
    %v149 = vsub.s32 0, %v148
    %v150 = vrot.slane %v145, %v149
    %v151 = vlaneseq
    %v152 = vshrl.u32 %v151, 7
    %v153 = vsub.s32 1, %v152
    %v154 = vrot.slane %v145, %v153
    %v155 = vlaneseq
    %v156 = vshrl.u32 %v155, 7
    %v157 = vsub.s32 2, %v156
    %v158 = vrot.slane %v145, %v157
    %v170 = vunpack.c.l.b16 %v105
    %v171 = vunpack.c.l.b16 %v106
    %v172 = vunpack.c.l.b16 %v107
    %v173 = vunpack.c.l.b16 %v108
    %v174 = vunpack.c.l.b16 %v109
    %v175 = vunpack.c.l.b16 %v110
    %v176 = vunpack.c.l.b16 %v111
    %v177 = vunpack.c.l.b16 %v112
    %v178 = vpack.c.b16 %v171, %v170
    %v179 = vpack.c.b16 %v173, %v172
    %v180 = vpack.c.b16 %v175, %v174
    %v181 = vpack.c.b16 %v177, %v176
    %v218 = vunpack.c.l.b16 %v113
    %v219 = vunpack.c.h.b16 %v113
    %v220 = vunpack.c.l.b16 %v114
    %v221 = vunpack.c.l.b16 %v115
    %v222 = vunpack.c.h.b16 %v115
    %v223 = vunpack.c.l.b16 %v116
    %v224 = vunpack.c.l.b16 %v117
    %v225 = vunpack.c.h.b16 %v117
    %v226 = vunpack.c.l.b16 %v118
    %v227 = vunpack.c.l.b16 %v119
    %v228 = vunpack.c.h.b16 %v119
    %v229 = vunpack.c.l.b16 %v120
    %v230 = vunpack.c.l.b16 %v121
    %v231 = vunpack.c.h.b16 %v121
    %v232 = vunpack.c.l.b16 %v122
    %v233 = vunpack.c.l.b16 %v123
    %v234 = vunpack.c.h.b16 %v123
    %v235 = vunpack.c.l.b16 %v124
    %v236 = vunpack.c.l.b16 %v125
    %v237 = vunpack.c.h.b16 %v125
    %v238 = vunpack.c.l.b16 %v126
    %v239 = vunpack.c.l.b16 %v127
    %v240 = vunpack.c.h.b16 %v127
    %v241 = vunpack.c.l.b16 %v128
    %v242 = vunpack.c.l.b16 %v129
    %v243 = vunpack.c.h.b16 %v129
    %v244 = vunpack.c.l.b16 %v130
    %v245 = vunpack.c.l.b16 %v131
    %v246 = vunpack.c.h.b16 %v131
    %v247 = vunpack.c.l.b16 %v132
    %v248 = vunpack.c.l.b16 %v133
    %v249 = vunpack.c.h.b16 %v133
    %v250 = vunpack.c.l.b16 %v134
    %v251 = vunpack.c.l.b16 %v135
    %v252 = vunpack.c.h.b16 %v135
    %v253 = vunpack.c.l.b16 %v136
    %v254 = vunpack.c.l.b16 %v137
    %v255 = vunpack.c.h.b16 %v137
    %v256 = vunpack.c.l.b16 %v138
    %v257 = vunpack.c.l.b16 %v139
    %v258 = vunpack.c.h.b16 %v139
    %v259 = vunpack.c.l.b16 %v140
    %v260 = vunpack.c.l.b16 %v141
    %v261 = vunpack.c.h.b16 %v141
    %v262 = vunpack.c.l.b16 %v142
    %v263 = vunpack.c.l.b16 %v143
    %v264 = vunpack.c.h.b16 %v143
    %v265 = vunpack.c.l.b16 %v144
    %v266 = vpack.c.b16 %v221, %v218
    %v267 = vpack.c.b16 %v222, %v219
    %v268 = vpack.c.b16 %v223, %v220
    %v269 = vpack.c.b16 %v227, %v224
    %v270 = vpack.c.b16 %v228, %v225
    %v271 = vpack.c.b16 %v229, %v226
    %v272 = vpack.c.b16 %v233, %v230
    %v273 = vpack.c.b16 %v234, %v231
    %v274 = vpack.c.b16 %v235, %v232
    %v275 = vpack.c.b16 %v239, %v236
    %v276 = vpack.c.b16 %v240, %v237
    %v277 = vpack.c.b16 %v241, %v238
    %v278 = vpack.c.b16 %v245, %v242
    %v279 = vpack.c.b16 %v246, %v243
    %v280 = vpack.c.b16 %v247, %v244
    %v281 = vpack.c.b16 %v251, %v248
    %v282 = vpack.c.b16 %v252, %v249
    %v283 = vpack.c.b16 %v253, %v250
    %v284 = vpack.c.b16 %v257, %v254
    %v285 = vpack.c.b16 %v258, %v255
    %v286 = vpack.c.b16 %v259, %v256
    %v287 = vpack.c.b16 %v263, %v260
    %v288 = vpack.c.b16 %v264, %v261
    %v289 = vpack.c.b16 %v265, %v262
    %314 = vmatprep.subr.bf16.mxu0 %v267
    %315 = vmatpush1.bf16.msra.mxu0 %v266
    %316 = vmatprep.subr.bf16.mxu0 %v270
    %317 = vmatpush1.bf16.msra.mxu0 %v269
    %318 = vmatprep.subr.bf16.mxu0 %v273
    %319 = vmatpush1.bf16.msra.mxu0 %v272
    %320 = vmatprep.subr.bf16.mxu0 %v276
    %321 = vmatpush1.bf16.msra.mxu0 %v275
    %322 = vmatprep.subr.bf16.mxu0 %v279
    %323 = vmatpush1.bf16.msra.mxu0 %v278
    %324 = vmatprep.subr.bf16.mxu0 %v282
    %325 = vmatpush1.bf16.msra.mxu0 %v281
    %326 = vmatprep.subr.bf16.mxu0 %v285
    %327 = vmatpush1.bf16.msra.mxu0 %v284
    %328 = vmatprep.subr.bf16.mxu0 %v288
    %329 = vmatpush1.bf16.msra.mxu0 %v287
    %330 = vmatprep.subr.bf16.mxu0 0
    %331 = vmatpush1.bf16.msra.mxu0 0
    %332 = vmatprep.subr.bf16.mxu0 0
    %333 = vmatpush1.bf16.msra.mxu0 0
    %334 = vmatprep.subr.bf16.mxu0 0
    %335 = vmatpush1.bf16.msra.mxu0 0
    %336 = vmatprep.subr.bf16.mxu0 0
    %337 = vmatpush1.bf16.msra.mxu0 0
    %338 = vmatprep.subr.bf16.mxu0 0
    %339 = vmatpush1.bf16.msra.mxu0 0
    %340 = vmatprep.subr.bf16.mxu0 0
    %341 = vmatpush1.bf16.msra.mxu0 0
    %342 = vmatprep.subr.bf16.mxu0 0
    %343 = vmatpush1.bf16.msra.mxu0 0
    %344 = vmatprep.subr.bf16.mxu0 0
    %345 = vmatpush1.bf16.msra.mxu0 0
    %346 = vmatprep.mubr.bf16.mxu0 0
    %347 = vmatmul.mubr.bf16.gmra.mrb[0].mxu0 %v178
    %v348 = vpop.f32.mrb[0].mxu0
    %v349 = vadd.f32 %v150, %v348
    %v350 = vpop.f32.mrb[0].mxu0
    %v351 = vadd.f32 %v154, %v350
    %v352 = vpop.f32.mrb[0].mxu0
    %v353 = vadd.f32 %v150, %v352
    %v354 = vpop.f32.mrb[0].mxu0
    %v355 = vadd.f32 %v154, %v354
    %356 = vmatprep.mubr.bf16.mxu0 0
    %357 = vmatmul.mubr.bf16.gmra.mrb[0].mxu0 %v179
    %v358 = vpop.f32.mrb[0].mxu0
    %v359 = vadd.f32 %v150, %v358
    %v360 = vpop.f32.mrb[0].mxu0
    %v361 = vadd.f32 %v154, %v360
    %v362 = vpop.f32.mrb[0].mxu0
    %v363 = vadd.f32 %v150, %v362
    %v364 = vpop.f32.mrb[0].mxu0
    %v365 = vadd.f32 %v154, %v364
    %366 = vmatprep.mubr.bf16.mxu0 0
    %367 = vmatmul.mubr.bf16.gmra.mrb[0].mxu0 %v180
    %v368 = vpop.f32.mrb[0].mxu0
    %v369 = vadd.f32 %v150, %v368
    %v370 = vpop.f32.mrb[0].mxu0
    %v371 = vadd.f32 %v154, %v370
    %v372 = vpop.f32.mrb[0].mxu0
    %v373 = vadd.f32 %v150, %v372
    %v374 = vpop.f32.mrb[0].mxu0
    %v375 = vadd.f32 %v154, %v374
    %376 = vmatprep.mubr.bf16.mxu0 0
    %377 = vmatmul.mubr.bf16.gmra.mrb[0].mxu0 %v181
    %v378 = vpop.f32.mrb[0].mxu0
    %v379 = vadd.f32 %v150, %v378
    %v380 = vpop.f32.mrb[0].mxu0
    %v381 = vadd.f32 %v154, %v380
    %v382 = vpop.f32.mrb[0].mxu0
    %v383 = vadd.f32 %v150, %v382
    %v384 = vpop.f32.mrb[0].mxu0
    %v385 = vadd.f32 %v154, %v384
    %386 = vdwg.mxu0
    %387 = vmatprep.subr.bf16.mxu0 0
    %388 = vmatpush1.bf16.msra.mxu0 %v268
    %389 = vmatprep.subr.bf16.mxu0 0
    %390 = vmatpush1.bf16.msra.mxu0 %v271
    %391 = vmatprep.subr.bf16.mxu0 0
    %392 = vmatpush1.bf16.msra.mxu0 %v274
    %393 = vmatprep.subr.bf16.mxu0 0
    %394 = vmatpush1.bf16.msra.mxu0 %v277
    %395 = vmatprep.subr.bf16.mxu0 0
    %396 = vmatpush1.bf16.msra.mxu0 %v280
    %397 = vmatprep.subr.bf16.mxu0 0
    %398 = vmatpush1.bf16.msra.mxu0 %v283
    %399 = vmatprep.subr.bf16.mxu0 0
    %400 = vmatpush1.bf16.msra.mxu0 %v286
    %401 = vmatprep.subr.bf16.mxu0 0
    %402 = vmatpush1.bf16.msra.mxu0 %v289
    %403 = vmatprep.subr.bf16.mxu0 0
    %404 = vmatpush1.bf16.msra.mxu0 0
    %405 = vmatprep.subr.bf16.mxu0 0
    %406 = vmatpush1.bf16.msra.mxu0 0
    %407 = vmatprep.subr.bf16.mxu0 0
    %408 = vmatpush1.bf16.msra.mxu0 0
    %409 = vmatprep.subr.bf16.mxu0 0
    %410 = vmatpush1.bf16.msra.mxu0 0
    %411 = vmatprep.subr.bf16.mxu0 0
    %412 = vmatpush1.bf16.msra.mxu0 0
    %413 = vmatprep.subr.bf16.mxu0 0
    %414 = vmatpush1.bf16.msra.mxu0 0
    %415 = vmatprep.subr.bf16.mxu0 0
    %416 = vmatpush1.bf16.msra.mxu0 0
    %417 = vmatprep.subr.bf16.mxu0 0
    %418 = vmatpush1.bf16.msra.mxu0 0
    %419 = vmatprep.mubr.bf16.mxu0 0
    %420 = vmatmul.mubr.bf16.gmra.mrb[0].mxu0 %v178
    %v421 = vpop.f32.mrb[0].mxu0
    %v422 = vadd.f32 %v158, %v421
    %v423 = vpop.f32.mrb[0].mxu0
    %v424 = vpop.f32.mrb[0].mxu0
    %v425 = vadd.f32 %v158, %v424
    %v426 = vpop.f32.mrb[0].mxu0
    %427 = vmatprep.mubr.bf16.mxu0 0
    %428 = vmatmul.mubr.bf16.gmra.mrb[0].mxu0 %v179
    %v429 = vpop.f32.mrb[0].mxu0
    %v430 = vadd.f32 %v158, %v429
    %v431 = vpop.f32.mrb[0].mxu0
    %v432 = vpop.f32.mrb[0].mxu0
    %v433 = vadd.f32 %v158, %v432
    %v434 = vpop.f32.mrb[0].mxu0
    %435 = vmatprep.mubr.bf16.mxu0 0
    %436 = vmatmul.mubr.bf16.gmra.mrb[0].mxu0 %v180
    %v437 = vpop.f32.mrb[0].mxu0
    %v438 = vadd.f32 %v158, %v437
    %v439 = vpop.f32.mrb[0].mxu0
    %v440 = vpop.f32.mrb[0].mxu0
    %v441 = vadd.f32 %v158, %v440
    %v442 = vpop.f32.mrb[0].mxu0
    %443 = vmatprep.mubr.bf16.mxu0 0
    %444 = vmatmul.mubr.bf16.gmra.mrb[0].mxu0 %v181
    %v445 = vpop.f32.mrb[0].mxu0
    %v446 = vadd.f32 %v158, %v445
    %v447 = vpop.f32.mrb[0].mxu0
    %v448 = vpop.f32.mrb[0].mxu0
    %v449 = vadd.f32 %v158, %v448
    %v450 = vpop.f32.mrb[0].mxu0
    %451 = vdwg.mxu0
    %452 = vst [vmem:[#allocation2] sm:$0xff] %v349
    %453 = vst [vmem:[#allocation2 + $0x8] sm:$0xff] %v351
    %454 = vst [vmem:[#allocation2 + $0x10] sm:$0xff] %v422
    %455 = vst [vmem:[#allocation2 + $0x18] sm:$0xff] %v353
    %456 = vst [vmem:[#allocation2 + $0x20] sm:$0xff] %v355
    %457 = vst [vmem:[#allocation2 + $0x28] sm:$0xff] %v425
    %458 = vst [vmem:[#allocation2 + $0x30] sm:$0xff] %v359
    %459 = vst [vmem:[#allocation2 + $0x38] sm:$0xff] %v361
    %460 = vst [vmem:[#allocation2 + $0x40] sm:$0xff] %v430
    %461 = vst [vmem:[#allocation2 + $0x48] sm:$0xff] %v363
    %462 = vst [vmem:[#allocation2 + $0x50] sm:$0xff] %v365
    %463 = vst [vmem:[#allocation2 + $0x58] sm:$0xff] %v433
    %464 = vst [vmem:[#allocation2 + $0x60] sm:$0xff] %v369
    %465 = vst [vmem:[#allocation2 + $0x68] sm:$0xff] %v371
    %466 = vst [vmem:[#allocation2 + $0x70] sm:$0xff] %v438
    %467 = vst [vmem:[#allocation2 + $0x78] sm:$0xff] %v373
    %468 = vst [vmem:[#allocation2 + $0x80] sm:$0xff] %v375
    %469 = vst [vmem:[#allocation2 + $0x88] sm:$0xff] %v441
    %470 = vst [vmem:[#allocation2 + $0x90] sm:$0xff] %v379
    %471 = vst [vmem:[#allocation2 + $0x98] sm:$0xff] %v381
    %472 = vst [vmem:[#allocation2 + $0xa0] sm:$0xff] %v446
    %473 = vst [vmem:[#allocation2 + $0xa8] sm:$0xff] %v383
    %474 = vst [vmem:[#allocation2 + $0xb0] sm:$0xff] %v385
    %475 = vst [vmem:[#allocation2 + $0xb8] sm:$0xff] %v449
    %v476 = vld [vmem:[%s4] sm:$0x1]
    %v478 = vlaneseq
    %v479 = vshrl.u32 %v478, 7
    %v480 = vsub.s32 0, %v479
    %v481 = vrot.slane %v476, %v480
    %v483 = vld [vmem:[%s7] sm:$0x7]
    %v485 = vlaneseq
    %v486 = vshrl.u32 %v485, 7
    %v487 = vsub.s32 0, %v486
    %v488 = vrot.slane %v483, %v487
    %v489 = vlaneseq
    %v490 = vshrl.u32 %v489, 7
    %v491 = vsub.s32 1, %v490
    %v492 = vrot.slane %v483, %v491
    %v493 = vlaneseq
    %v494 = vshrl.u32 %v493, 7
    %v495 = vsub.s32 2, %v494
    %v496 = vrot.slane %v483, %v495
    %v500 = vld [vmem:[#allocation2] sm:$0xff]
    %v501 = vld [vmem:[#allocation2 + $0x8] sm:$0xff]
    %v502 = vld [vmem:[#allocation2 + $0x10] sm:$0xff]
    %v503 = vld [vmem:[#allocation6] sm:$0xff]
    %v504 = vld [vmem:[#allocation6 + $0x8] sm:$0xf]
    %v505 = vld [vmem:[#allocation6 + $0xc] sm:$0xff]
    %v506 = vld [vmem:[#allocation6 + $0x14] sm:$0xf]
    %v507 = vld [vmem:[#allocation6 + $0x18] sm:$0xff]
    %v508 = vld [vmem:[#allocation6 + $0x20] sm:$0xf]
    %v509 = vld [vmem:[#allocation6 + $0x24] sm:$0xff]
    %v510 = vld [vmem:[#allocation6 + $0x2c] sm:$0xf]
    %v511 = vld [vmem:[#allocation6 + $0x30] sm:$0xff]
    %v512 = vld [vmem:[#allocation6 + $0x38] sm:$0xf]
    %v513 = vld [vmem:[#allocation6 + $0x3c] sm:$0xff]
    %v514 = vld [vmem:[#allocation6 + $0x44] sm:$0xf]
    %v515 = vld [vmem:[#allocation6 + $0x48] sm:$0xff]
    %v516 = vld [vmem:[#allocation6 + $0x50] sm:$0xf]
    %v517 = vld [vmem:[#allocation6 + $0x54] sm:$0xff]
    %v518 = vld [vmem:[#allocation6 + $0x5c] sm:$0xf]
    %v519 = vld [vmem:[#allocation6 + $0x60] sm:$0xff]
    %v520 = vld [vmem:[#allocation6 + $0x68] sm:$0xf]
    %v521 = vld [vmem:[#allocation6 + $0x6c] sm:$0xff]
    %v522 = vld [vmem:[#allocation6 + $0x74] sm:$0xf]
    %v523 = vld [vmem:[#allocation6 + $0x78] sm:$0xff]
    %v524 = vld [vmem:[#allocation6 + $0x80] sm:$0xf]
    %v525 = vld [vmem:[#allocation6 + $0x84] sm:$0xff]
    %v526 = vld [vmem:[#allocation6 + $0x8c] sm:$0xf]
    %v527 = vld [vmem:[#allocation6 + $0x90] sm:$0xff]
    %v528 = vld [vmem:[#allocation6 + $0x98] sm:$0xf]
    %v529 = vld [vmem:[#allocation6 + $0x9c] sm:$0xff]
    %v530 = vld [vmem:[#allocation6 + $0xa4] sm:$0xf]
    %v531 = vld [vmem:[#allocation6 + $0xa8] sm:$0xff]
    %v532 = vld [vmem:[#allocation6 + $0xb0] sm:$0xf]
    %v533 = vld [vmem:[#allocation6 + $0xb4] sm:$0xff]
    %v534 = vld [vmem:[#allocation6 + $0xbc] sm:$0xf]
    %v567 = vunpack.c.l.b16 %v503
    %v568 = vunpack.c.h.b16 %v503
    %v569 = vunpack.c.l.b16 %v504
    %v570 = vunpack.c.l.b16 %v505
    %v571 = vunpack.c.h.b16 %v505
    %v572 = vunpack.c.l.b16 %v506
    %v573 = vunpack.c.l.b16 %v507
    %v574 = vunpack.c.h.b16 %v507
    %v575 = vunpack.c.l.b16 %v508
    %v576 = vunpack.c.l.b16 %v509
    %v577 = vunpack.c.h.b16 %v509
    %v578 = vunpack.c.l.b16 %v510
    %v579 = vunpack.c.l.b16 %v511
    %v580 = vunpack.c.h.b16 %v511
    %v581 = vunpack.c.l.b16 %v512
    %v582 = vunpack.c.l.b16 %v513
    %v583 = vunpack.c.h.b16 %v513
    %v584 = vunpack.c.l.b16 %v514
    %v585 = vunpack.c.l.b16 %v515
    %v586 = vunpack.c.h.b16 %v515
    %v587 = vunpack.c.l.b16 %v516
    %v588 = vunpack.c.l.b16 %v517
    %v589 = vunpack.c.h.b16 %v517
    %v590 = vunpack.c.l.b16 %v518
    %v591 = vunpack.c.l.b16 %v519
    %v592 = vunpack.c.h.b16 %v519
    %v593 = vunpack.c.l.b16 %v520
    %v594 = vunpack.c.l.b16 %v521
    %v595 = vunpack.c.h.b16 %v521
    %v596 = vunpack.c.l.b16 %v522
    %v597 = vunpack.c.l.b16 %v523
    %v598 = vunpack.c.h.b16 %v523
    %v599 = vunpack.c.l.b16 %v524
    %v600 = vunpack.c.l.b16 %v525
    %v601 = vunpack.c.h.b16 %v525
    %v602 = vunpack.c.l.b16 %v526
    %v603 = vunpack.c.l.b16 %v527
    %v604 = vunpack.c.h.b16 %v527
    %v605 = vunpack.c.l.b16 %v528
    %v606 = vunpack.c.l.b16 %v529
    %v607 = vunpack.c.h.b16 %v529
    %v608 = vunpack.c.l.b16 %v530
    %v609 = vunpack.c.l.b16 %v531
    %v610 = vunpack.c.h.b16 %v531
    %v611 = vunpack.c.l.b16 %v532
    %v612 = vunpack.c.l.b16 %v533
    %v613 = vunpack.c.h.b16 %v533
    %v614 = vunpack.c.l.b16 %v534
    %v615 = vpack.c.b16 %v570, %v567
    %v616 = vpack.c.b16 %v571, %v568
    %v617 = vpack.c.b16 %v572, %v569
    %v618 = vpack.c.b16 %v576, %v573
    %v619 = vpack.c.b16 %v577, %v574
    %v620 = vpack.c.b16 %v578, %v575
    %v621 = vpack.c.b16 %v582, %v579
    %v622 = vpack.c.b16 %v583, %v580
    %v623 = vpack.c.b16 %v584, %v581
    %v624 = vpack.c.b16 %v588, %v585
    %v625 = vpack.c.b16 %v589, %v586
    %v626 = vpack.c.b16 %v590, %v587
    %v627 = vpack.c.b16 %v594, %v591
    %v628 = vpack.c.b16 %v595, %v592
    %v629 = vpack.c.b16 %v596, %v593
    %v630 = vpack.c.b16 %v600, %v597
    %v631 = vpack.c.b16 %v601, %v598
    %v632 = vpack.c.b16 %v602, %v599
    %v633 = vpack.c.b16 %v606, %v603
    %v634 = vpack.c.b16 %v607, %v604
    %v635 = vpack.c.b16 %v608, %v605
    %v636 = vpack.c.b16 %v612, %v609
    %v637 = vpack.c.b16 %v613, %v610
    %v638 = vpack.c.b16 %v614, %v611
    %663 = vmatprep.subr.bf16.mxu0 %v616
    %664 = vmatpush1.bf16.msra.mxu0 %v615
    %665 = vmatprep.subr.bf16.mxu0 %v619
    %666 = vmatpush1.bf16.msra.mxu0 %v618
    %667 = vmatprep.subr.bf16.mxu0 %v622
    %668 = vmatpush1.bf16.msra.mxu0 %v621
    %669 = vmatprep.subr.bf16.mxu0 %v625
    %670 = vmatpush1.bf16.msra.mxu0 %v624
    %671 = vmatprep.subr.bf16.mxu0 %v628
    %672 = vmatpush1.bf16.msra.mxu0 %v627
    %673 = vmatprep.subr.bf16.mxu0 %v631
    %674 = vmatpush1.bf16.msra.mxu0 %v630
    %675 = vmatprep.subr.bf16.mxu0 %v634
    %676 = vmatpush1.bf16.msra.mxu0 %v633
    %677 = vmatprep.subr.bf16.mxu0 %v637
    %678 = vmatpush1.bf16.msra.mxu0 %v636
    %679 = vmatprep.subr.bf16.mxu0 0
    %680 = vmatpush1.bf16.msra.mxu0 0
    %681 = vmatprep.subr.bf16.mxu0 0
    %682 = vmatpush1.bf16.msra.mxu0 0
    %683 = vmatprep.subr.bf16.mxu0 0
    %684 = vmatpush1.bf16.msra.mxu0 0
    %685 = vmatprep.subr.bf16.mxu0 0
    %686 = vmatpush1.bf16.msra.mxu0 0
    %687 = vmatprep.subr.bf16.mxu0 0
    %688 = vmatpush1.bf16.msra.mxu0 0
    %689 = vmatprep.subr.bf16.mxu0 0
    %690 = vmatpush1.bf16.msra.mxu0 0
    %691 = vmatprep.subr.bf16.mxu0 0
    %692 = vmatpush1.bf16.msra.mxu0 0
    %693 = vmatprep.subr.bf16.mxu0 0
    %694 = vmatpush1.bf16.msra.mxu0 0
    %695 = vmatprep.mubr.bf16.mxu0 0
    %696 = vmatmul.mubr.bf16.gmra.mrb[0].mxu0 0
    %v697 = vpop.f32.mrb[0].mxu0
    %v698 = vadd.f32 0.0, %v697
    %v699 = vpop.f32.mrb[0].mxu0
    %v700 = vadd.f32 0.0, %v699
    %v701 = vpop.f32.mrb[0].mxu0
    %v702 = vpop.f32.mrb[0].mxu0
    %703 = vdwg.mxu0
    %704 = vmatprep.subr.bf16.mxu0 0
    %705 = vmatpush1.bf16.msra.mxu0 %v617
    %706 = vmatprep.subr.bf16.mxu0 0
    %707 = vmatpush1.bf16.msra.mxu0 %v620
    %708 = vmatprep.subr.bf16.mxu0 0
    %709 = vmatpush1.bf16.msra.mxu0 %v623
    %710 = vmatprep.subr.bf16.mxu0 0
    %711 = vmatpush1.bf16.msra.mxu0 %v626
    %712 = vmatprep.subr.bf16.mxu0 0
    %713 = vmatpush1.bf16.msra.mxu0 %v629
    %714 = vmatprep.subr.bf16.mxu0 0
    %715 = vmatpush1.bf16.msra.mxu0 %v632
    %716 = vmatprep.subr.bf16.mxu0 0
    %717 = vmatpush1.bf16.msra.mxu0 %v635
    %718 = vmatprep.subr.bf16.mxu0 0
    %719 = vmatpush1.bf16.msra.mxu0 %v638
    %720 = vmatprep.subr.bf16.mxu0 0
    %721 = vmatpush1.bf16.msra.mxu0 0
    %722 = vmatprep.subr.bf16.mxu0 0
    %723 = vmatpush1.bf16.msra.mxu0 0
    %724 = vmatprep.subr.bf16.mxu0 0
    %725 = vmatpush1.bf16.msra.mxu0 0
    %726 = vmatprep.subr.bf16.mxu0 0
    %727 = vmatpush1.bf16.msra.mxu0 0
    %728 = vmatprep.subr.bf16.mxu0 0
    %729 = vmatpush1.bf16.msra.mxu0 0
    %730 = vmatprep.subr.bf16.mxu0 0
    %731 = vmatpush1.bf16.msra.mxu0 0
    %732 = vmatprep.subr.bf16.mxu0 0
    %733 = vmatpush1.bf16.msra.mxu0 0
    %734 = vmatprep.subr.bf16.mxu0 0
    %735 = vmatpush1.bf16.msra.mxu0 0
    %736 = vmatprep.mubr.bf16.mxu0 0
    %737 = vmatmul.mubr.bf16.gmra.mrb[0].mxu0 0
    %v738 = vpop.f32.mrb[0].mxu0
    %v739 = vadd.f32 0.0, %v738
    %v740 = vpop.f32.mrb[0].mxu0
    %v741 = vpop.f32.mrb[0].mxu0
    %v742 = vpop.f32.mrb[0].mxu0
    %743 = vdwg.mxu0
    %v744 = vadd.f32 %v500, %v698
    %v745 = vxor.u32 %v744, 2147483648
    %v746 = vmul.f32 %v745, 1.442695
    %v747 = vpow.pop %v746
    %v748 = vadd.f32 %v747, 1.0
    %v749 = vrcp.pop %v748
    %v750 = vmul.f32 1.0, %v749
    %v751 = vadd.f32 %v501, %v700
    %v752 = vxor.u32 %v751, 2147483648
    %v753 = vmul.f32 %v752, 1.442695
    %v754 = vpow.pop %v753
    %v755 = vadd.f32 %v754, 1.0
    %v756 = vrcp.pop %v755
    %v757 = vmul.f32 1.0, %v756
    %v758 = vadd.f32 %v739, %v481
    %v759 = vmul.f32 %v750, %v758
    %v760 = vadd.f32 %v502, %v759
    %v761 = vtanh.pop %v760
    %v762 = vsub.f32 0.0, %v761
    %v763 = vmul.f32 %v757, %v762
    %v764 = vadd.f32 %v761, %v763
    %v765 = vpack.c.bf16 %v764, %v764
    %v766 = vld [vmem:[#allocation8] sm:$0xff]
    %v767 = vld [vmem:[#allocation8 + $0x8] sm:$0xf]
    %v768 = vld [vmem:[#allocation8 + $0xc] sm:$0xff]
    %v769 = vld [vmem:[#allocation8 + $0x14] sm:$0xf]
    %v770 = vld [vmem:[#allocation8 + $0x18] sm:$0xff]
    %v771 = vld [vmem:[#allocation8 + $0x20] sm:$0xf]
    %v772 = vld [vmem:[#allocation8 + $0x24] sm:$0xff]
    %v773 = vld [vmem:[#allocation8 + $0x2c] sm:$0xf]
    %v774 = vld [vmem:[#allocation8 + $0x30] sm:$0xff]
    %v775 = vld [vmem:[#allocation8 + $0x38] sm:$0xf]
    %v776 = vld [vmem:[#allocation8 + $0x3c] sm:$0xff]
    %v777 = vld [vmem:[#allocation8 + $0x44] sm:$0xf]
    %v778 = vld [vmem:[#allocation8 + $0x48] sm:$0xff]
    %v779 = vld [vmem:[#allocation8 + $0x50] sm:$0xf]
    %v780 = vld [vmem:[#allocation8 + $0x54] sm:$0xff]
    %v781 = vld [vmem:[#allocation8 + $0x5c] sm:$0xf]
    %v782 = vld [vmem:[#allocation8 + $0x60] sm:$0xff]
    %v783 = vld [vmem:[#allocation8 + $0x68] sm:$0xf]
    %v784 = vld [vmem:[#allocation8 + $0x6c] sm:$0xff]
    %v785 = vld [vmem:[#allocation8 + $0x74] sm:$0xf]
    %v786 = vld [vmem:[#allocation8 + $0x78] sm:$0xff]
    %v787 = vld [vmem:[#allocation8 + $0x80] sm:$0xf]
    %v788 = vld [vmem:[#allocation8 + $0x84] sm:$0xff]
    %v789 = vld [vmem:[#allocation8 + $0x8c] sm:$0xf]
    %v790 = vld [vmem:[#allocation8 + $0x90] sm:$0xff]
    %v791 = vld [vmem:[#allocation8 + $0x98] sm:$0xf]
    %v792 = vld [vmem:[#allocation8 + $0x9c] sm:$0xff]
    %v793 = vld [vmem:[#allocation8 + $0xa4] sm:$0xf]
    %v794 = vld [vmem:[#allocation8 + $0xa8] sm:$0xff]
    %v795 = vld [vmem:[#allocation8 + $0xb0] sm:$0xf]
    %v796 = vld [vmem:[#allocation8 + $0xb4] sm:$0xff]
    %v797 = vld [vmem:[#allocation8 + $0xbc] sm:$0xf]
    %v830 = vunpack.c.l.b16 %v766
    %v831 = vunpack.c.h.b16 %v766
    %v832 = vunpack.c.l.b16 %v767
    %v833 = vunpack.c.l.b16 %v768
    %v834 = vunpack.c.h.b16 %v768
    %v835 = vunpack.c.l.b16 %v769
    %v836 = vunpack.c.l.b16 %v770
    %v837 = vunpack.c.h.b16 %v770
    %v838 = vunpack.c.l.b16 %v771
    %v839 = vunpack.c.l.b16 %v772
    %v840 = vunpack.c.h.b16 %v772
    %v841 = vunpack.c.l.b16 %v773
    %v842 = vunpack.c.l.b16 %v774
    %v843 = vunpack.c.h.b16 %v774
    %v844 = vunpack.c.l.b16 %v775
    %v845 = vunpack.c.l.b16 %v776
    %v846 = vunpack.c.h.b16 %v776
    %v847 = vunpack.c.l.b16 %v777
    %v848 = vunpack.c.l.b16 %v778
    %v849 = vunpack.c.h.b16 %v778
    %v850 = vunpack.c.l.b16 %v779
    %v851 = vunpack.c.l.b16 %v780
    %v852 = vunpack.c.h.b16 %v780
    %v853 = vunpack.c.l.b16 %v781
    %v854 = vunpack.c.l.b16 %v782
    %v855 = vunpack.c.h.b16 %v782
    %v856 = vunpack.c.l.b16 %v783
    %v857 = vunpack.c.l.b16 %v784
    %v858 = vunpack.c.h.b16 %v784
    %v859 = vunpack.c.l.b16 %v785
    %v860 = vunpack.c.l.b16 %v786
    %v861 = vunpack.c.h.b16 %v786
    %v862 = vunpack.c.l.b16 %v787
    %v863 = vunpack.c.l.b16 %v788
    %v864 = vunpack.c.h.b16 %v788
    %v865 = vunpack.c.l.b16 %v789
    %v866 = vunpack.c.l.b16 %v790
    %v867 = vunpack.c.h.b16 %v790
    %v868 = vunpack.c.l.b16 %v791
    %v869 = vunpack.c.l.b16 %v792
    %v870 = vunpack.c.h.b16 %v792
    %v871 = vunpack.c.l.b16 %v793
    %v872 = vunpack.c.l.b16 %v794
    %v873 = vunpack.c.h.b16 %v794
    %v874 = vunpack.c.l.b16 %v795
    %v875 = vunpack.c.l.b16 %v796
    %v876 = vunpack.c.h.b16 %v796
    %v877 = vunpack.c.l.b16 %v797
    %v878 = vpack.c.b16 %v833, %v830
    %v879 = vpack.c.b16 %v834, %v831
    %v880 = vpack.c.b16 %v835, %v832
    %v881 = vpack.c.b16 %v839, %v836
    %v882 = vpack.c.b16 %v840, %v837
    %v883 = vpack.c.b16 %v841, %v838
    %v884 = vpack.c.b16 %v845, %v842
    %v885 = vpack.c.b16 %v846, %v843
    %v886 = vpack.c.b16 %v847, %v844
    %v887 = vpack.c.b16 %v851, %v848
    %v888 = vpack.c.b16 %v852, %v849
    %v889 = vpack.c.b16 %v853, %v850
    %v890 = vpack.c.b16 %v857, %v854
    %v891 = vpack.c.b16 %v858, %v855
    %v892 = vpack.c.b16 %v859, %v856
    %v893 = vpack.c.b16 %v863, %v860
    %v894 = vpack.c.b16 %v864, %v861
    %v895 = vpack.c.b16 %v865, %v862
    %v896 = vpack.c.b16 %v869, %v866
    %v897 = vpack.c.b16 %v870, %v867
    %v898 = vpack.c.b16 %v871, %v868
    %v899 = vpack.c.b16 %v875, %v872
    %v900 = vpack.c.b16 %v876, %v873
    %v901 = vpack.c.b16 %v877, %v874
    %926 = vmatprep.subr.bf16.mxu0 %v879
    %927 = vmatpush1.bf16.msra.mxu0 %v878
    %928 = vmatprep.subr.bf16.mxu0 %v882
    %929 = vmatpush1.bf16.msra.mxu0 %v881
    %930 = vmatprep.subr.bf16.mxu0 %v885
    %931 = vmatpush1.bf16.msra.mxu0 %v884
    %932 = vmatprep.subr.bf16.mxu0 %v888
    %933 = vmatpush1.bf16.msra.mxu0 %v887
    %934 = vmatprep.subr.bf16.mxu0 %v891
    %935 = vmatpush1.bf16.msra.mxu0 %v890
    %936 = vmatprep.subr.bf16.mxu0 %v894
    %937 = vmatpush1.bf16.msra.mxu0 %v893
    %938 = vmatprep.subr.bf16.mxu0 %v897
    %939 = vmatpush1.bf16.msra.mxu0 %v896
    %940 = vmatprep.subr.bf16.mxu0 %v900
    %941 = vmatpush1.bf16.msra.mxu0 %v899
    %942 = vmatprep.subr.bf16.mxu0 0
    %943 = vmatpush1.bf16.msra.mxu0 0
    %944 = vmatprep.subr.bf16.mxu0 0
    %945 = vmatpush1.bf16.msra.mxu0 0
    %946 = vmatprep.subr.bf16.mxu0 0
    %947 = vmatpush1.bf16.msra.mxu0 0
    %948 = vmatprep.subr.bf16.mxu0 0
    %949 = vmatpush1.bf16.msra.mxu0 0
    %950 = vmatprep.subr.bf16.mxu0 0
    %951 = vmatpush1.bf16.msra.mxu0 0
    %952 = vmatprep.subr.bf16.mxu0 0
    %953 = vmatpush1.bf16.msra.mxu0 0
    %954 = vmatprep.subr.bf16.mxu0 0
    %955 = vmatpush1.bf16.msra.mxu0 0
    %956 = vmatprep.subr.bf16.mxu0 0
    %957 = vmatpush1.bf16.msra.mxu0 0
    %958 = vmatprep.mubr.bf16.mxu0 0
    %959 = vmatmul.mubr.bf16.gmra.mrb[0].mxu0 %v765
    %v960 = vpop.f32.mrb[0].mxu0
    %v961 = vadd.f32 %v488, %v960
    %v962 = vpop.f32.mrb[0].mxu0
    %v963 = vadd.f32 %v492, %v962
    %v964 = vpop.f32.mrb[0].mxu0
    %v965 = vpop.f32.mrb[0].mxu0
    %966 = vdwg.mxu0
    %967 = vmatprep.subr.bf16.mxu0 0
    %968 = vmatpush1.bf16.msra.mxu0 %v880
    %969 = vmatprep.subr.bf16.mxu0 0
    %970 = vmatpush1.bf16.msra.mxu0 %v883
    %971 = vmatprep.subr.bf16.mxu0 0
    %972 = vmatpush1.bf16.msra.mxu0 %v886
    %973 = vmatprep.subr.bf16.mxu0 0
    %974 = vmatpush1.bf16.msra.mxu0 %v889
    %975 = vmatprep.subr.bf16.mxu0 0
    %976 = vmatpush1.bf16.msra.mxu0 %v892
    %977 = vmatprep.subr.bf16.mxu0 0
    %978 = vmatpush1.bf16.msra.mxu0 %v895
    %979 = vmatprep.subr.bf16.mxu0 0
    %980 = vmatpush1.bf16.msra.mxu0 %v898
    %981 = vmatprep.subr.bf16.mxu0 0
    %982 = vmatpush1.bf16.msra.mxu0 %v901
    %983 = vmatprep.subr.bf16.mxu0 0
    %984 = vmatpush1.bf16.msra.mxu0 0
    %985 = vmatprep.subr.bf16.mxu0 0
    %986 = vmatpush1.bf16.msra.mxu0 0
    %987 = vmatprep.subr.bf16.mxu0 0
    %988 = vmatpush1.bf16.msra.mxu0 0
    %989 = vmatprep.subr.bf16.mxu0 0
    %990 = vmatpush1.bf16.msra.mxu0 0
    %991 = vmatprep.subr.bf16.mxu0 0
    %992 = vmatpush1.bf16.msra.mxu0 0
    %993 = vmatprep.subr.bf16.mxu0 0
    %994 = vmatpush1.bf16.msra.mxu0 0
    %995 = vmatprep.subr.bf16.mxu0 0
    %996 = vmatpush1.bf16.msra.mxu0 0
    %997 = vmatprep.subr.bf16.mxu0 0
    %998 = vmatpush1.bf16.msra.mxu0 0
    %999 = vmatprep.mubr.bf16.mxu0 0
    %1000 = vmatmul.mubr.bf16.gmra.mrb[0].mxu0 %v765
    %v1001 = vpop.f32.mrb[0].mxu0
    %v1002 = vadd.f32 %v496, %v1001
    %v1003 = vpop.f32.mrb[0].mxu0
    %v1004 = vpop.f32.mrb[0].mxu0
    %v1005 = vpop.f32.mrb[0].mxu0
    %1006 = vdwg.mxu0
    %1007 = vst [vmem:[#allocation3] sm:$0xff] %v961
    %1008 = vst [vmem:[#allocation3 + $0x8] sm:$0xff] %v963
    %1009 = vst [vmem:[#allocation3 + $0x10] sm:$0xff] %v1002
    %s1010 = scalar_lea.vmem [#allocation2], 24
    %v1011 = vld [vmem:[%s1010] sm:$0xff]
    %v1012 = vld [vmem:[%s1010 + $0x8] sm:$0xff]
    %v1013 = vld [vmem:[%s1010 + $0x10] sm:$0xff]
    %v1014 = vld [vmem:[#allocation6] sm:$0xff]
    %v1015 = vld [vmem:[#allocation6 + $0x8] sm:$0xf]
    %v1016 = vld [vmem:[#allocation6 + $0xc] sm:$0xff]
    %v1017 = vld [vmem:[#allocation6 + $0x14] sm:$0xf]
    %v1018 = vld [vmem:[#allocation6 + $0x18] sm:$0xff]
    %v1019 = vld [vmem:[#allocation6 + $0x20] sm:$0xf]
    %v1020 = vld [vmem:[#allocation6 + $0x24] sm:$0xff]
    %v1021 = vld [vmem:[#allocation6 + $0x2c] sm:$0xf]
    %v1022 = vld [vmem:[#allocation6 + $0x30] sm:$0xff]
    %v1023 = vld [vmem:[#allocation6 + $0x38] sm:$0xf]
    %v1024 = vld [vmem:[#allocation6 + $0x3c] sm:$0xff]
    %v1025 = vld [vmem:[#allocation6 + $0x44] sm:$0xf]
    %v1026 = vld [vmem:[#allocation6 + $0x48] sm:$0xff]
    %v1027 = vld [vmem:[#allocation6 + $0x50] sm:$0xf]
    %v1028 = vld [vmem:[#allocation6 + $0x54] sm:$0xff]
    %v1029 = vld [vmem:[#allocation6 + $0x5c] sm:$0xf]
    %v1030 = vld [vmem:[#allocation6 + $0x60] sm:$0xff]
    %v1031 = vld [vmem:[#allocation6 + $0x68] sm:$0xf]
    %v1032 = vld [vmem:[#allocation6 + $0x6c] sm:$0xff]
    %v1033 = vld [vmem:[#allocation6 + $0x74] sm:$0xf]
    %v1034 = vld [vmem:[#allocation6 + $0x78] sm:$0xff]
    %v1035 = vld [vmem:[#allocation6 + $0x80] sm:$0xf]
    %v1036 = vld [vmem:[#allocation6 + $0x84] sm:$0xff]
    %v1037 = vld [vmem:[#allocation6 + $0x8c] sm:$0xf]
    %v1038 = vld [vmem:[#allocation6 + $0x90] sm:$0xff]
    %v1039 = vld [vmem:[#allocation6 + $0x98] sm:$0xf]
    %v1040 = vld [vmem:[#allocation6 + $0x9c] sm:$0xff]
    %v1041 = vld [vmem:[#allocation6 + $0xa4] sm:$0xf]
    %v1042 = vld [vmem:[#allocation6 + $0xa8] sm:$0xff]
    %v1043 = vld [vmem:[#allocation6 + $0xb0] sm:$0xf]
    %v1044 = vld [vmem:[#allocation6 + $0xb4] sm:$0xff]
    %v1045 = vld [vmem:[#allocation6 + $0xbc] sm:$0xf]
    %v1078 = vunpack.c.l.b16 %v1014
    %v1079 = vunpack.c.h.b16 %v1014
    %v1080 = vunpack.c.l.b16 %v1015
    %v1081 = vunpack.c.l.b16 %v1016
    %v1082 = vunpack.c.h.b16 %v1016
    %v1083 = vunpack.c.l.b16 %v1017
    %v1084 = vunpack.c.l.b16 %v1018
    %v1085 = vunpack.c.h.b16 %v1018
    %v1086 = vunpack.c.l.b16 %v1019
    %v1087 = vunpack.c.l.b16 %v1020
    %v1088 = vunpack.c.h.b16 %v1020
    %v1089 = vunpack.c.l.b16 %v1021
    %v1090 = vunpack.c.l.b16 %v1022
    %v1091 = vunpack.c.h.b16 %v1022
    %v1092 = vunpack.c.l.b16 %v1023
    %v1093 = vunpack.c.l.b16 %v1024
    %v1094 = vunpack.c.h.b16 %v1024
    %v1095 = vunpack.c.l.b16 %v1025
    %v1096 = vunpack.c.l.b16 %v1026
    %v1097 = vunpack.c.h.b16 %v1026
    %v1098 = vunpack.c.l.b16 %v1027
    %v1099 = vunpack.c.l.b16 %v1028
    %v1100 = vunpack.c.h.b16 %v1028
    %v1101 = vunpack.c.l.b16 %v1029
    %v1102 = vunpack.c.l.b16 %v1030
    %v1103 = vunpack.c.h.b16 %v1030
    %v1104 = vunpack.c.l.b16 %v1031
    %v1105 = vunpack.c.l.b16 %v1032
    %v1106 = vunpack.c.h.b16 %v1032
    %v1107 = vunpack.c.l.b16 %v1033
    %v1108 = vunpack.c.l.b16 %v1034
    %v1109 = vunpack.c.h.b16 %v1034
    %v1110 = vunpack.c.l.b16 %v1035
    %v1111 = vunpack.c.l.b16 %v1036
    %v1112 = vunpack.c.h.b16 %v1036
    %v1113 = vunpack.c.l.b16 %v1037
    %v1114 = vunpack.c.l.b16 %v1038
    %v1115 = vunpack.c.h.b16 %v1038
    %v1116 = vunpack.c.l.b16 %v1039
    %v1117 = vunpack.c.l.b16 %v1040
    %v1118 = vunpack.c.h.b16 %v1040
    %v1119 = vunpack.c.l.b16 %v1041
    %v1120 = vunpack.c.l.b16 %v1042
    %v1121 = vunpack.c.h.b16 %v1042
    %v1122 = vunpack.c.l.b16 %v1043
    %v1123 = vunpack.c.l.b16 %v1044
    %v1124 = vunpack.c.h.b16 %v1044
    %v1125 = vunpack.c.l.b16 %v1045
    %v1126 = vpack.c.b16 %v1081, %v1078
    %v1127 = vpack.c.b16 %v1082, %v1079
    %v1128 = vpack.c.b16 %v1083, %v1080
    %v1129 = vpack.c.b16 %v1087, %v1084
    %v1130 = vpack.c.b16 %v1088, %v1085
    %v1131 = vpack.c.b16 %v1089, %v1086
    %v1132 = vpack.c.b16 %v1093, %v1090
    %v1133 = vpack.c.b16 %v1094, %v1091
    %v1134 = vpack.c.b16 %v1095, %v1092
    %v1135 = vpack.c.b16 %v1099, %v1096
    %v1136 = vpack.c.b16 %v1100, %v1097
    %v1137 = vpack.c.b16 %v1101, %v1098
    %v1138 = vpack.c.b16 %v1105, %v1102
    %v1139 = vpack.c.b16 %v1106, %v1103
    %v1140 = vpack.c.b16 %v1107, %v1104
    %v1141 = vpack.c.b16 %v1111, %v1108
    %v1142 = vpack.c.b16 %v1112, %v1109
    %v1143 = vpack.c.b16 %v1113, %v1110
    %v1144 = vpack.c.b16 %v1117, %v1114
    %v1145 = vpack.c.b16 %v1118, %v1115
    %v1146 = vpack.c.b16 %v1119, %v1116
    %v1147 = vpack.c.b16 %v1123, %v1120
    %v1148 = vpack.c.b16 %v1124, %v1121
    %v1149 = vpack.c.b16 %v1125, %v1122
    %1174 = vmatprep.subr.bf16.mxu0 %v1127
    %1175 = vmatpush1.bf16.msra.mxu0 %v1126
    %1176 = vmatprep.subr.bf16.mxu0 %v1130
    %1177 = vmatpush1.bf16.msra.mxu0 %v1129
    %1178 = vmatprep.subr.bf16.mxu0 %v1133
    %1179 = vmatpush1.bf16.msra.mxu0 %v1132
    %1180 = vmatprep.subr.bf16.mxu0 %v1136
    %1181 = vmatpush1.bf16.msra.mxu0 %v1135
    %1182 = vmatprep.subr.bf16.mxu0 %v1139
    %1183 = vmatpush1.bf16.msra.mxu0 %v1138
    %1184 = vmatprep.subr.bf16.mxu0 %v1142
    %1185 = vmatpush1.bf16.msra.mxu0 %v1141
    %1186 = vmatprep.subr.bf16.mxu0 %v1145
    %1187 = vmatpush1.bf16.msra.mxu0 %v1144
    %1188 = vmatprep.subr.bf16.mxu0 %v1148
    %1189 = vmatpush1.bf16.msra.mxu0 %v1147
    %1190 = vmatprep.subr.bf16.mxu0 0
    %1191 = vmatpush1.bf16.msra.mxu0 0
    %1192 = vmatprep.subr.bf16.mxu0 0
    %1193 = vmatpush1.bf16.msra.mxu0 0
    %1194 = vmatprep.subr.bf16.mxu0 0
    %1195 = vmatpush1.bf16.msra.mxu0 0
    %1196 = vmatprep.subr.bf16.mxu0 0
    %1197 = vmatpush1.bf16.msra.mxu0 0
    %1198 = vmatprep.subr.bf16.mxu0 0
    %1199 = vmatpush1.bf16.msra.mxu0 0
    %1200 = vmatprep.subr.bf16.mxu0 0
    %1201 = vmatpush1.bf16.msra.mxu0 0
    %1202 = vmatprep.subr.bf16.mxu0 0
    %1203 = vmatpush1.bf16.msra.mxu0 0
    %1204 = vmatprep.subr.bf16.mxu0 0
    %1205 = vmatpush1.bf16.msra.mxu0 0
    %1206 = vmatprep.mubr.bf16.mxu0 0
    %1207 = vmatmul.mubr.bf16.gmra.mrb[0].mxu0 %v765
    %v1208 = vpop.f32.mrb[0].mxu0
    %v1209 = vadd.f32 0.0, %v1208
    %v1210 = vpop.f32.mrb[0].mxu0
    %v1211 = vadd.f32 0.0, %v1210
    %v1212 = vpop.f32.mrb[0].mxu0
    %v1213 = vpop.f32.mrb[0].mxu0
    %1214 = vdwg.mxu0
    %1215 = vmatprep.subr.bf16.mxu0 0
    %1216 = vmatpush1.bf16.msra.mxu0 %v1128
    %1217 = vmatprep.subr.bf16.mxu0 0
    %1218 = vmatpush1.bf16.msra.mxu0 %v1131
    %1219 = vmatprep.subr.bf16.mxu0 0
    %1220 = vmatpush1.bf16.msra.mxu0 %v1134
    %1221 = vmatprep.subr.bf16.mxu0 0
    %1222 = vmatpush1.bf16.msra.mxu0 %v1137
    %1223 = vmatprep.subr.bf16.mxu0 0
    %1224 = vmatpush1.bf16.msra.mxu0 %v1140
    %1225 = vmatprep.subr.bf16.mxu0 0
    %1226 = vmatpush1.bf16.msra.mxu0 %v1143
    %1227 = vmatprep.subr.bf16.mxu0 0
    %1228 = vmatpush1.bf16.msra.mxu0 %v1146
    %1229 = vmatprep.subr.bf16.mxu0 0
    %1230 = vmatpush1.bf16.msra.mxu0 %v1149
    %1231 = vmatprep.subr.bf16.mxu0 0
    %1232 = vmatpush1.bf16.msra.mxu0 0
    %1233 = vmatprep.subr.bf16.mxu0 0
    %1234 = vmatpush1.bf16.msra.mxu0 0
    %1235 = vmatprep.subr.bf16.mxu0 0
    %1236 = vmatpush1.bf16.msra.mxu0 0
    %1237 = vmatprep.subr.bf16.mxu0 0
    %1238 = vmatpush1.bf16.msra.mxu0 0
    %1239 = vmatprep.subr.bf16.mxu0 0
    %1240 = vmatpush1.bf16.msra.mxu0 0
    %1241 = vmatprep.subr.bf16.mxu0 0
    %1242 = vmatpush1.bf16.msra.mxu0 0
    %1243 = vmatprep.subr.bf16.mxu0 0
    %1244 = vmatpush1.bf16.msra.mxu0 0
    %1245 = vmatprep.subr.bf16.mxu0 0
    %1246 = vmatpush1.bf16.msra.mxu0 0
    %1247 = vmatprep.mubr.bf16.mxu0 0
    %1248 = vmatmul.mubr.bf16.gmra.mrb[0].mxu0 %v765
    %v1249 = vpop.f32.mrb[0].mxu0
    %v1250 = vadd.f32 0.0, %v1249
    %v1251 = vpop.f32.mrb[0].mxu0
    %v1252 = vpop.f32.mrb[0].mxu0
    %v1253 = vpop.f32.mrb[0].mxu0
    %1254 = vdwg.mxu0
    %v1255 = vadd.f32 %v1011, %v1209
    %v1256 = vxor.u32 %v1255, 2147483648
    %v1257 = vmul.f32 %v1256, 1.442695
    %v1258 = vpow.pop %v1257
    %v1259 = vadd.f32 %v1258, 1.0
    %v1260 = vrcp.pop %v1259
    %v1261 = vmul.f32 1.0, %v1260
    %v1262 = vadd.f32 %v1012, %v1211
    %v1263 = vxor.u32 %v1262, 2147483648
    %v1264 = vmul.f32 %v1263, 1.442695
    %v1265 = vpow.pop %v1264
    %v1266 = vadd.f32 %v1265, 1.0
    %v1267 = vrcp.pop %v1266
    %v1268 = vmul.f32 1.0, %v1267
    %v1269 = vadd.f32 %v1250, %v481
    %v1270 = vmul.f32 %v1261, %v1269
    %v1271 = vadd.f32 %v1013, %v1270
    %v1272 = vtanh.pop %v1271
    %v1273 = vsub.f32 %v764, %v1272
    %v1274 = vmul.f32 %v1268, %v1273
    %v1275 = vadd.f32 %v1272, %v1274
    %v1276 = vpack.c.bf16 %v1275, %v1275
    %v1277 = vld [vmem:[#allocation8] sm:$0xff]
    %v1278 = vld [vmem:[#allocation8 + $0x8] sm:$0xf]
    %v1279 = vld [vmem:[#allocation8 + $0xc] sm:$0xff]
    %v1280 = vld [vmem:[#allocation8 + $0x14] sm:$0xf]
    %v1281 = vld [vmem:[#allocation8 + $0x18] sm:$0xff]
    %v1282 = vld [vmem:[#allocation8 + $0x20] sm:$0xf]
    %v1283 = vld [vmem:[#allocation8 + $0x24] sm:$0xff]
    %v1284 = vld [vmem:[#allocation8 + $0x2c] sm:$0xf]
    %v1285 = vld [vmem:[#allocation8 + $0x30] sm:$0xff]
    %v1286 = vld [vmem:[#allocation8 + $0x38] sm:$0xf]
    %v1287 = vld [vmem:[#allocation8 + $0x3c] sm:$0xff]
    %v1288 = vld [vmem:[#allocation8 + $0x44] sm:$0xf]
    %v1289 = vld [vmem:[#allocation8 + $0x48] sm:$0xff]
    %v1290 = vld [vmem:[#allocation8 + $0x50] sm:$0xf]
    %v1291 = vld [vmem:[#allocation8 + $0x54] sm:$0xff]
    %v1292 = vld [vmem:[#allocation8 + $0x5c] sm:$0xf]
    %v1293 = vld [vmem:[#allocation8 + $0x60] sm:$0xff]
    %v1294 = vld [vmem:[#allocation8 + $0x68] sm:$0xf]
    %v1295 = vld [vmem:[#allocation8 + $0x6c] sm:$0xff]
    %v1296 = vld [vmem:[#allocation8 + $0x74] sm:$0xf]
    %v1297 = vld [vmem:[#allocation8 + $0x78] sm:$0xff]
    %v1298 = vld [vmem:[#allocation8 + $0x80] sm:$0xf]
    %v1299 = vld [vmem:[#allocation8 + $0x84] sm:$0xff]
    %v1300 = vld [vmem:[#allocation8 + $0x8c] sm:$0xf]
    %v1301 = vld [vmem:[#allocation8 + $0x90] sm:$0xff]
    %v1302 = vld [vmem:[#allocation8 + $0x98] sm:$0xf]
    %v1303 = vld [vmem:[#allocation8 + $0x9c] sm:$0xff]
    %v1304 = vld [vmem:[#allocation8 + $0xa4] sm:$0xf]
    %v1305 = vld [vmem:[#allocation8 + $0xa8] sm:$0xff]
    %v1306 = vld [vmem:[#allocation8 + $0xb0] sm:$0xf]
    %v1307 = vld [vmem:[#allocation8 + $0xb4] sm:$0xff]
    %v1308 = vld [vmem:[#allocation8 + $0xbc] sm:$0xf]
    %v1341 = vunpack.c.l.b16 %v1277
    %v1342 = vunpack.c.h.b16 %v1277
    %v1343 = vunpack.c.l.b16 %v1278
    %v1344 = vunpack.c.l.b16 %v1279
    %v1345 = vunpack.c.h.b16 %v1279
    %v1346 = vunpack.c.l.b16 %v1280
    %v1347 = vunpack.c.l.b16 %v1281
    %v1348 = vunpack.c.h.b16 %v1281
    %v1349 = vunpack.c.l.b16 %v1282
    %v1350 = vunpack.c.l.b16 %v1283
    %v1351 = vunpack.c.h.b16 %v1283
    %v1352 = vunpack.c.l.b16 %v1284
    %v1353 = vunpack.c.l.b16 %v1285
    %v1354 = vunpack.c.h.b16 %v1285
    %v1355 = vunpack.c.l.b16 %v1286
    %v1356 = vunpack.c.l.b16 %v1287
    %v1357 = vunpack.c.h.b16 %v1287
    %v1358 = vunpack.c.l.b16 %v1288
    %v1359 = vunpack.c.l.b16 %v1289
    %v1360 = vunpack.c.h.b16 %v1289
    %v1361 = vunpack.c.l.b16 %v1290
    %v1362 = vunpack.c.l.b16 %v1291
    %v1363 = vunpack.c.h.b16 %v1291
    %v1364 = vunpack.c.l.b16 %v1292
    %v1365 = vunpack.c.l.b16 %v1293
    %v1366 = vunpack.c.h.b16 %v1293
    %v1367 = vunpack.c.l.b16 %v1294
    %v1368 = vunpack.c.l.b16 %v1295
    %v1369 = vunpack.c.h.b16 %v1295
    %v1370 = vunpack.c.l.b16 %v1296
    %v1371 = vunpack.c.l.b16 %v1297
    %v1372 = vunpack.c.h.b16 %v1297
    %v1373 = vunpack.c.l.b16 %v1298
    %v1374 = vunpack.c.l.b16 %v1299
    %v1375 = vunpack.c.h.b16 %v1299
    %v1376 = vunpack.c.l.b16 %v1300
    %v1377 = vunpack.c.l.b16 %v1301
    %v1378 = vunpack.c.h.b16 %v1301
    %v1379 = vunpack.c.l.b16 %v1302
    %v1380 = vunpack.c.l.b16 %v1303
    %v1381 = vunpack.c.h.b16 %v1303
    %v1382 = vunpack.c.l.b16 %v1304
    %v1383 = vunpack.c.l.b16 %v1305
    %v1384 = vunpack.c.h.b16 %v1305
    %v1385 = vunpack.c.l.b16 %v1306
    %v1386 = vunpack.c.l.b16 %v1307
    %v1387 = vunpack.c.h.b16 %v1307
    %v1388 = vunpack.c.l.b16 %v1308
    %v1389 = vpack.c.b16 %v1344, %v1341
    %v1390 = vpack.c.b16 %v1345, %v1342
    %v1391 = vpack.c.b16 %v1346, %v1343
    %v1392 = vpack.c.b16 %v1350, %v1347
    %v1393 = vpack.c.b16 %v1351, %v1348
    %v1394 = vpack.c.b16 %v1352, %v1349
    %v1395 = vpack.c.b16 %v1356, %v1353
    %v1396 = vpack.c.b16 %v1357, %v1354
    %v1397 = vpack.c.b16 %v1358, %v1355
    %v1398 = vpack.c.b16 %v1362, %v1359
    %v1399 = vpack.c.b16 %v1363, %v1360
    %v1400 = vpack.c.b16 %v1364, %v1361
    %v1401 = vpack.c.b16 %v1368, %v1365
    %v1402 = vpack.c.b16 %v1369, %v1366
    %v1403 = vpack.c.b16 %v1370, %v1367
    %v1404 = vpack.c.b16 %v1374, %v1371
    %v1405 = vpack.c.b16 %v1375, %v1372
    %v1406 = vpack.c.b16 %v1376, %v1373
    %v1407 = vpack.c.b16 %v1380, %v1377
    %v1408 = vpack.c.b16 %v1381, %v1378
    %v1409 = vpack.c.b16 %v1382, %v1379
    %v1410 = vpack.c.b16 %v1386, %v1383
    %v1411 = vpack.c.b16 %v1387, %v1384
    %v1412 = vpack.c.b16 %v1388, %v1385
    %1437 = vmatprep.subr.bf16.mxu0 %v1390
    %1438 = vmatpush1.bf16.msra.mxu0 %v1389
    %1439 = vmatprep.subr.bf16.mxu0 %v1393
    %1440 = vmatpush1.bf16.msra.mxu0 %v1392
    %1441 = vmatprep.subr.bf16.mxu0 %v1396
    %1442 = vmatpush1.bf16.msra.mxu0 %v1395
    %1443 = vmatprep.subr.bf16.mxu0 %v1399
    %1444 = vmatpush1.bf16.msra.mxu0 %v1398
    %1445 = vmatprep.subr.bf16.mxu0 %v1402
    %1446 = vmatpush1.bf16.msra.mxu0 %v1401
    %1447 = vmatprep.subr.bf16.mxu0 %v1405
    %1448 = vmatpush1.bf16.msra.mxu0 %v1404
    %1449 = vmatprep.subr.bf16.mxu0 %v1408
    %1450 = vmatpush1.bf16.msra.mxu0 %v1407
    %1451 = vmatprep.subr.bf16.mxu0 %v1411
    %1452 = vmatpush1.bf16.msra.mxu0 %v1410
    %1453 = vmatprep.subr.bf16.mxu0 0
    %1454 = vmatpush1.bf16.msra.mxu0 0
    %1455 = vmatprep.subr.bf16.mxu0 0
    %1456 = vmatpush1.bf16.msra.mxu0 0
    %1457 = vmatprep.subr.bf16.mxu0 0
    %1458 = vmatpush1.bf16.msra.mxu0 0
    %1459 = vmatprep.subr.bf16.mxu0 0
    %1460 = vmatpush1.bf16.msra.mxu0 0
    %1461 = vmatprep.subr.bf16.mxu0 0
    %1462 = vmatpush1.bf16.msra.mxu0 0
    %1463 = vmatprep.subr.bf16.mxu0 0
    %1464 = vmatpush1.bf16.msra.mxu0 0
    %1465 = vmatprep.subr.bf16.mxu0 0
    %1466 = vmatpush1.bf16.msra.mxu0 0
    %1467 = vmatprep.subr.bf16.mxu0 0
    %1468 = vmatpush1.bf16.msra.mxu0 0
    %1469 = vmatprep.mubr.bf16.mxu0 0
    %1470 = vmatmul.mubr.bf16.gmra.mrb[0].mxu0 %v1276
    %v1471 = vpop.f32.mrb[0].mxu0
    %v1472 = vadd.f32 %v488, %v1471
    %v1473 = vpop.f32.mrb[0].mxu0
    %v1474 = vadd.f32 %v492, %v1473
    %v1475 = vpop.f32.mrb[0].mxu0
    %v1476 = vpop.f32.mrb[0].mxu0
    %1477 = vdwg.mxu0
    %1478 = vmatprep.subr.bf16.mxu0 0
    %1479 = vmatpush1.bf16.msra.mxu0 %v1391
    %1480 = vmatprep.subr.bf16.mxu0 0
    %1481 = vmatpush1.bf16.msra.mxu0 %v1394
    %1482 = vmatprep.subr.bf16.mxu0 0
    %1483 = vmatpush1.bf16.msra.mxu0 %v1397
    %1484 = vmatprep.subr.bf16.mxu0 0
    %1485 = vmatpush1.bf16.msra.mxu0 %v1400
    %1486 = vmatprep.subr.bf16.mxu0 0
    %1487 = vmatpush1.bf16.msra.mxu0 %v1403
    %1488 = vmatprep.subr.bf16.mxu0 0
    %1489 = vmatpush1.bf16.msra.mxu0 %v1406
    %1490 = vmatprep.subr.bf16.mxu0 0
    %1491 = vmatpush1.bf16.msra.mxu0 %v1409
    %1492 = vmatprep.subr.bf16.mxu0 0
    %1493 = vmatpush1.bf16.msra.mxu0 %v1412
    %1494 = vmatprep.subr.bf16.mxu0 0
    %1495 = vmatpush1.bf16.msra.mxu0 0
    %1496 = vmatprep.subr.bf16.mxu0 0
    %1497 = vmatpush1.bf16.msra.mxu0 0
    %1498 = vmatprep.subr.bf16.mxu0 0
    %1499 = vmatpush1.bf16.msra.mxu0 0
    %1500 = vmatprep.subr.bf16.mxu0 0
    %1501 = vmatpush1.bf16.msra.mxu0 0
    %1502 = vmatprep.subr.bf16.mxu0 0
    %1503 = vmatpush1.bf16.msra.mxu0 0
    %1504 = vmatprep.subr.bf16.mxu0 0
    %1505 = vmatpush1.bf16.msra.mxu0 0
    %1506 = vmatprep.subr.bf16.mxu0 0
    %1507 = vmatpush1.bf16.msra.mxu0 0
    %1508 = vmatprep.subr.bf16.mxu0 0
    %1509 = vmatpush1.bf16.msra.mxu0 0
    %1510 = vmatprep.mubr.bf16.mxu0 0
    %1511 = vmatmul.mubr.bf16.gmra.mrb[0].mxu0 %v1276
    %v1512 = vpop.f32.mrb[0].mxu0
    %v1513 = vadd.f32 %v496, %v1512
    %v1514 = vpop.f32.mrb[0].mxu0
    %v1515 = vpop.f32.mrb[0].mxu0
    %v1516 = vpop.f32.mrb[0].mxu0
    %1517 = vdwg.mxu0
    %s1518 = scalar_lea.vmem [#allocation3], 24
    %1519 = vst [vmem:[%s1518] sm:$0xff] %v1472
    %1520 = vst [vmem:[%s1518 + $0x8] sm:$0xff] %v1474
    %1521 = vst [vmem:[%s1518 + $0x10] sm:$0xff] %v1513
    %s1522 = scalar_lea.vmem [#allocation2], 48
    %v1523 = vld [vmem:[%s1522] sm:$0xff]
    %v1524 = vld [vmem:[%s1522 + $0x8] sm:$0xff]
    %v1525 = vld [vmem:[%s1522 + $0x10] sm:$0xff]
    %v1526 = vld [vmem:[#allocation6] sm:$0xff]
    %v1527 = vld [vmem:[#allocation6 + $0x8] sm:$0xf]
    %v1528 = vld [vmem:[#allocation6 + $0xc] sm:$0xff]
    %v1529 = vld [vmem:[#allocation6 + $0x14] sm:$0xf]
    %v1530 = vld [vmem:[#allocation6 + $0x18] sm:$0xff]
    %v1531 = vld [vmem:[#allocation6 + $0x20] sm:$0xf]
    %v1532 = vld [vmem:[#allocation6 + $0x24] sm:$0xff]
    %v1533 = vld [vmem:[#allocation6 + $0x2c] sm:$0xf]
    %v1534 = vld [vmem:[#allocation6 + $0x30] sm:$0xff]
    %v1535 = vld [vmem:[#allocation6 + $0x38] sm:$0xf]
    %v1536 = vld [vmem:[#allocation6 + $0x3c] sm:$0xff]
    %v1537 = vld [vmem:[#allocation6 + $0x44] sm:$0xf]
    %v1538 = vld [vmem:[#allocation6 + $0x48] sm:$0xff]
    %v1539 = vld [vmem:[#allocation6 + $0x50] sm:$0xf]
    %v1540 = vld [vmem:[#allocation6 + $0x54] sm:$0xff]
    %v1541 = vld [vmem:[#allocation6 + $0x5c] sm:$0xf]
    %v1542 = vld [vmem:[#allocation6 + $0x60] sm:$0xff]
    %v1543 = vld [vmem:[#allocation6 + $0x68] sm:$0xf]
    %v1544 = vld [vmem:[#allocation6 + $0x6c] sm:$0xff]
    %v1545 = vld [vmem:[#allocation6 + $0x74] sm:$0xf]
    %v1546 = vld [vmem:[#allocation6 + $0x78] sm:$0xff]
    %v1547 = vld [vmem:[#allocation6 + $0x80] sm:$0xf]
    %v1548 = vld [vmem:[#allocation6 + $0x84] sm:$0xff]
    %v1549 = vld [vmem:[#allocation6 + $0x8c] sm:$0xf]
    %v1550 = vld [vmem:[#allocation6 + $0x90] sm:$0xff]
    %v1551 = vld [vmem:[#allocation6 + $0x98] sm:$0xf]
    %v1552 = vld [vmem:[#allocation6 + $0x9c] sm:$0xff]
    %v1553 = vld [vmem:[#allocation6 + $0xa4] sm:$0xf]
    %v1554 = vld [vmem:[#allocation6 + $0xa8] sm:$0xff]
    %v1555 = vld [vmem:[#allocation6 + $0xb0] sm:$0xf]
    %v1556 = vld [vmem:[#allocation6 + $0xb4] sm:$0xff]
    %v1557 = vld [vmem:[#allocation6 + $0xbc] sm:$0xf]
    %v1590 = vunpack.c.l.b16 %v1526
    %v1591 = vunpack.c.h.b16 %v1526
    %v1592 = vunpack.c.l.b16 %v1527
    %v1593 = vunpack.c.l.b16 %v1528
    %v1594 = vunpack.c.h.b16 %v1528
    %v1595 = vunpack.c.l.b16 %v1529
    %v1596 = vunpack.c.l.b16 %v1530
    %v1597 = vunpack.c.h.b16 %v1530
    %v1598 = vunpack.c.l.b16 %v1531
    %v1599 = vunpack.c.l.b16 %v1532
    %v1600 = vunpack.c.h.b16 %v1532
    %v1601 = vunpack.c.l.b16 %v1533
    %v1602 = vunpack.c.l.b16 %v1534
    %v1603 = vunpack.c.h.b16 %v1534
    %v1604 = vunpack.c.l.b16 %v1535
    %v1605 = vunpack.c.l.b16 %v1536
    %v1606 = vunpack.c.h.b16 %v1536
    %v1607 = vunpack.c.l.b16 %v1537
    %v1608 = vunpack.c.l.b16 %v1538
    %v1609 = vunpack.c.h.b16 %v1538
    %v1610 = vunpack.c.l.b16 %v1539
    %v1611 = vunpack.c.l.b16 %v1540
    %v1612 = vunpack.c.h.b16 %v1540
    %v1613 = vunpack.c.l.b16 %v1541
    %v1614 = vunpack.c.l.b16 %v1542
    %v1615 = vunpack.c.h.b16 %v1542
    %v1616 = vunpack.c.l.b16 %v1543
    %v1617 = vunpack.c.l.b16 %v1544
    %v1618 = vunpack.c.h.b16 %v1544
    %v1619 = vunpack.c.l.b16 %v1545
    %v1620 = vunpack.c.l.b16 %v1546
    %v1621 = vunpack.c.h.b16 %v1546
    %v1622 = vunpack.c.l.b16 %v1547
    %v1623 = vunpack.c.l.b16 %v1548
    %v1624 = vunpack.c.h.b16 %v1548
    %v1625 = vunpack.c.l.b16 %v1549
    %v1626 = vunpack.c.l.b16 %v1550
    %v1627 = vunpack.c.h.b16 %v1550
    %v1628 = vunpack.c.l.b16 %v1551
    %v1629 = vunpack.c.l.b16 %v1552
    %v1630 = vunpack.c.h.b16 %v1552
    %v1631 = vunpack.c.l.b16 %v1553
    %v1632 = vunpack.c.l.b16 %v1554
    %v1633 = vunpack.c.h.b16 %v1554
    %v1634 = vunpack.c.l.b16 %v1555
    %v1635 = vunpack.c.l.b16 %v1556
    %v1636 = vunpack.c.h.b16 %v1556
    %v1637 = vunpack.c.l.b16 %v1557
    %v1638 = vpack.c.b16 %v1593, %v1590
    %v1639 = vpack.c.b16 %v1594, %v1591
    %v1640 = vpack.c.b16 %v1595, %v1592
    %v1641 = vpack.c.b16 %v1599, %v1596
    %v1642 = vpack.c.b16 %v1600, %v1597
    %v1643 = vpack.c.b16 %v1601, %v1598
    %v1644 = vpack.c.b16 %v1605, %v1602
    %v1645 = vpack.c.b16 %v1606, %v1603
    %v1646 = vpack.c.b16 %v1607, %v1604
    %v1647 = vpack.c.b16 %v1611, %v1608
    %v1648 = vpack.c.b16 %v1612, %v1609
    %v1649 = vpack.c.b16 %v1613, %v1610
    %v1650 = vpack.c.b16 %v1617, %v1614
    %v1651 = vpack.c.b16 %v1618, %v1615
    %v1652 = vpack.c.b16 %v1619, %v1616
    %v1653 = vpack.c.b16 %v1623, %v1620
    %v1654 = vpack.c.b16 %v1624, %v1621
    %v1655 = vpack.c.b16 %v1625, %v1622
    %v1656 = vpack.c.b16 %v1629, %v1626
    %v1657 = vpack.c.b16 %v1630, %v1627
    %v1658 = vpack.c.b16 %v1631, %v1628
    %v1659 = vpack.c.b16 %v1635, %v1632
    %v1660 = vpack.c.b16 %v1636, %v1633
    %v1661 = vpack.c.b16 %v1637, %v1634
    %1686 = vmatprep.subr.bf16.mxu0 %v1639
    %1687 = vmatpush1.bf16.msra.mxu0 %v1638
    %1688 = vmatprep.subr.bf16.mxu0 %v1642
    %1689 = vmatpush1.bf16.msra.mxu0 %v1641
    %1690 = vmatprep.subr.bf16.mxu0 %v1645
    %1691 = vmatpush1.bf16.msra.mxu0 %v1644
    %1692 = vmatprep.subr.bf16.mxu0 %v1648
    %1693 = vmatpush1.bf16.msra.mxu0 %v1647
    %1694 = vmatprep.subr.bf16.mxu0 %v1651
    %1695 = vmatpush1.bf16.msra.mxu0 %v1650
    %1696 = vmatprep.subr.bf16.mxu0 %v1654
    %1697 = vmatpush1.bf16.msra.mxu0 %v1653
    %1698 = vmatprep.subr.bf16.mxu0 %v1657
    %1699 = vmatpush1.bf16.msra.mxu0 %v1656
    %1700 = vmatprep.subr.bf16.mxu0 %v1660
    %1701 = vmatpush1.bf16.msra.mxu0 %v1659
    %1702 = vmatprep.subr.bf16.mxu0 0
    %1703 = vmatpush1.bf16.msra.mxu0 0
    %1704 = vmatprep.subr.bf16.mxu0 0
    %1705 = vmatpush1.bf16.msra.mxu0 0
    %1706 = vmatprep.subr.bf16.mxu0 0
    %1707 = vmatpush1.bf16.msra.mxu0 0
    %1708 = vmatprep.subr.bf16.mxu0 0
    %1709 = vmatpush1.bf16.msra.mxu0 0
    %1710 = vmatprep.subr.bf16.mxu0 0
    %1711 = vmatpush1.bf16.msra.mxu0 0
    %1712 = vmatprep.subr.bf16.mxu0 0
    %1713 = vmatpush1.bf16.msra.mxu0 0
    %1714 = vmatprep.subr.bf16.mxu0 0
    %1715 = vmatpush1.bf16.msra.mxu0 0
    %1716 = vmatprep.subr.bf16.mxu0 0
    %1717 = vmatpush1.bf16.msra.mxu0 0
    %1718 = vmatprep.mubr.bf16.mxu0 0
    %1719 = vmatmul.mubr.bf16.gmra.mrb[0].mxu0 %v1276
    %v1720 = vpop.f32.mrb[0].mxu0
    %v1721 = vadd.f32 0.0, %v1720
    %v1722 = vpop.f32.mrb[0].mxu0
    %v1723 = vadd.f32 0.0, %v1722
    %v1724 = vpop.f32.mrb[0].mxu0
    %v1725 = vpop.f32.mrb[0].mxu0
    %1726 = vdwg.mxu0
    %1727 = vmatprep.subr.bf16.mxu0 0
    %1728 = vmatpush1.bf16.msra.mxu0 %v1640
    %1729 = vmatprep.subr.bf16.mxu0 0
    %1730 = vmatpush1.bf16.msra.mxu0 %v1643
    %1731 = vmatprep.subr.bf16.mxu0 0
    %1732 = vmatpush1.bf16.msra.mxu0 %v1646
    %1733 = vmatprep.subr.bf16.mxu0 0
    %1734 = vmatpush1.bf16.msra.mxu0 %v1649
    %1735 = vmatprep.subr.bf16.mxu0 0
    %1736 = vmatpush1.bf16.msra.mxu0 %v1652
    %1737 = vmatprep.subr.bf16.mxu0 0
    %1738 = vmatpush1.bf16.msra.mxu0 %v1655
    %1739 = vmatprep.subr.bf16.mxu0 0
    %1740 = vmatpush1.bf16.msra.mxu0 %v1658
    %1741 = vmatprep.subr.bf16.mxu0 0
    %1742 = vmatpush1.bf16.msra.mxu0 %v1661
    %1743 = vmatprep.subr.bf16.mxu0 0
    %1744 = vmatpush1.bf16.msra.mxu0 0
    %1745 = vmatprep.subr.bf16.mxu0 0
    %1746 = vmatpush1.bf16.msra.mxu0 0
    %1747 = vmatprep.subr.bf16.mxu0 0
    %1748 = vmatpush1.bf16.msra.mxu0 0
    %1749 = vmatprep.subr.bf16.mxu0 0
    %1750 = vmatpush1.bf16.msra.mxu0 0
    %1751 = vmatprep.subr.bf16.mxu0 0
    %1752 = vmatpush1.bf16.msra.mxu0 0
    %1753 = vmatprep.subr.bf16.mxu0 0
    %1754 = vmatpush1.bf16.msra.mxu0 0
    %1755 = vmatprep.subr.bf16.mxu0 0
    %1756 = vmatpush1.bf16.msra.mxu0 0
    %1757 = vmatprep.subr.bf16.mxu0 0
    %1758 = vmatpush1.bf16.msra.mxu0 0
    %1759 = vmatprep.mubr.bf16.mxu0 0
    %1760 = vmatmul.mubr.bf16.gmra.mrb[0].mxu0 %v1276
    %v1761 = vpop.f32.mrb[0].mxu0
    %v1762 = vadd.f32 0.0, %v1761
    %v1763 = vpop.f32.mrb[0].mxu0
    %v1764 = vpop.f32.mrb[0].mxu0
    %v1765 = vpop.f32.mrb[0].mxu0
    %1766 = vdwg.mxu0
    %v1767 = vadd.f32 %v1523, %v1721
    %v1768 = vxor.u32 %v1767, 2147483648
    %v1769 = vmul.f32 %v1768, 1.442695
    %v1770 = vpow.pop %v1769
    %v1771 = vadd.f32 %v1770, 1.0
    %v1772 = vrcp.pop %v1771
    %v1773 = vmul.f32 1.0, %v1772
    %v1774 = vadd.f32 %v1524, %v1723
    %v1775 = vxor.u32 %v1774, 2147483648
    %v1776 = vmul.f32 %v1775, 1.442695
    %v1777 = vpow.pop %v1776
    %v1778 = vadd.f32 %v1777, 1.0
    %v1779 = vrcp.pop %v1778
    %v1780 = vmul.f32 1.0, %v1779
    %v1781 = vadd.f32 %v1762, %v481
    %v1782 = vmul.f32 %v1773, %v1781
    %v1783 = vadd.f32 %v1525, %v1782
    %v1784 = vtanh.pop %v1783
    %v1785 = vsub.f32 %v1275, %v1784
    %v1786 = vmul.f32 %v1780, %v1785
    %v1787 = vadd.f32 %v1784, %v1786
    %v1788 = vpack.c.bf16 %v1787, %v1787
    %v1789 = vld [vmem:[#allocation8] sm:$0xff]
    %v1790 = vld [vmem:[#allocation8 + $0x8] sm:$0xf]
    %v1791 = vld [vmem:[#allocation8 + $0xc] sm:$0xff]
    %v1792 = vld [vmem:[#allocation8 + $0x14] sm:$0xf]
    %v1793 = vld [vmem:[#allocation8 + $0x18] sm:$0xff]
    %v1794 = vld [vmem:[#allocation8 + $0x20] sm:$0xf]
    %v1795 = vld [vmem:[#allocation8 + $0x24] sm:$0xff]
    %v1796 = vld [vmem:[#allocation8 + $0x2c] sm:$0xf]
    %v1797 = vld [vmem:[#allocation8 + $0x30] sm:$0xff]
    %v1798 = vld [vmem:[#allocation8 + $0x38] sm:$0xf]
    %v1799 = vld [vmem:[#allocation8 + $0x3c] sm:$0xff]
    %v1800 = vld [vmem:[#allocation8 + $0x44] sm:$0xf]
    %v1801 = vld [vmem:[#allocation8 + $0x48] sm:$0xff]
    %v1802 = vld [vmem:[#allocation8 + $0x50] sm:$0xf]
    %v1803 = vld [vmem:[#allocation8 + $0x54] sm:$0xff]
    %v1804 = vld [vmem:[#allocation8 + $0x5c] sm:$0xf]
    %v1805 = vld [vmem:[#allocation8 + $0x60] sm:$0xff]
    %v1806 = vld [vmem:[#allocation8 + $0x68] sm:$0xf]
    %v1807 = vld [vmem:[#allocation8 + $0x6c] sm:$0xff]
    %v1808 = vld [vmem:[#allocation8 + $0x74] sm:$0xf]
    %v1809 = vld [vmem:[#allocation8 + $0x78] sm:$0xff]
    %v1810 = vld [vmem:[#allocation8 + $0x80] sm:$0xf]
    %v1811 = vld [vmem:[#allocation8 + $0x84] sm:$0xff]
    %v1812 = vld [vmem:[#allocation8 + $0x8c] sm:$0xf]
    %v1813 = vld [vmem:[#allocation8 + $0x90] sm:$0xff]
    %v1814 = vld [vmem:[#allocation8 + $0x98] sm:$0xf]
    %v1815 = vld [vmem:[#allocation8 + $0x9c] sm:$0xff]
    %v1816 = vld [vmem:[#allocation8 + $0xa4] sm:$0xf]
    %v1817 = vld [vmem:[#allocation8 + $0xa8] sm:$0xff]
    %v1818 = vld [vmem:[#allocation8 + $0xb0] sm:$0xf]
    %v1819 = vld [vmem:[#allocation8 + $0xb4] sm:$0xff]
    %v1820 = vld [vmem:[#allocation8 + $0xbc] sm:$0xf]
    %v1853 = vunpack.c.l.b16 %v1789
    %v1854 = vunpack.c.h.b16 %v1789
    %v1855 = vunpack.c.l.b16 %v1790
    %v1856 = vunpack.c.l.b16 %v1791
    %v1857 = vunpack.c.h.b16 %v1791
    %v1858 = vunpack.c.l.b16 %v1792
    %v1859 = vunpack.c.l.b16 %v1793
    %v1860 = vunpack.c.h.b16 %v1793
    %v1861 = vunpack.c.l.b16 %v1794
    %v1862 = vunpack.c.l.b16 %v1795
    %v1863 = vunpack.c.h.b16 %v1795
    %v1864 = vunpack.c.l.b16 %v1796
    %v1865 = vunpack.c.l.b16 %v1797
    %v1866 = vunpack.c.h.b16 %v1797
    %v1867 = vunpack.c.l.b16 %v1798
    %v1868 = vunpack.c.l.b16 %v1799
    %v1869 = vunpack.c.h.b16 %v1799
    %v1870 = vunpack.c.l.b16 %v1800
    %v1871 = vunpack.c.l.b16 %v1801
    %v1872 = vunpack.c.h.b16 %v1801
    %v1873 = vunpack.c.l.b16 %v1802
    %v1874 = vunpack.c.l.b16 %v1803
    %v1875 = vunpack.c.h.b16 %v1803
    %v1876 = vunpack.c.l.b16 %v1804
    %v1877 = vunpack.c.l.b16 %v1805
    %v1878 = vunpack.c.h.b16 %v1805
    %v1879 = vunpack.c.l.b16 %v1806
    %v1880 = vunpack.c.l.b16 %v1807
    %v1881 = vunpack.c.h.b16 %v1807
    %v1882 = vunpack.c.l.b16 %v1808
    %v1883 = vunpack.c.l.b16 %v1809
    %v1884 = vunpack.c.h.b16 %v1809
    %v1885 = vunpack.c.l.b16 %v1810
    %v1886 = vunpack.c.l.b16 %v1811
    %v1887 = vunpack.c.h.b16 %v1811
    %v1888 = vunpack.c.l.b16 %v1812
    %v1889 = vunpack.c.l.b16 %v1813
    %v1890 = vunpack.c.h.b16 %v1813
    %v1891 = vunpack.c.l.b16 %v1814
    %v1892 = vunpack.c.l.b16 %v1815
    %v1893 = vunpack.c.h.b16 %v1815
    %v1894 = vunpack.c.l.b16 %v1816
    %v1895 = vunpack.c.l.b16 %v1817
    %v1896 = vunpack.c.h.b16 %v1817
    %v1897 = vunpack.c.l.b16 %v1818
    %v1898 = vunpack.c.l.b16 %v1819
    %v1899 = vunpack.c.h.b16 %v1819
    %v1900 = vunpack.c.l.b16 %v1820
    %v1901 = vpack.c.b16 %v1856, %v1853
    %v1902 = vpack.c.b16 %v1857, %v1854
    %v1903 = vpack.c.b16 %v1858, %v1855
    %v1904 = vpack.c.b16 %v1862, %v1859
    %v1905 = vpack.c.b16 %v1863, %v1860
    %v1906 = vpack.c.b16 %v1864, %v1861
    %v1907 = vpack.c.b16 %v1868, %v1865
    %v1908 = vpack.c.b16 %v1869, %v1866
    %v1909 = vpack.c.b16 %v1870, %v1867
    %v1910 = vpack.c.b16 %v1874, %v1871
    %v1911 = vpack.c.b16 %v1875, %v1872
    %v1912 = vpack.c.b16 %v1876, %v1873
    %v1913 = vpack.c.b16 %v1880, %v1877
    %v1914 = vpack.c.b16 %v1881, %v1878
    %v1915 = vpack.c.b16 %v1882, %v1879
    %v1916 = vpack.c.b16 %v1886, %v1883
    %v1917 = vpack.c.b16 %v1887, %v1884
    %v1918 = vpack.c.b16 %v1888, %v1885
    %v1919 = vpack.c.b16 %v1892, %v1889
    %v1920 = vpack.c.b16 %v1893, %v1890
    %v1921 = vpack.c.b16 %v1894, %v1891
    %v1922 = vpack.c.b16 %v1898, %v1895
    %v1923 = vpack.c.b16 %v1899, %v1896
    %v1924 = vpack.c.b16 %v1900, %v1897
    %1949 = vmatprep.subr.bf16.mxu0 %v1902
    %1950 = vmatpush1.bf16.msra.mxu0 %v1901
    %1951 = vmatprep.subr.bf16.mxu0 %v1905
    %1952 = vmatpush1.bf16.msra.mxu0 %v1904
    %1953 = vmatprep.subr.bf16.mxu0 %v1908
    %1954 = vmatpush1.bf16.msra.mxu0 %v1907
    %1955 = vmatprep.subr.bf16.mxu0 %v1911
    %1956 = vmatpush1.bf16.msra.mxu0 %v1910
    %1957 = vmatprep.subr.bf16.mxu0 %v1914
    %1958 = vmatpush1.bf16.msra.mxu0 %v1913
    %1959 = vmatprep.subr.bf16.mxu0 %v1917
    %1960 = vmatpush1.bf16.msra.mxu0 %v1916
    %1961 = vmatprep.subr.bf16.mxu0 %v1920
    %1962 = vmatpush1.bf16.msra.mxu0 %v1919
    %1963 = vmatprep.subr.bf16.mxu0 %v1923
    %1964 = vmatpush1.bf16.msra.mxu0 %v1922
    %1965 = vmatprep.subr.bf16.mxu0 0
    %1966 = vmatpush1.bf16.msra.mxu0 0
    %1967 = vmatprep.subr.bf16.mxu0 0
    %1968 = vmatpush1.bf16.msra.mxu0 0
    %1969 = vmatprep.subr.bf16.mxu0 0
    %1970 = vmatpush1.bf16.msra.mxu0 0
    %1971 = vmatprep.subr.bf16.mxu0 0
    %1972 = vmatpush1.bf16.msra.mxu0 0
    %1973 = vmatprep.subr.bf16.mxu0 0
    %1974 = vmatpush1.bf16.msra.mxu0 0
    %1975 = vmatprep.subr.bf16.mxu0 0
    %1976 = vmatpush1.bf16.msra.mxu0 0
    %1977 = vmatprep.subr.bf16.mxu0 0
    %1978 = vmatpush1.bf16.msra.mxu0 0
    %1979 = vmatprep.subr.bf16.mxu0 0
    %1980 = vmatpush1.bf16.msra.mxu0 0
    %1981 = vmatprep.mubr.bf16.mxu0 0
    %1982 = vmatmul.mubr.bf16.gmra.mrb[0].mxu0 %v1788
    %v1983 = vpop.f32.mrb[0].mxu0
    %v1984 = vadd.f32 %v488, %v1983
    %v1985 = vpop.f32.mrb[0].mxu0
    %v1986 = vadd.f32 %v492, %v1985
    %v1987 = vpop.f32.mrb[0].mxu0
    %v1988 = vpop.f32.mrb[0].mxu0
    %1989 = vdwg.mxu0
    %1990 = vmatprep.subr.bf16.mxu0 0
    %1991 = vmatpush1.bf16.msra.mxu0 %v1903
    %1992 = vmatprep.subr.bf16.mxu0 0
    %1993 = vmatpush1.bf16.msra.mxu0 %v1906
    %1994 = vmatprep.subr.bf16.mxu0 0
    %1995 = vmatpush1.bf16.msra.mxu0 %v1909
    %1996 = vmatprep.subr.bf16.mxu0 0
    %1997 = vmatpush1.bf16.msra.mxu0 %v1912
    %1998 = vmatprep.subr.bf16.mxu0 0
    %1999 = vmatpush1.bf16.msra.mxu0 %v1915
    %2000 = vmatprep.subr.bf16.mxu0 0
    %2001 = vmatpush1.bf16.msra.mxu0 %v1918
    %2002 = vmatprep.subr.bf16.mxu0 0
    %2003 = vmatpush1.bf16.msra.mxu0 %v1921
    %2004 = vmatprep.subr.bf16.mxu0 0
    %2005 = vmatpush1.bf16.msra.mxu0 %v1924
    %2006 = vmatprep.subr.bf16.mxu0 0
    %2007 = vmatpush1.bf16.msra.mxu0 0
    %2008 = vmatprep.subr.bf16.mxu0 0
    %2009 = vmatpush1.bf16.msra.mxu0 0
    %2010 = vmatprep.subr.bf16.mxu0 0
    %2011 = vmatpush1.bf16.msra.mxu0 0
    %2012 = vmatprep.subr.bf16.mxu0 0
    %2013 = vmatpush1.bf16.msra.mxu0 0
    %2014 = vmatprep.subr.bf16.mxu0 0
    %2015 = vmatpush1.bf16.msra.mxu0 0
    %2016 = vmatprep.subr.bf16.mxu0 0
    %2017 = vmatpush1.bf16.msra.mxu0 0
    %2018 = vmatprep.subr.bf16.mxu0 0
    %2019 = vmatpush1.bf16.msra.mxu0 0
    %2020 = vmatprep.subr.bf16.mxu0 0
    %2021 = vmatpush1.bf16.msra.mxu0 0
    %2022 = vmatprep.mubr.bf16.mxu0 0
    %2023 = vmatmul.mubr.bf16.gmra.mrb[0].mxu0 %v1788
    %v2024 = vpop.f32.mrb[0].mxu0
    %v2025 = vadd.f32 %v496, %v2024
    %v2026 = vpop.f32.mrb[0].mxu0
    %v2027 = vpop.f32.mrb[0].mxu0
    %v2028 = vpop.f32.mrb[0].mxu0
    %2029 = vdwg.mxu0
    %s2030 = scalar_lea.vmem [#allocation3], 48
    %2031 = vst [vmem:[%s2030] sm:$0xff] %v1984
    %2032 = vst [vmem:[%s2030 + $0x8] sm:$0xff] %v1986
    %2033 = vst [vmem:[%s2030 + $0x10] sm:$0xff] %v2025
    %s2034 = scalar_lea.vmem [#allocation2], 72
    %v2035 = vld [vmem:[%s2034] sm:$0xff]
    %v2036 = vld [vmem:[%s2034 + $0x8] sm:$0xff]
    %v2037 = vld [vmem:[%s2034 + $0x10] sm:$0xff]
    %v2038 = vld [vmem:[#allocation6] sm:$0xff]
    %v2039 = vld [vmem:[#allocation6 + $0x8] sm:$0xf]
    %v2040 = vld [vmem:[#allocation6 + $0xc] sm:$0xff]
    %v2041 = vld [vmem:[#allocation6 + $0x14] sm:$0xf]
    %v2042 = vld [vmem:[#allocation6 + $0x18] sm:$0xff]
    %v2043 = vld [vmem:[#allocation6 + $0x20] sm:$0xf]
    %v2044 = vld [vmem:[#allocation6 + $0x24] sm:$0xff]
    %v2045 = vld [vmem:[#allocation6 + $0x2c] sm:$0xf]
    %v2046 = vld [vmem:[#allocation6 + $0x30] sm:$0xff]
    %v2047 = vld [vmem:[#allocation6 + $0x38] sm:$0xf]
    %v2048 = vld [vmem:[#allocation6 + $0x3c] sm:$0xff]
    %v2049 = vld [vmem:[#allocation6 + $0x44] sm:$0xf]
    %v2050 = vld [vmem:[#allocation6 + $0x48] sm:$0xff]
    %v2051 = vld [vmem:[#allocation6 + $0x50] sm:$0xf]
    %v2052 = vld [vmem:[#allocation6 + $0x54] sm:$0xff]
    %v2053 = vld [vmem:[#allocation6 + $0x5c] sm:$0xf]
    %v2054 = vld [vmem:[#allocation6 + $0x60] sm:$0xff]
    %v2055 = vld [vmem:[#allocation6 + $0x68] sm:$0xf]
    %v2056 = vld [vmem:[#allocation6 + $0x6c] sm:$0xff]
    %v2057 = vld [vmem:[#allocation6 + $0x74] sm:$0xf]
    %v2058 = vld [vmem:[#allocation6 + $0x78] sm:$0xff]
    %v2059 = vld [vmem:[#allocation6 + $0x80] sm:$0xf]
    %v2060 = vld [vmem:[#allocation6 + $0x84] sm:$0xff]
    %v2061 = vld [vmem:[#allocation6 + $0x8c] sm:$0xf]
    %v2062 = vld [vmem:[#allocation6 + $0x90] sm:$0xff]
    %v2063 = vld [vmem:[#allocation6 + $0x98] sm:$0xf]
    %v2064 = vld [vmem:[#allocation6 + $0x9c] sm:$0xff]
    %v2065 = vld [vmem:[#allocation6 + $0xa4] sm:$0xf]
    %v2066 = vld [vmem:[#allocation6 + $0xa8] sm:$0xff]
    %v2067 = vld [vmem:[#allocation6 + $0xb0] sm:$0xf]
    %v2068 = vld [vmem:[#allocation6 + $0xb4] sm:$0xff]
    %v2069 = vld [vmem:[#allocation6 + $0xbc] sm:$0xf]
    %v2102 = vunpack.c.l.b16 %v2038
    %v2103 = vunpack.c.h.b16 %v2038
    %v2104 = vunpack.c.l.b16 %v2039
    %v2105 = vunpack.c.l.b16 %v2040
    %v2106 = vunpack.c.h.b16 %v2040
    %v2107 = vunpack.c.l.b16 %v2041
    %v2108 = vunpack.c.l.b16 %v2042
    %v2109 = vunpack.c.h.b16 %v2042
    %v2110 = vunpack.c.l.b16 %v2043
    %v2111 = vunpack.c.l.b16 %v2044
    %v2112 = vunpack.c.h.b16 %v2044
    %v2113 = vunpack.c.l.b16 %v2045
    %v2114 = vunpack.c.l.b16 %v2046
    %v2115 = vunpack.c.h.b16 %v2046
    %v2116 = vunpack.c.l.b16 %v2047
    %v2117 = vunpack.c.l.b16 %v2048
    %v2118 = vunpack.c.h.b16 %v2048
    %v2119 = vunpack.c.l.b16 %v2049
    %v2120 = vunpack.c.l.b16 %v2050
    %v2121 = vunpack.c.h.b16 %v2050
    %v2122 = vunpack.c.l.b16 %v2051
    %v2123 = vunpack.c.l.b16 %v2052
    %v2124 = vunpack.c.h.b16 %v2052
    %v2125 = vunpack.c.l.b16 %v2053
    %v2126 = vunpack.c.l.b16 %v2054
    %v2127 = vunpack.c.h.b16 %v2054
    %v2128 = vunpack.c.l.b16 %v2055
    %v2129 = vunpack.c.l.b16 %v2056
    %v2130 = vunpack.c.h.b16 %v2056
    %v2131 = vunpack.c.l.b16 %v2057
    %v2132 = vunpack.c.l.b16 %v2058
    %v2133 = vunpack.c.h.b16 %v2058
    %v2134 = vunpack.c.l.b16 %v2059
    %v2135 = vunpack.c.l.b16 %v2060
    %v2136 = vunpack.c.h.b16 %v2060
    %v2137 = vunpack.c.l.b16 %v2061
    %v2138 = vunpack.c.l.b16 %v2062
    %v2139 = vunpack.c.h.b16 %v2062
    %v2140 = vunpack.c.l.b16 %v2063
    %v2141 = vunpack.c.l.b16 %v2064
    %v2142 = vunpack.c.h.b16 %v2064
    %v2143 = vunpack.c.l.b16 %v2065
    %v2144 = vunpack.c.l.b16 %v2066
    %v2145 = vunpack.c.h.b16 %v2066
    %v2146 = vunpack.c.l.b16 %v2067
    %v2147 = vunpack.c.l.b16 %v2068
    %v2148 = vunpack.c.h.b16 %v2068
    %v2149 = vunpack.c.l.b16 %v2069
    %v2150 = vpack.c.b16 %v2105, %v2102
    %v2151 = vpack.c.b16 %v2106, %v2103
    %v2152 = vpack.c.b16 %v2107, %v2104
    %v2153 = vpack.c.b16 %v2111, %v2108
    %v2154 = vpack.c.b16 %v2112, %v2109
    %v2155 = vpack.c.b16 %v2113, %v2110
    %v2156 = vpack.c.b16 %v2117, %v2114
    %v2157 = vpack.c.b16 %v2118, %v2115
    %v2158 = vpack.c.b16 %v2119, %v2116
    %v2159 = vpack.c.b16 %v2123, %v2120
    %v2160 = vpack.c.b16 %v2124, %v2121
    %v2161 = vpack.c.b16 %v2125, %v2122
    %v2162 = vpack.c.b16 %v2129, %v2126
    %v2163 = vpack.c.b16 %v2130, %v2127
    %v2164 = vpack.c.b16 %v2131, %v2128
    %v2165 = vpack.c.b16 %v2135, %v2132
    %v2166 = vpack.c.b16 %v2136, %v2133
    %v2167 = vpack.c.b16 %v2137, %v2134
    %v2168 = vpack.c.b16 %v2141, %v2138
    %v2169 = vpack.c.b16 %v2142, %v2139
    %v2170 = vpack.c.b16 %v2143, %v2140
    %v2171 = vpack.c.b16 %v2147, %v2144
    %v2172 = vpack.c.b16 %v2148, %v2145
    %v2173 = vpack.c.b16 %v2149, %v2146
    %2198 = vmatprep.subr.bf16.mxu0 %v2151
    %2199 = vmatpush1.bf16.msra.mxu0 %v2150
    %2200 = vmatprep.subr.bf16.mxu0 %v2154
    %2201 = vmatpush1.bf16.msra.mxu0 %v2153
    %2202 = vmatprep.subr.bf16.mxu0 %v2157
    %2203 = vmatpush1.bf16.msra.mxu0 %v2156
    %2204 = vmatprep.subr.bf16.mxu0 %v2160
    %2205 = vmatpush1.bf16.msra.mxu0 %v2159
    %2206 = vmatprep.subr.bf16.mxu0 %v2163
    %2207 = vmatpush1.bf16.msra.mxu0 %v2162
    %2208 = vmatprep.subr.bf16.mxu0 %v2166
    %2209 = vmatpush1.bf16.msra.mxu0 %v2165
    %2210 = vmatprep.subr.bf16.mxu0 %v2169
    %2211 = vmatpush1.bf16.msra.mxu0 %v2168
    %2212 = vmatprep.subr.bf16.mxu0 %v2172
    %2213 = vmatpush1.bf16.msra.mxu0 %v2171
    %2214 = vmatprep.subr.bf16.mxu0 0
    %2215 = vmatpush1.bf16.msra.mxu0 0
    %2216 = vmatprep.subr.bf16.mxu0 0
    %2217 = vmatpush1.bf16.msra.mxu0 0
    %2218 = vmatprep.subr.bf16.mxu0 0
    %2219 = vmatpush1.bf16.msra.mxu0 0
    %2220 = vmatprep.subr.bf16.mxu0 0
    %2221 = vmatpush1.bf16.msra.mxu0 0
    %2222 = vmatprep.subr.bf16.mxu0 0
    %2223 = vmatpush1.bf16.msra.mxu0 0
    %2224 = vmatprep.subr.bf16.mxu0 0
    %2225 = vmatpush1.bf16.msra.mxu0 0
    %2226 = vmatprep.subr.bf16.mxu0 0
    %2227 = vmatpush1.bf16.msra.mxu0 0
    %2228 = vmatprep.subr.bf16.mxu0 0
    %2229 = vmatpush1.bf16.msra.mxu0 0
    %2230 = vmatprep.mubr.bf16.mxu0 0
    %2231 = vmatmul.mubr.bf16.gmra.mrb[0].mxu0 %v1788
    %v2232 = vpop.f32.mrb[0].mxu0
    %v2233 = vadd.f32 0.0, %v2232
    %v2234 = vpop.f32.mrb[0].mxu0
    %v2235 = vadd.f32 0.0, %v2234
    %v2236 = vpop.f32.mrb[0].mxu0
    %v2237 = vpop.f32.mrb[0].mxu0
    %2238 = vdwg.mxu0
    %2239 = vmatprep.subr.bf16.mxu0 0
    %2240 = vmatpush1.bf16.msra.mxu0 %v2152
    %2241 = vmatprep.subr.bf16.mxu0 0
    %2242 = vmatpush1.bf16.msra.mxu0 %v2155
    %2243 = vmatprep.subr.bf16.mxu0 0
    %2244 = vmatpush1.bf16.msra.mxu0 %v2158
    %2245 = vmatprep.subr.bf16.mxu0 0
    %2246 = vmatpush1.bf16.msra.mxu0 %v2161
    %2247 = vmatprep.subr.bf16.mxu0 0
    %2248 = vmatpush1.bf16.msra.mxu0 %v2164
    %2249 = vmatprep.subr.bf16.mxu0 0
    %2250 = vmatpush1.bf16.msra.mxu0 %v2167
    %2251 = vmatprep.subr.bf16.mxu0 0
    %2252 = vmatpush1.bf16.msra.mxu0 %v2170
    %2253 = vmatprep.subr.bf16.mxu0 0
    %2254 = vmatpush1.bf16.msra.mxu0 %v2173
    %2255 = vmatprep.subr.bf16.mxu0 0
    %2256 = vmatpush1.bf16.msra.mxu0 0
    %2257 = vmatprep.subr.bf16.mxu0 0
    %2258 = vmatpush1.bf16.msra.mxu0 0
    %2259 = vmatprep.subr.bf16.mxu0 0
    %2260 = vmatpush1.bf16.msra.mxu0 0
    %2261 = vmatprep.subr.bf16.mxu0 0
    %2262 = vmatpush1.bf16.msra.mxu0 0
    %2263 = vmatprep.subr.bf16.mxu0 0
    %2264 = vmatpush1.bf16.msra.mxu0 0
    %2265 = vmatprep.subr.bf16.mxu0 0
    %2266 = vmatpush1.bf16.msra.mxu0 0
    %2267 = vmatprep.subr.bf16.mxu0 0
    %2268 = vmatpush1.bf16.msra.mxu0 0
    %2269 = vmatprep.subr.bf16.mxu0 0
    %2270 = vmatpush1.bf16.msra.mxu0 0
    %2271 = vmatprep.mubr.bf16.mxu0 0
    %2272 = vmatmul.mubr.bf16.gmra.mrb[0].mxu0 %v1788
    %v2273 = vpop.f32.mrb[0].mxu0
    %v2274 = vadd.f32 0.0, %v2273
    %v2275 = vpop.f32.mrb[0].mxu0
    %v2276 = vpop.f32.mrb[0].mxu0
    %v2277 = vpop.f32.mrb[0].mxu0
    %2278 = vdwg.mxu0
    %v2279 = vadd.f32 %v2035, %v2233
    %v2280 = vxor.u32 %v2279, 2147483648
    %v2281 = vmul.f32 %v2280, 1.442695
    %v2282 = vpow.pop %v2281
    %v2283 = vadd.f32 %v2282, 1.0
    %v2284 = vrcp.pop %v2283
    %v2285 = vmul.f32 1.0, %v2284
    %v2286 = vadd.f32 %v2036, %v2235
    %v2287 = vxor.u32 %v2286, 2147483648
    %v2288 = vmul.f32 %v2287, 1.442695
    %v2289 = vpow.pop %v2288
    %v2290 = vadd.f32 %v2289, 1.0
    %v2291 = vrcp.pop %v2290
    %v2292 = vmul.f32 1.0, %v2291
    %v2293 = vadd.f32 %v2274, %v481
    %v2294 = vmul.f32 %v2285, %v2293
    %v2295 = vadd.f32 %v2037, %v2294
    %v2296 = vtanh.pop %v2295
    %v2297 = vsub.f32 %v1787, %v2296
    %v2298 = vmul.f32 %v2292, %v2297
    %v2299 = vadd.f32 %v2296, %v2298
    %v2300 = vpack.c.bf16 %v2299, %v2299
    %v2301 = vld [vmem:[#allocation8] sm:$0xff]
    %v2302 = vld [vmem:[#allocation8 + $0x8] sm:$0xf]
    %v2303 = vld [vmem:[#allocation8 + $0xc] sm:$0xff]
    %v2304 = vld [vmem:[#allocation8 + $0x14] sm:$0xf]
    %v2305 = vld [vmem:[#allocation8 + $0x18] sm:$0xff]
    %v2306 = vld [vmem:[#allocation8 + $0x20] sm:$0xf]
    %v2307 = vld [vmem:[#allocation8 + $0x24] sm:$0xff]
    %v2308 = vld [vmem:[#allocation8 + $0x2c] sm:$0xf]
    %v2309 = vld [vmem:[#allocation8 + $0x30] sm:$0xff]
    %v2310 = vld [vmem:[#allocation8 + $0x38] sm:$0xf]
    %v2311 = vld [vmem:[#allocation8 + $0x3c] sm:$0xff]
    %v2312 = vld [vmem:[#allocation8 + $0x44] sm:$0xf]
    %v2313 = vld [vmem:[#allocation8 + $0x48] sm:$0xff]
    %v2314 = vld [vmem:[#allocation8 + $0x50] sm:$0xf]
    %v2315 = vld [vmem:[#allocation8 + $0x54] sm:$0xff]
    %v2316 = vld [vmem:[#allocation8 + $0x5c] sm:$0xf]
    %v2317 = vld [vmem:[#allocation8 + $0x60] sm:$0xff]
    %v2318 = vld [vmem:[#allocation8 + $0x68] sm:$0xf]
    %v2319 = vld [vmem:[#allocation8 + $0x6c] sm:$0xff]
    %v2320 = vld [vmem:[#allocation8 + $0x74] sm:$0xf]
    %v2321 = vld [vmem:[#allocation8 + $0x78] sm:$0xff]
    %v2322 = vld [vmem:[#allocation8 + $0x80] sm:$0xf]
    %v2323 = vld [vmem:[#allocation8 + $0x84] sm:$0xff]
    %v2324 = vld [vmem:[#allocation8 + $0x8c] sm:$0xf]
    %v2325 = vld [vmem:[#allocation8 + $0x90] sm:$0xff]
    %v2326 = vld [vmem:[#allocation8 + $0x98] sm:$0xf]
    %v2327 = vld [vmem:[#allocation8 + $0x9c] sm:$0xff]
    %v2328 = vld [vmem:[#allocation8 + $0xa4] sm:$0xf]
    %v2329 = vld [vmem:[#allocation8 + $0xa8] sm:$0xff]
    %v2330 = vld [vmem:[#allocation8 + $0xb0] sm:$0xf]
    %v2331 = vld [vmem:[#allocation8 + $0xb4] sm:$0xff]
    %v2332 = vld [vmem:[#allocation8 + $0xbc] sm:$0xf]
    %v2365 = vunpack.c.l.b16 %v2301
    %v2366 = vunpack.c.h.b16 %v2301
    %v2367 = vunpack.c.l.b16 %v2302
    %v2368 = vunpack.c.l.b16 %v2303
    %v2369 = vunpack.c.h.b16 %v2303
    %v2370 = vunpack.c.l.b16 %v2304
    %v2371 = vunpack.c.l.b16 %v2305
    %v2372 = vunpack.c.h.b16 %v2305
    %v2373 = vunpack.c.l.b16 %v2306
    %v2374 = vunpack.c.l.b16 %v2307
    %v2375 = vunpack.c.h.b16 %v2307
    %v2376 = vunpack.c.l.b16 %v2308
    %v2377 = vunpack.c.l.b16 %v2309
    %v2378 = vunpack.c.h.b16 %v2309
    %v2379 = vunpack.c.l.b16 %v2310
    %v2380 = vunpack.c.l.b16 %v2311
    %v2381 = vunpack.c.h.b16 %v2311
    %v2382 = vunpack.c.l.b16 %v2312
    %v2383 = vunpack.c.l.b16 %v2313
    %v2384 = vunpack.c.h.b16 %v2313
    %v2385 = vunpack.c.l.b16 %v2314
    %v2386 = vunpack.c.l.b16 %v2315
    %v2387 = vunpack.c.h.b16 %v2315
    %v2388 = vunpack.c.l.b16 %v2316
    %v2389 = vunpack.c.l.b16 %v2317
    %v2390 = vunpack.c.h.b16 %v2317
    %v2391 = vunpack.c.l.b16 %v2318
    %v2392 = vunpack.c.l.b16 %v2319
    %v2393 = vunpack.c.h.b16 %v2319
    %v2394 = vunpack.c.l.b16 %v2320
    %v2395 = vunpack.c.l.b16 %v2321
    %v2396 = vunpack.c.h.b16 %v2321
    %v2397 = vunpack.c.l.b16 %v2322
    %v2398 = vunpack.c.l.b16 %v2323
    %v2399 = vunpack.c.h.b16 %v2323
    %v2400 = vunpack.c.l.b16 %v2324
    %v2401 = vunpack.c.l.b16 %v2325
    %v2402 = vunpack.c.h.b16 %v2325
    %v2403 = vunpack.c.l.b16 %v2326
    %v2404 = vunpack.c.l.b16 %v2327
    %v2405 = vunpack.c.h.b16 %v2327
    %v2406 = vunpack.c.l.b16 %v2328
    %v2407 = vunpack.c.l.b16 %v2329
    %v2408 = vunpack.c.h.b16 %v2329
    %v2409 = vunpack.c.l.b16 %v2330
    %v2410 = vunpack.c.l.b16 %v2331
    %v2411 = vunpack.c.h.b16 %v2331
    %v2412 = vunpack.c.l.b16 %v2332
    %v2413 = vpack.c.b16 %v2368, %v2365
    %v2414 = vpack.c.b16 %v2369, %v2366
    %v2415 = vpack.c.b16 %v2370, %v2367
    %v2416 = vpack.c.b16 %v2374, %v2371
    %v2417 = vpack.c.b16 %v2375, %v2372
    %v2418 = vpack.c.b16 %v2376, %v2373
    %v2419 = vpack.c.b16 %v2380, %v2377
    %v2420 = vpack.c.b16 %v2381, %v2378
    %v2421 = vpack.c.b16 %v2382, %v2379
    %v2422 = vpack.c.b16 %v2386, %v2383
    %v2423 = vpack.c.b16 %v2387, %v2384
    %v2424 = vpack.c.b16 %v2388, %v2385
    %v2425 = vpack.c.b16 %v2392, %v2389
    %v2426 = vpack.c.b16 %v2393, %v2390
    %v2427 = vpack.c.b16 %v2394, %v2391
    %v2428 = vpack.c.b16 %v2398, %v2395
    %v2429 = vpack.c.b16 %v2399, %v2396
    %v2430 = vpack.c.b16 %v2400, %v2397
    %v2431 = vpack.c.b16 %v2404, %v2401
    %v2432 = vpack.c.b16 %v2405, %v2402
    %v2433 = vpack.c.b16 %v2406, %v2403
    %v2434 = vpack.c.b16 %v2410, %v2407
    %v2435 = vpack.c.b16 %v2411, %v2408
    %v2436 = vpack.c.b16 %v2412, %v2409
    %2461 = vmatprep.subr.bf16.mxu0 %v2414
    %2462 = vmatpush1.bf16.msra.mxu0 %v2413
    %2463 = vmatprep.subr.bf16.mxu0 %v2417
    %2464 = vmatpush1.bf16.msra.mxu0 %v2416
    %2465 = vmatprep.subr.bf16.mxu0 %v2420
    %2466 = vmatpush1.bf16.msra.mxu0 %v2419
    %2467 = vmatprep.subr.bf16.mxu0 %v2423
    %2468 = vmatpush1.bf16.msra.mxu0 %v2422
    %2469 = vmatprep.subr.bf16.mxu0 %v2426
    %2470 = vmatpush1.bf16.msra.mxu0 %v2425
    %2471 = vmatprep.subr.bf16.mxu0 %v2429
    %2472 = vmatpush1.bf16.msra.mxu0 %v2428
    %2473 = vmatprep.subr.bf16.mxu0 %v2432
    %2474 = vmatpush1.bf16.msra.mxu0 %v2431
    %2475 = vmatprep.subr.bf16.mxu0 %v2435
    %2476 = vmatpush1.bf16.msra.mxu0 %v2434
    %2477 = vmatprep.subr.bf16.mxu0 0
    %2478 = vmatpush1.bf16.msra.mxu0 0
    %2479 = vmatprep.subr.bf16.mxu0 0
    %2480 = vmatpush1.bf16.msra.mxu0 0
    %2481 = vmatprep.subr.bf16.mxu0 0
    %2482 = vmatpush1.bf16.msra.mxu0 0
    %2483 = vmatprep.subr.bf16.mxu0 0
    %2484 = vmatpush1.bf16.msra.mxu0 0
    %2485 = vmatprep.subr.bf16.mxu0 0
    %2486 = vmatpush1.bf16.msra.mxu0 0
    %2487 = vmatprep.subr.bf16.mxu0 0
    %2488 = vmatpush1.bf16.msra.mxu0 0
    %2489 = vmatprep.subr.bf16.mxu0 0
    %2490 = vmatpush1.bf16.msra.mxu0 0
    %2491 = vmatprep.subr.bf16.mxu0 0
    %2492 = vmatpush1.bf16.msra.mxu0 0
    %2493 = vmatprep.mubr.bf16.mxu0 0
    %2494 = vmatmul.mubr.bf16.gmra.mrb[0].mxu0 %v2300
    %v2495 = vpop.f32.mrb[0].mxu0
    %v2496 = vadd.f32 %v488, %v2495
    %v2497 = vpop.f32.mrb[0].mxu0
    %v2498 = vadd.f32 %v492, %v2497
    %v2499 = vpop.f32.mrb[0].mxu0
    %v2500 = vpop.f32.mrb[0].mxu0
    %2501 = vdwg.mxu0
    %2502 = vmatprep.subr.bf16.mxu0 0
    %2503 = vmatpush1.bf16.msra.mxu0 %v2415
    %2504 = vmatprep.subr.bf16.mxu0 0
    %2505 = vmatpush1.bf16.msra.mxu0 %v2418
    %2506 = vmatprep.subr.bf16.mxu0 0
    %2507 = vmatpush1.bf16.msra.mxu0 %v2421
    %2508 = vmatprep.subr.bf16.mxu0 0
    %2509 = vmatpush1.bf16.msra.mxu0 %v2424
    %2510 = vmatprep.subr.bf16.mxu0 0
    %2511 = vmatpush1.bf16.msra.mxu0 %v2427
    %2512 = vmatprep.subr.bf16.mxu0 0
    %2513 = vmatpush1.bf16.msra.mxu0 %v2430
    %2514 = vmatprep.subr.bf16.mxu0 0
    %2515 = vmatpush1.bf16.msra.mxu0 %v2433
    %2516 = vmatprep.subr.bf16.mxu0 0
    %2517 = vmatpush1.bf16.msra.mxu0 %v2436
    %2518 = vmatprep.subr.bf16.mxu0 0
    %2519 = vmatpush1.bf16.msra.mxu0 0
    %2520 = vmatprep.subr.bf16.mxu0 0
    %2521 = vmatpush1.bf16.msra.mxu0 0
    %2522 = vmatprep.subr.bf16.mxu0 0
    %2523 = vmatpush1.bf16.msra.mxu0 0
    %2524 = vmatprep.subr.bf16.mxu0 0
    %2525 = vmatpush1.bf16.msra.mxu0 0
    %2526 = vmatprep.subr.bf16.mxu0 0
    %2527 = vmatpush1.bf16.msra.mxu0 0
    %2528 = vmatprep.subr.bf16.mxu0 0
    %2529 = vmatpush1.bf16.msra.mxu0 0
    %2530 = vmatprep.subr.bf16.mxu0 0
    %2531 = vmatpush1.bf16.msra.mxu0 0
    %2532 = vmatprep.subr.bf16.mxu0 0
    %2533 = vmatpush1.bf16.msra.mxu0 0
    %2534 = vmatprep.mubr.bf16.mxu0 0
    %2535 = vmatmul.mubr.bf16.gmra.mrb[0].mxu0 %v2300
    %v2536 = vpop.f32.mrb[0].mxu0
    %v2537 = vadd.f32 %v496, %v2536
    %v2538 = vpop.f32.mrb[0].mxu0
    %v2539 = vpop.f32.mrb[0].mxu0
    %v2540 = vpop.f32.mrb[0].mxu0
    %2541 = vdwg.mxu0
    %s2542 = scalar_lea.vmem [#allocation3], 72
    %2543 = vst [vmem:[%s2542] sm:$0xff] %v2496
    %2544 = vst [vmem:[%s2542 + $0x8] sm:$0xff] %v2498
    %2545 = vst [vmem:[%s2542 + $0x10] sm:$0xff] %v2537
    %s2546 = scalar_lea.vmem [#allocation2], 96
    %v2547 = vld [vmem:[%s2546] sm:$0xff]
    %v2548 = vld [vmem:[%s2546 + $0x8] sm:$0xff]
    %v2549 = vld [vmem:[%s2546 + $0x10] sm:$0xff]
    %v2550 = vld [vmem:[#allocation6] sm:$0xff]
    %v2551 = vld [vmem:[#allocation6 + $0x8] sm:$0xf]
    %v2552 = vld [vmem:[#allocation6 + $0xc] sm:$0xff]
    %v2553 = vld [vmem:[#allocation6 + $0x14] sm:$0xf]
    %v2554 = vld [vmem:[#allocation6 + $0x18] sm:$0xff]
    %v2555 = vld [vmem:[#allocation6 + $0x20] sm:$0xf]
    %v2556 = vld [vmem:[#allocation6 + $0x24] sm:$0xff]
    %v2557 = vld [vmem:[#allocation6 + $0x2c] sm:$0xf]
    %v2558 = vld [vmem:[#allocation6 + $0x30] sm:$0xff]
    %v2559 = vld [vmem:[#allocation6 + $0x38] sm:$0xf]
    %v2560 = vld [vmem:[#allocation6 + $0x3c] sm:$0xff]
    %v2561 = vld [vmem:[#allocation6 + $0x44] sm:$0xf]
    %v2562 = vld [vmem:[#allocation6 + $0x48] sm:$0xff]
    %v2563 = vld [vmem:[#allocation6 + $0x50] sm:$0xf]
    %v2564 = vld [vmem:[#allocation6 + $0x54] sm:$0xff]
    %v2565 = vld [vmem:[#allocation6 + $0x5c] sm:$0xf]
    %v2566 = vld [vmem:[#allocation6 + $0x60] sm:$0xff]
    %v2567 = vld [vmem:[#allocation6 + $0x68] sm:$0xf]
    %v2568 = vld [vmem:[#allocation6 + $0x6c] sm:$0xff]
    %v2569 = vld [vmem:[#allocation6 + $0x74] sm:$0xf]
    %v2570 = vld [vmem:[#allocation6 + $0x78] sm:$0xff]
    %v2571 = vld [vmem:[#allocation6 + $0x80] sm:$0xf]
    %v2572 = vld [vmem:[#allocation6 + $0x84] sm:$0xff]
    %v2573 = vld [vmem:[#allocation6 + $0x8c] sm:$0xf]
    %v2574 = vld [vmem:[#allocation6 + $0x90] sm:$0xff]
    %v2575 = vld [vmem:[#allocation6 + $0x98] sm:$0xf]
    %v2576 = vld [vmem:[#allocation6 + $0x9c] sm:$0xff]
    %v2577 = vld [vmem:[#allocation6 + $0xa4] sm:$0xf]
    %v2578 = vld [vmem:[#allocation6 + $0xa8] sm:$0xff]
    %v2579 = vld [vmem:[#allocation6 + $0xb0] sm:$0xf]
    %v2580 = vld [vmem:[#allocation6 + $0xb4] sm:$0xff]
    %v2581 = vld [vmem:[#allocation6 + $0xbc] sm:$0xf]
    %v2614 = vunpack.c.l.b16 %v2550
    %v2615 = vunpack.c.h.b16 %v2550
    %v2616 = vunpack.c.l.b16 %v2551
    %v2617 = vunpack.c.l.b16 %v2552
    %v2618 = vunpack.c.h.b16 %v2552
    %v2619 = vunpack.c.l.b16 %v2553
    %v2620 = vunpack.c.l.b16 %v2554
    %v2621 = vunpack.c.h.b16 %v2554
    %v2622 = vunpack.c.l.b16 %v2555
    %v2623 = vunpack.c.l.b16 %v2556
    %v2624 = vunpack.c.h.b16 %v2556
    %v2625 = vunpack.c.l.b16 %v2557
    %v2626 = vunpack.c.l.b16 %v2558
    %v2627 = vunpack.c.h.b16 %v2558
    %v2628 = vunpack.c.l.b16 %v2559
    %v2629 = vunpack.c.l.b16 %v2560
    %v2630 = vunpack.c.h.b16 %v2560
    %v2631 = vunpack.c.l.b16 %v2561
    %v2632 = vunpack.c.l.b16 %v2562
    %v2633 = vunpack.c.h.b16 %v2562
    %v2634 = vunpack.c.l.b16 %v2563
    %v2635 = vunpack.c.l.b16 %v2564
    %v2636 = vunpack.c.h.b16 %v2564
    %v2637 = vunpack.c.l.b16 %v2565
    %v2638 = vunpack.c.l.b16 %v2566
    %v2639 = vunpack.c.h.b16 %v2566
    %v2640 = vunpack.c.l.b16 %v2567
    %v2641 = vunpack.c.l.b16 %v2568
    %v2642 = vunpack.c.h.b16 %v2568
    %v2643 = vunpack.c.l.b16 %v2569
    %v2644 = vunpack.c.l.b16 %v2570
    %v2645 = vunpack.c.h.b16 %v2570
    %v2646 = vunpack.c.l.b16 %v2571
    %v2647 = vunpack.c.l.b16 %v2572
    %v2648 = vunpack.c.h.b16 %v2572
    %v2649 = vunpack.c.l.b16 %v2573
    %v2650 = vunpack.c.l.b16 %v2574
    %v2651 = vunpack.c.h.b16 %v2574
    %v2652 = vunpack.c.l.b16 %v2575
    %v2653 = vunpack.c.l.b16 %v2576
    %v2654 = vunpack.c.h.b16 %v2576
    %v2655 = vunpack.c.l.b16 %v2577
    %v2656 = vunpack.c.l.b16 %v2578
    %v2657 = vunpack.c.h.b16 %v2578
    %v2658 = vunpack.c.l.b16 %v2579
    %v2659 = vunpack.c.l.b16 %v2580
    %v2660 = vunpack.c.h.b16 %v2580
    %v2661 = vunpack.c.l.b16 %v2581
    %v2662 = vpack.c.b16 %v2617, %v2614
    %v2663 = vpack.c.b16 %v2618, %v2615
    %v2664 = vpack.c.b16 %v2619, %v2616
    %v2665 = vpack.c.b16 %v2623, %v2620
    %v2666 = vpack.c.b16 %v2624, %v2621
    %v2667 = vpack.c.b16 %v2625, %v2622
    %v2668 = vpack.c.b16 %v2629, %v2626
    %v2669 = vpack.c.b16 %v2630, %v2627
    %v2670 = vpack.c.b16 %v2631, %v2628
    %v2671 = vpack.c.b16 %v2635, %v2632
    %v2672 = vpack.c.b16 %v2636, %v2633
    %v2673 = vpack.c.b16 %v2637, %v2634
    %v2674 = vpack.c.b16 %v2641, %v2638
    %v2675 = vpack.c.b16 %v2642, %v2639
    %v2676 = vpack.c.b16 %v2643, %v2640
    %v2677 = vpack.c.b16 %v2647, %v2644
    %v2678 = vpack.c.b16 %v2648, %v2645
    %v2679 = vpack.c.b16 %v2649, %v2646
    %v2680 = vpack.c.b16 %v2653, %v2650
    %v2681 = vpack.c.b16 %v2654, %v2651
    %v2682 = vpack.c.b16 %v2655, %v2652
    %v2683 = vpack.c.b16 %v2659, %v2656
    %v2684 = vpack.c.b16 %v2660, %v2657
    %v2685 = vpack.c.b16 %v2661, %v2658
    %2710 = vmatprep.subr.bf16.mxu0 %v2663
    %2711 = vmatpush1.bf16.msra.mxu0 %v2662
    %2712 = vmatprep.subr.bf16.mxu0 %v2666
    %2713 = vmatpush1.bf16.msra.mxu0 %v2665
    %2714 = vmatprep.subr.bf16.mxu0 %v2669
    %2715 = vmatpush1.bf16.msra.mxu0 %v2668
    %2716 = vmatprep.subr.bf16.mxu0 %v2672
    %2717 = vmatpush1.bf16.msra.mxu0 %v2671
    %2718 = vmatprep.subr.bf16.mxu0 %v2675
    %2719 = vmatpush1.bf16.msra.mxu0 %v2674
    %2720 = vmatprep.subr.bf16.mxu0 %v2678
    %2721 = vmatpush1.bf16.msra.mxu0 %v2677
    %2722 = vmatprep.subr.bf16.mxu0 %v2681
    %2723 = vmatpush1.bf16.msra.mxu0 %v2680
    %2724 = vmatprep.subr.bf16.mxu0 %v2684
    %2725 = vmatpush1.bf16.msra.mxu0 %v2683
    %2726 = vmatprep.subr.bf16.mxu0 0
    %2727 = vmatpush1.bf16.msra.mxu0 0
    %2728 = vmatprep.subr.bf16.mxu0 0
    %2729 = vmatpush1.bf16.msra.mxu0 0
    %2730 = vmatprep.subr.bf16.mxu0 0
    %2731 = vmatpush1.bf16.msra.mxu0 0
    %2732 = vmatprep.subr.bf16.mxu0 0
    %2733 = vmatpush1.bf16.msra.mxu0 0
    %2734 = vmatprep.subr.bf16.mxu0 0
    %2735 = vmatpush1.bf16.msra.mxu0 0
    %2736 = vmatprep.subr.bf16.mxu0 0
    %2737 = vmatpush1.bf16.msra.mxu0 0
    %2738 = vmatprep.subr.bf16.mxu0 0
    %2739 = vmatpush1.bf16.msra.mxu0 0
    %2740 = vmatprep.subr.bf16.mxu0 0
    %2741 = vmatpush1.bf16.msra.mxu0 0
    %2742 = vmatprep.mubr.bf16.mxu0 0
    %2743 = vmatmul.mubr.bf16.gmra.mrb[0].mxu0 %v2300
    %v2744 = vpop.f32.mrb[0].mxu0
    %v2745 = vadd.f32 0.0, %v2744
    %v2746 = vpop.f32.mrb[0].mxu0
    %v2747 = vadd.f32 0.0, %v2746
    %v2748 = vpop.f32.mrb[0].mxu0
    %v2749 = vpop.f32.mrb[0].mxu0
    %2750 = vdwg.mxu0
    %2751 = vmatprep.subr.bf16.mxu0 0
    %2752 = vmatpush1.bf16.msra.mxu0 %v2664
    %2753 = vmatprep.subr.bf16.mxu0 0
    %2754 = vmatpush1.bf16.msra.mxu0 %v2667
    %2755 = vmatprep.subr.bf16.mxu0 0
    %2756 = vmatpush1.bf16.msra.mxu0 %v2670
    %2757 = vmatprep.subr.bf16.mxu0 0
    %2758 = vmatpush1.bf16.msra.mxu0 %v2673
    %2759 = vmatprep.subr.bf16.mxu0 0
    %2760 = vmatpush1.bf16.msra.mxu0 %v2676
    %2761 = vmatprep.subr.bf16.mxu0 0
    %2762 = vmatpush1.bf16.msra.mxu0 %v2679
    %2763 = vmatprep.subr.bf16.mxu0 0
    %2764 = vmatpush1.bf16.msra.mxu0 %v2682
    %2765 = vmatprep.subr.bf16.mxu0 0
    %2766 = vmatpush1.bf16.msra.mxu0 %v2685
    %2767 = vmatprep.subr.bf16.mxu0 0
    %2768 = vmatpush1.bf16.msra.mxu0 0
    %2769 = vmatprep.subr.bf16.mxu0 0
    %2770 = vmatpush1.bf16.msra.mxu0 0
    %2771 = vmatprep.subr.bf16.mxu0 0
    %2772 = vmatpush1.bf16.msra.mxu0 0
    %2773 = vmatprep.subr.bf16.mxu0 0
    %2774 = vmatpush1.bf16.msra.mxu0 0
    %2775 = vmatprep.subr.bf16.mxu0 0
    %2776 = vmatpush1.bf16.msra.mxu0 0
    %2777 = vmatprep.subr.bf16.mxu0 0
    %2778 = vmatpush1.bf16.msra.mxu0 0
    %2779 = vmatprep.subr.bf16.mxu0 0
    %2780 = vmatpush1.bf16.msra.mxu0 0
    %2781 = vmatprep.subr.bf16.mxu0 0
    %2782 = vmatpush1.bf16.msra.mxu0 0
    %2783 = vmatprep.mubr.bf16.mxu0 0
    %2784 = vmatmul.mubr.bf16.gmra.mrb[0].mxu0 %v2300
    %v2785 = vpop.f32.mrb[0].mxu0
    %v2786 = vadd.f32 0.0, %v2785
    %v2787 = vpop.f32.mrb[0].mxu0
    %v2788 = vpop.f32.mrb[0].mxu0
    %v2789 = vpop.f32.mrb[0].mxu0
    %2790 = vdwg.mxu0
    %v2791 = vadd.f32 %v2547, %v2745
    %v2792 = vxor.u32 %v2791, 2147483648
    %v2793 = vmul.f32 %v2792, 1.442695
    %v2794 = vpow.pop %v2793
    %v2795 = vadd.f32 %v2794, 1.0
    %v2796 = vrcp.pop %v2795
    %v2797 = vmul.f32 1.0, %v2796
    %v2798 = vadd.f32 %v2548, %v2747
    %v2799 = vxor.u32 %v2798, 2147483648
    %v2800 = vmul.f32 %v2799, 1.442695
    %v2801 = vpow.pop %v2800
    %v2802 = vadd.f32 %v2801, 1.0
    %v2803 = vrcp.pop %v2802
    %v2804 = vmul.f32 1.0, %v2803
    %v2805 = vadd.f32 %v2786, %v481
    %v2806 = vmul.f32 %v2797, %v2805
    %v2807 = vadd.f32 %v2549, %v2806
    %v2808 = vtanh.pop %v2807
    %v2809 = vsub.f32 %v2299, %v2808
    %v2810 = vmul.f32 %v2804, %v2809
    %v2811 = vadd.f32 %v2808, %v2810
    %v2812 = vpack.c.bf16 %v2811, %v2811
    %v2813 = vld [vmem:[#allocation8] sm:$0xff]
    %v2814 = vld [vmem:[#allocation8 + $0x8] sm:$0xf]
    %v2815 = vld [vmem:[#allocation8 + $0xc] sm:$0xff]
    %v2816 = vld [vmem:[#allocation8 + $0x14] sm:$0xf]
    %v2817 = vld [vmem:[#allocation8 + $0x18] sm:$0xff]
    %v2818 = vld [vmem:[#allocation8 + $0x20] sm:$0xf]
    %v2819 = vld [vmem:[#allocation8 + $0x24] sm:$0xff]
    %v2820 = vld [vmem:[#allocation8 + $0x2c] sm:$0xf]
    %v2821 = vld [vmem:[#allocation8 + $0x30] sm:$0xff]
    %v2822 = vld [vmem:[#allocation8 + $0x38] sm:$0xf]
    %v2823 = vld [vmem:[#allocation8 + $0x3c] sm:$0xff]
    %v2824 = vld [vmem:[#allocation8 + $0x44] sm:$0xf]
    %v2825 = vld [vmem:[#allocation8 + $0x48] sm:$0xff]
    %v2826 = vld [vmem:[#allocation8 + $0x50] sm:$0xf]
    %v2827 = vld [vmem:[#allocation8 + $0x54] sm:$0xff]
    %v2828 = vld [vmem:[#allocation8 + $0x5c] sm:$0xf]
    %v2829 = vld [vmem:[#allocation8 + $0x60] sm:$0xff]
    %v2830 = vld [vmem:[#allocation8 + $0x68] sm:$0xf]
    %v2831 = vld [vmem:[#allocation8 + $0x6c] sm:$0xff]
    %v2832 = vld [vmem:[#allocation8 + $0x74] sm:$0xf]
    %v2833 = vld [vmem:[#allocation8 + $0x78] sm:$0xff]
    %v2834 = vld [vmem:[#allocation8 + $0x80] sm:$0xf]
    %v2835 = vld [vmem:[#allocation8 + $0x84] sm:$0xff]
    %v2836 = vld [vmem:[#allocation8 + $0x8c] sm:$0xf]
    %v2837 = vld [vmem:[#allocation8 + $0x90] sm:$0xff]
    %v2838 = vld [vmem:[#allocation8 + $0x98] sm:$0xf]
    %v2839 = vld [vmem:[#allocation8 + $0x9c] sm:$0xff]
    %v2840 = vld [vmem:[#allocation8 + $0xa4] sm:$0xf]
    %v2841 = vld [vmem:[#allocation8 + $0xa8] sm:$0xff]
    %v2842 = vld [vmem:[#allocation8 + $0xb0] sm:$0xf]
    %v2843 = vld [vmem:[#allocation8 + $0xb4] sm:$0xff]
    %v2844 = vld [vmem:[#allocation8 + $0xbc] sm:$0xf]
    %v2877 = vunpack.c.l.b16 %v2813
    %v2878 = vunpack.c.h.b16 %v2813
    %v2879 = vunpack.c.l.b16 %v2814
    %v2880 = vunpack.c.l.b16 %v2815
    %v2881 = vunpack.c.h.b16 %v2815
    %v2882 = vunpack.c.l.b16 %v2816
    %v2883 = vunpack.c.l.b16 %v2817
    %v2884 = vunpack.c.h.b16 %v2817
    %v2885 = vunpack.c.l.b16 %v2818
    %v2886 = vunpack.c.l.b16 %v2819
    %v2887 = vunpack.c.h.b16 %v2819
    %v2888 = vunpack.c.l.b16 %v2820
    %v2889 = vunpack.c.l.b16 %v2821
    %v2890 = vunpack.c.h.b16 %v2821
    %v2891 = vunpack.c.l.b16 %v2822
    %v2892 = vunpack.c.l.b16 %v2823
    %v2893 = vunpack.c.h.b16 %v2823
    %v2894 = vunpack.c.l.b16 %v2824
    %v2895 = vunpack.c.l.b16 %v2825
    %v2896 = vunpack.c.h.b16 %v2825
    %v2897 = vunpack.c.l.b16 %v2826
    %v2898 = vunpack.c.l.b16 %v2827
    %v2899 = vunpack.c.h.b16 %v2827
    %v2900 = vunpack.c.l.b16 %v2828
    %v2901 = vunpack.c.l.b16 %v2829
    %v2902 = vunpack.c.h.b16 %v2829
    %v2903 = vunpack.c.l.b16 %v2830
    %v2904 = vunpack.c.l.b16 %v2831
    %v2905 = vunpack.c.h.b16 %v2831
    %v2906 = vunpack.c.l.b16 %v2832
    %v2907 = vunpack.c.l.b16 %v2833
    %v2908 = vunpack.c.h.b16 %v2833
    %v2909 = vunpack.c.l.b16 %v2834
    %v2910 = vunpack.c.l.b16 %v2835
    %v2911 = vunpack.c.h.b16 %v2835
    %v2912 = vunpack.c.l.b16 %v2836
    %v2913 = vunpack.c.l.b16 %v2837
    %v2914 = vunpack.c.h.b16 %v2837
    %v2915 = vunpack.c.l.b16 %v2838
    %v2916 = vunpack.c.l.b16 %v2839
    %v2917 = vunpack.c.h.b16 %v2839
    %v2918 = vunpack.c.l.b16 %v2840
    %v2919 = vunpack.c.l.b16 %v2841
    %v2920 = vunpack.c.h.b16 %v2841
    %v2921 = vunpack.c.l.b16 %v2842
    %v2922 = vunpack.c.l.b16 %v2843
    %v2923 = vunpack.c.h.b16 %v2843
    %v2924 = vunpack.c.l.b16 %v2844
    %v2925 = vpack.c.b16 %v2880, %v2877
    %v2926 = vpack.c.b16 %v2881, %v2878
    %v2927 = vpack.c.b16 %v2882, %v2879
    %v2928 = vpack.c.b16 %v2886, %v2883
    %v2929 = vpack.c.b16 %v2887, %v2884
    %v2930 = vpack.c.b16 %v2888, %v2885
    %v2931 = vpack.c.b16 %v2892, %v2889
    %v2932 = vpack.c.b16 %v2893, %v2890
    %v2933 = vpack.c.b16 %v2894, %v2891
    %v2934 = vpack.c.b16 %v2898, %v2895
    %v2935 = vpack.c.b16 %v2899, %v2896
    %v2936 = vpack.c.b16 %v2900, %v2897
    %v2937 = vpack.c.b16 %v2904, %v2901
    %v2938 = vpack.c.b16 %v2905, %v2902
    %v2939 = vpack.c.b16 %v2906, %v2903
    %v2940 = vpack.c.b16 %v2910, %v2907
    %v2941 = vpack.c.b16 %v2911, %v2908
    %v2942 = vpack.c.b16 %v2912, %v2909
    %v2943 = vpack.c.b16 %v2916, %v2913
    %v2944 = vpack.c.b16 %v2917, %v2914
    %v2945 = vpack.c.b16 %v2918, %v2915
    %v2946 = vpack.c.b16 %v2922, %v2919
    %v2947 = vpack.c.b16 %v2923, %v2920
    %v2948 = vpack.c.b16 %v2924, %v2921
    %2973 = vmatprep.subr.bf16.mxu0 %v2926
    %2974 = vmatpush1.bf16.msra.mxu0 %v2925
    %2975 = vmatprep.subr.bf16.mxu0 %v2929
    %2976 = vmatpush1.bf16.msra.mxu0 %v2928
    %2977 = vmatprep.subr.bf16.mxu0 %v2932
    %2978 = vmatpush1.bf16.msra.mxu0 %v2931
    %2979 = vmatprep.subr.bf16.mxu0 %v2935
    %2980 = vmatpush1.bf16.msra.mxu0 %v2934
    %2981 = vmatprep.subr.bf16.mxu0 %v2938
    %2982 = vmatpush1.bf16.msra.mxu0 %v2937
    %2983 = vmatprep.subr.bf16.mxu0 %v2941
    %2984 = vmatpush1.bf16.msra.mxu0 %v2940
    %2985 = vmatprep.subr.bf16.mxu0 %v2944
    %2986 = vmatpush1.bf16.msra.mxu0 %v2943
    %2987 = vmatprep.subr.bf16.mxu0 %v2947
    %2988 = vmatpush1.bf16.msra.mxu0 %v2946
    %2989 = vmatprep.subr.bf16.mxu0 0
    %2990 = vmatpush1.bf16.msra.mxu0 0
    %2991 = vmatprep.subr.bf16.mxu0 0
    %2992 = vmatpush1.bf16.msra.mxu0 0
    %2993 = vmatprep.subr.bf16.mxu0 0
    %2994 = vmatpush1.bf16.msra.mxu0 0
    %2995 = vmatprep.subr.bf16.mxu0 0
    %2996 = vmatpush1.bf16.msra.mxu0 0
    %2997 = vmatprep.subr.bf16.mxu0 0
    %2998 = vmatpush1.bf16.msra.mxu0 0
    %2999 = vmatprep.subr.bf16.mxu0 0
    %3000 = vmatpush1.bf16.msra.mxu0 0
    %3001 = vmatprep.subr.bf16.mxu0 0
    %3002 = vmatpush1.bf16.msra.mxu0 0
    %3003 = vmatprep.subr.bf16.mxu0 0
    %3004 = vmatpush1.bf16.msra.mxu0 0
    %3005 = vmatprep.mubr.bf16.mxu0 0
    %3006 = vmatmul.mubr.bf16.gmra.mrb[0].mxu0 %v2812
    %v3007 = vpop.f32.mrb[0].mxu0
    %v3008 = vadd.f32 %v488, %v3007
    %v3009 = vpop.f32.mrb[0].mxu0
    %v3010 = vadd.f32 %v492, %v3009
    %v3011 = vpop.f32.mrb[0].mxu0
    %v3012 = vpop.f32.mrb[0].mxu0
    %3013 = vdwg.mxu0
    %3014 = vmatprep.subr.bf16.mxu0 0
    %3015 = vmatpush1.bf16.msra.mxu0 %v2927
    %3016 = vmatprep.subr.bf16.mxu0 0
    %3017 = vmatpush1.bf16.msra.mxu0 %v2930
    %3018 = vmatprep.subr.bf16.mxu0 0
    %3019 = vmatpush1.bf16.msra.mxu0 %v2933
    %3020 = vmatprep.subr.bf16.mxu0 0
    %3021 = vmatpush1.bf16.msra.mxu0 %v2936
    %3022 = vmatprep.subr.bf16.mxu0 0
    %3023 = vmatpush1.bf16.msra.mxu0 %v2939
    %3024 = vmatprep.subr.bf16.mxu0 0
    %3025 = vmatpush1.bf16.msra.mxu0 %v2942
    %3026 = vmatprep.subr.bf16.mxu0 0
    %3027 = vmatpush1.bf16.msra.mxu0 %v2945
    %3028 = vmatprep.subr.bf16.mxu0 0
    %3029 = vmatpush1.bf16.msra.mxu0 %v2948
    %3030 = vmatprep.subr.bf16.mxu0 0
    %3031 = vmatpush1.bf16.msra.mxu0 0
    %3032 = vmatprep.subr.bf16.mxu0 0
    %3033 = vmatpush1.bf16.msra.mxu0 0
    %3034 = vmatprep.subr.bf16.mxu0 0
    %3035 = vmatpush1.bf16.msra.mxu0 0
    %3036 = vmatprep.subr.bf16.mxu0 0
    %3037 = vmatpush1.bf16.msra.mxu0 0
    %3038 = vmatprep.subr.bf16.mxu0 0
    %3039 = vmatpush1.bf16.msra.mxu0 0
    %3040 = vmatprep.subr.bf16.mxu0 0
    %3041 = vmatpush1.bf16.msra.mxu0 0
    %3042 = vmatprep.subr.bf16.mxu0 0
    %3043 = vmatpush1.bf16.msra.mxu0 0
    %3044 = vmatprep.subr.bf16.mxu0 0
    %3045 = vmatpush1.bf16.msra.mxu0 0
    %3046 = vmatprep.mubr.bf16.mxu0 0
    %3047 = vmatmul.mubr.bf16.gmra.mrb[0].mxu0 %v2812
    %v3048 = vpop.f32.mrb[0].mxu0
    %v3049 = vadd.f32 %v496, %v3048
    %v3050 = vpop.f32.mrb[0].mxu0
    %v3051 = vpop.f32.mrb[0].mxu0
    %v3052 = vpop.f32.mrb[0].mxu0
    %3053 = vdwg.mxu0
    %s3054 = scalar_lea.vmem [#allocation3], 96
    %3055 = vst [vmem:[%s3054] sm:$0xff] %v3008
    %3056 = vst [vmem:[%s3054 + $0x8] sm:$0xff] %v3010
    %3057 = vst [vmem:[%s3054 + $0x10] sm:$0xff] %v3049
    %s3058 = scalar_lea.vmem [#allocation2], 120
    %v3059 = vld [vmem:[%s3058] sm:$0xff]
    %v3060 = vld [vmem:[%s3058 + $0x8] sm:$0xff]
    %v3061 = vld [vmem:[%s3058 + $0x10] sm:$0xff]
    %v3062 = vld [vmem:[#allocation6] sm:$0xff]
    %v3063 = vld [vmem:[#allocation6 + $0x8] sm:$0xf]
    %v3064 = vld [vmem:[#allocation6 + $0xc] sm:$0xff]
    %v3065 = vld [vmem:[#allocation6 + $0x14] sm:$0xf]
    %v3066 = vld [vmem:[#allocation6 + $0x18] sm:$0xff]
    %v3067 = vld [vmem:[#allocation6 + $0x20] sm:$0xf]
    %v3068 = vld [vmem:[#allocation6 + $0x24] sm:$0xff]
    %v3069 = vld [vmem:[#allocation6 + $0x2c] sm:$0xf]
    %v3070 = vld [vmem:[#allocation6 + $0x30] sm:$0xff]
    %v3071 = vld [vmem:[#allocation6 + $0x38] sm:$0xf]
    %v3072 = vld [vmem:[#allocation6 + $0x3c] sm:$0xff]
    %v3073 = vld [vmem:[#allocation6 + $0x44] sm:$0xf]
    %v3074 = vld [vmem:[#allocation6 + $0x48] sm:$0xff]
    %v3075 = vld [vmem:[#allocation6 + $0x50] sm:$0xf]
    %v3076 = vld [vmem:[#allocation6 + $0x54] sm:$0xff]
    %v3077 = vld [vmem:[#allocation6 + $0x5c] sm:$0xf]
    %v3078 = vld [vmem:[#allocation6 + $0x60] sm:$0xff]
    %v3079 = vld [vmem:[#allocation6 + $0x68] sm:$0xf]
    %v3080 = vld [vmem:[#allocation6 + $0x6c] sm:$0xff]
    %v3081 = vld [vmem:[#allocation6 + $0x74] sm:$0xf]
    %v3082 = vld [vmem:[#allocation6 + $0x78] sm:$0xff]
    %v3083 = vld [vmem:[#allocation6 + $0x80] sm:$0xf]
    %v3084 = vld [vmem:[#allocation6 + $0x84] sm:$0xff]
    %v3085 = vld [vmem:[#allocation6 + $0x8c] sm:$0xf]
    %v3086 = vld [vmem:[#allocation6 + $0x90] sm:$0xff]
    %v3087 = vld [vmem:[#allocation6 + $0x98] sm:$0xf]
    %v3088 = vld [vmem:[#allocation6 + $0x9c] sm:$0xff]
    %v3089 = vld [vmem:[#allocation6 + $0xa4] sm:$0xf]
    %v3090 = vld [vmem:[#allocation6 + $0xa8] sm:$0xff]
    %v3091 = vld [vmem:[#allocation6 + $0xb0] sm:$0xf]
    %v3092 = vld [vmem:[#allocation6 + $0xb4] sm:$0xff]
    %v3093 = vld [vmem:[#allocation6 + $0xbc] sm:$0xf]
    %v3126 = vunpack.c.l.b16 %v3062
    %v3127 = vunpack.c.h.b16 %v3062
    %v3128 = vunpack.c.l.b16 %v3063
    %v3129 = vunpack.c.l.b16 %v3064
    %v3130 = vunpack.c.h.b16 %v3064
    %v3131 = vunpack.c.l.b16 %v3065
    %v3132 = vunpack.c.l.b16 %v3066
    %v3133 = vunpack.c.h.b16 %v3066
    %v3134 = vunpack.c.l.b16 %v3067
    %v3135 = vunpack.c.l.b16 %v3068
    %v3136 = vunpack.c.h.b16 %v3068
    %v3137 = vunpack.c.l.b16 %v3069
    %v3138 = vunpack.c.l.b16 %v3070
    %v3139 = vunpack.c.h.b16 %v3070
    %v3140 = vunpack.c.l.b16 %v3071
    %v3141 = vunpack.c.l.b16 %v3072
    %v3142 = vunpack.c.h.b16 %v3072
    %v3143 = vunpack.c.l.b16 %v3073
    %v3144 = vunpack.c.l.b16 %v3074
    %v3145 = vunpack.c.h.b16 %v3074
    %v3146 = vunpack.c.l.b16 %v3075
    %v3147 = vunpack.c.l.b16 %v3076
    %v3148 = vunpack.c.h.b16 %v3076
    %v3149 = vunpack.c.l.b16 %v3077
    %v3150 = vunpack.c.l.b16 %v3078
    %v3151 = vunpack.c.h.b16 %v3078
    %v3152 = vunpack.c.l.b16 %v3079
    %v3153 = vunpack.c.l.b16 %v3080
    %v3154 = vunpack.c.h.b16 %v3080
    %v3155 = vunpack.c.l.b16 %v3081
    %v3156 = vunpack.c.l.b16 %v3082
    %v3157 = vunpack.c.h.b16 %v3082
    %v3158 = vunpack.c.l.b16 %v3083
    %v3159 = vunpack.c.l.b16 %v3084
    %v3160 = vunpack.c.h.b16 %v3084
    %v3161 = vunpack.c.l.b16 %v3085
    %v3162 = vunpack.c.l.b16 %v3086
    %v3163 = vunpack.c.h.b16 %v3086
    %v3164 = vunpack.c.l.b16 %v3087
    %v3165 = vunpack.c.l.b16 %v3088
    %v3166 = vunpack.c.h.b16 %v3088
    %v3167 = vunpack.c.l.b16 %v3089
    %v3168 = vunpack.c.l.b16 %v3090
    %v3169 = vunpack.c.h.b16 %v3090
    %v3170 = vunpack.c.l.b16 %v3091
    %v3171 = vunpack.c.l.b16 %v3092
    %v3172 = vunpack.c.h.b16 %v3092
    %v3173 = vunpack.c.l.b16 %v3093
    %v3174 = vpack.c.b16 %v3129, %v3126
    %v3175 = vpack.c.b16 %v3130, %v3127
    %v3176 = vpack.c.b16 %v3131, %v3128
    %v3177 = vpack.c.b16 %v3135, %v3132
    %v3178 = vpack.c.b16 %v3136, %v3133
    %v3179 = vpack.c.b16 %v3137, %v3134
    %v3180 = vpack.c.b16 %v3141, %v3138
    %v3181 = vpack.c.b16 %v3142, %v3139
    %v3182 = vpack.c.b16 %v3143, %v3140
    %v3183 = vpack.c.b16 %v3147, %v3144
    %v3184 = vpack.c.b16 %v3148, %v3145
    %v3185 = vpack.c.b16 %v3149, %v3146
    %v3186 = vpack.c.b16 %v3153, %v3150
    %v3187 = vpack.c.b16 %v3154, %v3151
    %v3188 = vpack.c.b16 %v3155, %v3152
    %v3189 = vpack.c.b16 %v3159, %v3156
    %v3190 = vpack.c.b16 %v3160, %v3157
    %v3191 = vpack.c.b16 %v3161, %v3158
    %v3192 = vpack.c.b16 %v3165, %v3162
    %v3193 = vpack.c.b16 %v3166, %v3163
    %v3194 = vpack.c.b16 %v3167, %v3164
    %v3195 = vpack.c.b16 %v3171, %v3168
    %v3196 = vpack.c.b16 %v3172, %v3169
    %v3197 = vpack.c.b16 %v3173, %v3170
    %3222 = vmatprep.subr.bf16.mxu0 %v3175
    %3223 = vmatpush1.bf16.msra.mxu0 %v3174
    %3224 = vmatprep.subr.bf16.mxu0 %v3178
    %3225 = vmatpush1.bf16.msra.mxu0 %v3177
    %3226 = vmatprep.subr.bf16.mxu0 %v3181
    %3227 = vmatpush1.bf16.msra.mxu0 %v3180
    %3228 = vmatprep.subr.bf16.mxu0 %v3184
    %3229 = vmatpush1.bf16.msra.mxu0 %v3183
    %3230 = vmatprep.subr.bf16.mxu0 %v3187
    %3231 = vmatpush1.bf16.msra.mxu0 %v3186
    %3232 = vmatprep.subr.bf16.mxu0 %v3190
    %3233 = vmatpush1.bf16.msra.mxu0 %v3189
    %3234 = vmatprep.subr.bf16.mxu0 %v3193
    %3235 = vmatpush1.bf16.msra.mxu0 %v3192
    %3236 = vmatprep.subr.bf16.mxu0 %v3196
    %3237 = vmatpush1.bf16.msra.mxu0 %v3195
    %3238 = vmatprep.subr.bf16.mxu0 0
    %3239 = vmatpush1.bf16.msra.mxu0 0
    %3240 = vmatprep.subr.bf16.mxu0 0
    %3241 = vmatpush1.bf16.msra.mxu0 0
    %3242 = vmatprep.subr.bf16.mxu0 0
    %3243 = vmatpush1.bf16.msra.mxu0 0
    %3244 = vmatprep.subr.bf16.mxu0 0
    %3245 = vmatpush1.bf16.msra.mxu0 0
    %3246 = vmatprep.subr.bf16.mxu0 0
    %3247 = vmatpush1.bf16.msra.mxu0 0
    %3248 = vmatprep.subr.bf16.mxu0 0
    %3249 = vmatpush1.bf16.msra.mxu0 0
    %3250 = vmatprep.subr.bf16.mxu0 0
    %3251 = vmatpush1.bf16.msra.mxu0 0
    %3252 = vmatprep.subr.bf16.mxu0 0
    %3253 = vmatpush1.bf16.msra.mxu0 0
    %3254 = vmatprep.mubr.bf16.mxu0 0
    %3255 = vmatmul.mubr.bf16.gmra.mrb[0].mxu0 %v2812
    %v3256 = vpop.f32.mrb[0].mxu0
    %v3257 = vadd.f32 0.0, %v3256
    %v3258 = vpop.f32.mrb[0].mxu0
    %v3259 = vadd.f32 0.0, %v3258
    %v3260 = vpop.f32.mrb[0].mxu0
    %v3261 = vpop.f32.mrb[0].mxu0
    %3262 = vdwg.mxu0
    %3263 = vmatprep.subr.bf16.mxu0 0
    %3264 = vmatpush1.bf16.msra.mxu0 %v3176
    %3265 = vmatprep.subr.bf16.mxu0 0
    %3266 = vmatpush1.bf16.msra.mxu0 %v3179
    %3267 = vmatprep.subr.bf16.mxu0 0
    %3268 = vmatpush1.bf16.msra.mxu0 %v3182
    %3269 = vmatprep.subr.bf16.mxu0 0
    %3270 = vmatpush1.bf16.msra.mxu0 %v3185
    %3271 = vmatprep.subr.bf16.mxu0 0
    %3272 = vmatpush1.bf16.msra.mxu0 %v3188
    %3273 = vmatprep.subr.bf16.mxu0 0
    %3274 = vmatpush1.bf16.msra.mxu0 %v3191
    %3275 = vmatprep.subr.bf16.mxu0 0
    %3276 = vmatpush1.bf16.msra.mxu0 %v3194
    %3277 = vmatprep.subr.bf16.mxu0 0
    %3278 = vmatpush1.bf16.msra.mxu0 %v3197
    %3279 = vmatprep.subr.bf16.mxu0 0
    %3280 = vmatpush1.bf16.msra.mxu0 0
    %3281 = vmatprep.subr.bf16.mxu0 0
    %3282 = vmatpush1.bf16.msra.mxu0 0
    %3283 = vmatprep.subr.bf16.mxu0 0
    %3284 = vmatpush1.bf16.msra.mxu0 0
    %3285 = vmatprep.subr.bf16.mxu0 0
    %3286 = vmatpush1.bf16.msra.mxu0 0
    %3287 = vmatprep.subr.bf16.mxu0 0
    %3288 = vmatpush1.bf16.msra.mxu0 0
    %3289 = vmatprep.subr.bf16.mxu0 0
    %3290 = vmatpush1.bf16.msra.mxu0 0
    %3291 = vmatprep.subr.bf16.mxu0 0
    %3292 = vmatpush1.bf16.msra.mxu0 0
    %3293 = vmatprep.subr.bf16.mxu0 0
    %3294 = vmatpush1.bf16.msra.mxu0 0
    %3295 = vmatprep.mubr.bf16.mxu0 0
    %3296 = vmatmul.mubr.bf16.gmra.mrb[0].mxu0 %v2812
    %v3297 = vpop.f32.mrb[0].mxu0
    %v3298 = vadd.f32 0.0, %v3297
    %v3299 = vpop.f32.mrb[0].mxu0
    %v3300 = vpop.f32.mrb[0].mxu0
    %v3301 = vpop.f32.mrb[0].mxu0
    %3302 = vdwg.mxu0
    %v3303 = vadd.f32 %v3059, %v3257
    %v3304 = vxor.u32 %v3303, 2147483648
    %v3305 = vmul.f32 %v3304, 1.442695
    %v3306 = vpow.pop %v3305
    %v3307 = vadd.f32 %v3306, 1.0
    %v3308 = vrcp.pop %v3307
    %v3309 = vmul.f32 1.0, %v3308
    %v3310 = vadd.f32 %v3060, %v3259
    %v3311 = vxor.u32 %v3310, 2147483648
    %v3312 = vmul.f32 %v3311, 1.442695
    %v3313 = vpow.pop %v3312
    %v3314 = vadd.f32 %v3313, 1.0
    %v3315 = vrcp.pop %v3314
    %v3316 = vmul.f32 1.0, %v3315
    %v3317 = vadd.f32 %v3298, %v481
    %v3318 = vmul.f32 %v3309, %v3317
    %v3319 = vadd.f32 %v3061, %v3318
    %v3320 = vtanh.pop %v3319
    %v3321 = vsub.f32 %v2811, %v3320
    %v3322 = vmul.f32 %v3316, %v3321
    %v3323 = vadd.f32 %v3320, %v3322
    %v3324 = vpack.c.bf16 %v3323, %v3323
    %v3325 = vld [vmem:[#allocation8] sm:$0xff]
    %v3326 = vld [vmem:[#allocation8 + $0x8] sm:$0xf]
    %v3327 = vld [vmem:[#allocation8 + $0xc] sm:$0xff]
    %v3328 = vld [vmem:[#allocation8 + $0x14] sm:$0xf]
    %v3329 = vld [vmem:[#allocation8 + $0x18] sm:$0xff]
    %v3330 = vld [vmem:[#allocation8 + $0x20] sm:$0xf]
    %v3331 = vld [vmem:[#allocation8 + $0x24] sm:$0xff]
    %v3332 = vld [vmem:[#allocation8 + $0x2c] sm:$0xf]
    %v3333 = vld [vmem:[#allocation8 + $0x30] sm:$0xff]
    %v3334 = vld [vmem:[#allocation8 + $0x38] sm:$0xf]
    %v3335 = vld [vmem:[#allocation8 + $0x3c] sm:$0xff]
    %v3336 = vld [vmem:[#allocation8 + $0x44] sm:$0xf]
    %v3337 = vld [vmem:[#allocation8 + $0x48] sm:$0xff]
    %v3338 = vld [vmem:[#allocation8 + $0x50] sm:$0xf]
    %v3339 = vld [vmem:[#allocation8 + $0x54] sm:$0xff]
    %v3340 = vld [vmem:[#allocation8 + $0x5c] sm:$0xf]
    %v3341 = vld [vmem:[#allocation8 + $0x60] sm:$0xff]
    %v3342 = vld [vmem:[#allocation8 + $0x68] sm:$0xf]
    %v3343 = vld [vmem:[#allocation8 + $0x6c] sm:$0xff]
    %v3344 = vld [vmem:[#allocation8 + $0x74] sm:$0xf]
    %v3345 = vld [vmem:[#allocation8 + $0x78] sm:$0xff]
    %v3346 = vld [vmem:[#allocation8 + $0x80] sm:$0xf]
    %v3347 = vld [vmem:[#allocation8 + $0x84] sm:$0xff]
    %v3348 = vld [vmem:[#allocation8 + $0x8c] sm:$0xf]
    %v3349 = vld [vmem:[#allocation8 + $0x90] sm:$0xff]
    %v3350 = vld [vmem:[#allocation8 + $0x98] sm:$0xf]
    %v3351 = vld [vmem:[#allocation8 + $0x9c] sm:$0xff]
    %v3352 = vld [vmem:[#allocation8 + $0xa4] sm:$0xf]
    %v3353 = vld [vmem:[#allocation8 + $0xa8] sm:$0xff]
    %v3354 = vld [vmem:[#allocation8 + $0xb0] sm:$0xf]
    %v3355 = vld [vmem:[#allocation8 + $0xb4] sm:$0xff]
    %v3356 = vld [vmem:[#allocation8 + $0xbc] sm:$0xf]
    %v3389 = vunpack.c.l.b16 %v3325
    %v3390 = vunpack.c.h.b16 %v3325
    %v3391 = vunpack.c.l.b16 %v3326
    %v3392 = vunpack.c.l.b16 %v3327
    %v3393 = vunpack.c.h.b16 %v3327
    %v3394 = vunpack.c.l.b16 %v3328
    %v3395 = vunpack.c.l.b16 %v3329
    %v3396 = vunpack.c.h.b16 %v3329
    %v3397 = vunpack.c.l.b16 %v3330
    %v3398 = vunpack.c.l.b16 %v3331
    %v3399 = vunpack.c.h.b16 %v3331
    %v3400 = vunpack.c.l.b16 %v3332
    %v3401 = vunpack.c.l.b16 %v3333
    %v3402 = vunpack.c.h.b16 %v3333
    %v3403 = vunpack.c.l.b16 %v3334
    %v3404 = vunpack.c.l.b16 %v3335
    %v3405 = vunpack.c.h.b16 %v3335
    %v3406 = vunpack.c.l.b16 %v3336
    %v3407 = vunpack.c.l.b16 %v3337
    %v3408 = vunpack.c.h.b16 %v3337
    %v3409 = vunpack.c.l.b16 %v3338
    %v3410 = vunpack.c.l.b16 %v3339
    %v3411 = vunpack.c.h.b16 %v3339
    %v3412 = vunpack.c.l.b16 %v3340
    %v3413 = vunpack.c.l.b16 %v3341
    %v3414 = vunpack.c.h.b16 %v3341
    %v3415 = vunpack.c.l.b16 %v3342
    %v3416 = vunpack.c.l.b16 %v3343
    %v3417 = vunpack.c.h.b16 %v3343
    %v3418 = vunpack.c.l.b16 %v3344
    %v3419 = vunpack.c.l.b16 %v3345
    %v3420 = vunpack.c.h.b16 %v3345
    %v3421 = vunpack.c.l.b16 %v3346
    %v3422 = vunpack.c.l.b16 %v3347
    %v3423 = vunpack.c.h.b16 %v3347
    %v3424 = vunpack.c.l.b16 %v3348
    %v3425 = vunpack.c.l.b16 %v3349
    %v3426 = vunpack.c.h.b16 %v3349
    %v3427 = vunpack.c.l.b16 %v3350
    %v3428 = vunpack.c.l.b16 %v3351
    %v3429 = vunpack.c.h.b16 %v3351
    %v3430 = vunpack.c.l.b16 %v3352
    %v3431 = vunpack.c.l.b16 %v3353
    %v3432 = vunpack.c.h.b16 %v3353
    %v3433 = vunpack.c.l.b16 %v3354
    %v3434 = vunpack.c.l.b16 %v3355
    %v3435 = vunpack.c.h.b16 %v3355
    %v3436 = vunpack.c.l.b16 %v3356
    %v3437 = vpack.c.b16 %v3392, %v3389
    %v3438 = vpack.c.b16 %v3393, %v3390
    %v3439 = vpack.c.b16 %v3394, %v3391
    %v3440 = vpack.c.b16 %v3398, %v3395
    %v3441 = vpack.c.b16 %v3399, %v3396
    %v3442 = vpack.c.b16 %v3400, %v3397
    %v3443 = vpack.c.b16 %v3404, %v3401
    %v3444 = vpack.c.b16 %v3405, %v3402
    %v3445 = vpack.c.b16 %v3406, %v3403
    %v3446 = vpack.c.b16 %v3410, %v3407
    %v3447 = vpack.c.b16 %v3411, %v3408
    %v3448 = vpack.c.b16 %v3412, %v3409
    %v3449 = vpack.c.b16 %v3416, %v3413
    %v3450 = vpack.c.b16 %v3417, %v3414
    %v3451 = vpack.c.b16 %v3418, %v3415
    %v3452 = vpack.c.b16 %v3422, %v3419
    %v3453 = vpack.c.b16 %v3423, %v3420
    %v3454 = vpack.c.b16 %v3424, %v3421
    %v3455 = vpack.c.b16 %v3428, %v3425
    %v3456 = vpack.c.b16 %v3429, %v3426
    %v3457 = vpack.c.b16 %v3430, %v3427
    %v3458 = vpack.c.b16 %v3434, %v3431
    %v3459 = vpack.c.b16 %v3435, %v3432
    %v3460 = vpack.c.b16 %v3436, %v3433
    %3485 = vmatprep.subr.bf16.mxu0 %v3438
    %3486 = vmatpush1.bf16.msra.mxu0 %v3437
    %3487 = vmatprep.subr.bf16.mxu0 %v3441
    %3488 = vmatpush1.bf16.msra.mxu0 %v3440
    %3489 = vmatprep.subr.bf16.mxu0 %v3444
    %3490 = vmatpush1.bf16.msra.mxu0 %v3443
    %3491 = vmatprep.subr.bf16.mxu0 %v3447
    %3492 = vmatpush1.bf16.msra.mxu0 %v3446
    %3493 = vmatprep.subr.bf16.mxu0 %v3450
    %3494 = vmatpush1.bf16.msra.mxu0 %v3449
    %3495 = vmatprep.subr.bf16.mxu0 %v3453
    %3496 = vmatpush1.bf16.msra.mxu0 %v3452
    %3497 = vmatprep.subr.bf16.mxu0 %v3456
    %3498 = vmatpush1.bf16.msra.mxu0 %v3455
    %3499 = vmatprep.subr.bf16.mxu0 %v3459
    %3500 = vmatpush1.bf16.msra.mxu0 %v3458
    %3501 = vmatprep.subr.bf16.mxu0 0
    %3502 = vmatpush1.bf16.msra.mxu0 0
    %3503 = vmatprep.subr.bf16.mxu0 0
    %3504 = vmatpush1.bf16.msra.mxu0 0
    %3505 = vmatprep.subr.bf16.mxu0 0
    %3506 = vmatpush1.bf16.msra.mxu0 0
    %3507 = vmatprep.subr.bf16.mxu0 0
    %3508 = vmatpush1.bf16.msra.mxu0 0
    %3509 = vmatprep.subr.bf16.mxu0 0
    %3510 = vmatpush1.bf16.msra.mxu0 0
    %3511 = vmatprep.subr.bf16.mxu0 0
    %3512 = vmatpush1.bf16.msra.mxu0 0
    %3513 = vmatprep.subr.bf16.mxu0 0
    %3514 = vmatpush1.bf16.msra.mxu0 0
    %3515 = vmatprep.subr.bf16.mxu0 0
    %3516 = vmatpush1.bf16.msra.mxu0 0
    %3517 = vmatprep.mubr.bf16.mxu0 0
    %3518 = vmatmul.mubr.bf16.gmra.mrb[0].mxu0 %v3324
    %v3519 = vpop.f32.mrb[0].mxu0
    %v3520 = vadd.f32 %v488, %v3519
    %v3521 = vpop.f32.mrb[0].mxu0
    %v3522 = vadd.f32 %v492, %v3521
    %v3523 = vpop.f32.mrb[0].mxu0
    %v3524 = vpop.f32.mrb[0].mxu0
    %3525 = vdwg.mxu0
    %3526 = vmatprep.subr.bf16.mxu0 0
    %3527 = vmatpush1.bf16.msra.mxu0 %v3439
    %3528 = vmatprep.subr.bf16.mxu0 0
    %3529 = vmatpush1.bf16.msra.mxu0 %v3442
    %3530 = vmatprep.subr.bf16.mxu0 0
    %3531 = vmatpush1.bf16.msra.mxu0 %v3445
    %3532 = vmatprep.subr.bf16.mxu0 0
    %3533 = vmatpush1.bf16.msra.mxu0 %v3448
    %3534 = vmatprep.subr.bf16.mxu0 0
    %3535 = vmatpush1.bf16.msra.mxu0 %v3451
    %3536 = vmatprep.subr.bf16.mxu0 0
    %3537 = vmatpush1.bf16.msra.mxu0 %v3454
    %3538 = vmatprep.subr.bf16.mxu0 0
    %3539 = vmatpush1.bf16.msra.mxu0 %v3457
    %3540 = vmatprep.subr.bf16.mxu0 0
    %3541 = vmatpush1.bf16.msra.mxu0 %v3460
    %3542 = vmatprep.subr.bf16.mxu0 0
    %3543 = vmatpush1.bf16.msra.mxu0 0
    %3544 = vmatprep.subr.bf16.mxu0 0
    %3545 = vmatpush1.bf16.msra.mxu0 0
    %3546 = vmatprep.subr.bf16.mxu0 0
    %3547 = vmatpush1.bf16.msra.mxu0 0
    %3548 = vmatprep.subr.bf16.mxu0 0
    %3549 = vmatpush1.bf16.msra.mxu0 0
    %3550 = vmatprep.subr.bf16.mxu0 0
    %3551 = vmatpush1.bf16.msra.mxu0 0
    %3552 = vmatprep.subr.bf16.mxu0 0
    %3553 = vmatpush1.bf16.msra.mxu0 0
    %3554 = vmatprep.subr.bf16.mxu0 0
    %3555 = vmatpush1.bf16.msra.mxu0 0
    %3556 = vmatprep.subr.bf16.mxu0 0
    %3557 = vmatpush1.bf16.msra.mxu0 0
    %3558 = vmatprep.mubr.bf16.mxu0 0
    %3559 = vmatmul.mubr.bf16.gmra.mrb[0].mxu0 %v3324
    %v3560 = vpop.f32.mrb[0].mxu0
    %v3561 = vadd.f32 %v496, %v3560
    %v3562 = vpop.f32.mrb[0].mxu0
    %v3563 = vpop.f32.mrb[0].mxu0
    %v3564 = vpop.f32.mrb[0].mxu0
    %3565 = vdwg.mxu0
    %s3566 = scalar_lea.vmem [#allocation3], 120
    %3567 = vst [vmem:[%s3566] sm:$0xff] %v3520
    %3568 = vst [vmem:[%s3566 + $0x8] sm:$0xff] %v3522
    %3569 = vst [vmem:[%s3566 + $0x10] sm:$0xff] %v3561
    %s3570 = scalar_lea.vmem [#allocation2], 144
    %v3571 = vld [vmem:[%s3570] sm:$0xff]
    %v3572 = vld [vmem:[%s3570 + $0x8] sm:$0xff]
    %v3573 = vld [vmem:[%s3570 + $0x10] sm:$0xff]
    %v3574 = vld [vmem:[#allocation6] sm:$0xff]
    %v3575 = vld [vmem:[#allocation6 + $0x8] sm:$0xf]
    %v3576 = vld [vmem:[#allocation6 + $0xc] sm:$0xff]
    %v3577 = vld [vmem:[#allocation6 + $0x14] sm:$0xf]
    %v3578 = vld [vmem:[#allocation6 + $0x18] sm:$0xff]
    %v3579 = vld [vmem:[#allocation6 + $0x20] sm:$0xf]
    %v3580 = vld [vmem:[#allocation6 + $0x24] sm:$0xff]
    %v3581 = vld [vmem:[#allocation6 + $0x2c] sm:$0xf]
    %v3582 = vld [vmem:[#allocation6 + $0x30] sm:$0xff]
    %v3583 = vld [vmem:[#allocation6 + $0x38] sm:$0xf]
    %v3584 = vld [vmem:[#allocation6 + $0x3c] sm:$0xff]
    %v3585 = vld [vmem:[#allocation6 + $0x44] sm:$0xf]
    %v3586 = vld [vmem:[#allocation6 + $0x48] sm:$0xff]
    %v3587 = vld [vmem:[#allocation6 + $0x50] sm:$0xf]
    %v3588 = vld [vmem:[#allocation6 + $0x54] sm:$0xff]
    %v3589 = vld [vmem:[#allocation6 + $0x5c] sm:$0xf]
    %v3590 = vld [vmem:[#allocation6 + $0x60] sm:$0xff]
    %v3591 = vld [vmem:[#allocation6 + $0x68] sm:$0xf]
    %v3592 = vld [vmem:[#allocation6 + $0x6c] sm:$0xff]
    %v3593 = vld [vmem:[#allocation6 + $0x74] sm:$0xf]
    %v3594 = vld [vmem:[#allocation6 + $0x78] sm:$0xff]
    %v3595 = vld [vmem:[#allocation6 + $0x80] sm:$0xf]
    %v3596 = vld [vmem:[#allocation6 + $0x84] sm:$0xff]
    %v3597 = vld [vmem:[#allocation6 + $0x8c] sm:$0xf]
    %v3598 = vld [vmem:[#allocation6 + $0x90] sm:$0xff]
    %v3599 = vld [vmem:[#allocation6 + $0x98] sm:$0xf]
    %v3600 = vld [vmem:[#allocation6 + $0x9c] sm:$0xff]
    %v3601 = vld [vmem:[#allocation6 + $0xa4] sm:$0xf]
    %v3602 = vld [vmem:[#allocation6 + $0xa8] sm:$0xff]
    %v3603 = vld [vmem:[#allocation6 + $0xb0] sm:$0xf]
    %v3604 = vld [vmem:[#allocation6 + $0xb4] sm:$0xff]
    %v3605 = vld [vmem:[#allocation6 + $0xbc] sm:$0xf]
    %v3638 = vunpack.c.l.b16 %v3574
    %v3639 = vunpack.c.h.b16 %v3574
    %v3640 = vunpack.c.l.b16 %v3575
    %v3641 = vunpack.c.l.b16 %v3576
    %v3642 = vunpack.c.h.b16 %v3576
    %v3643 = vunpack.c.l.b16 %v3577
    %v3644 = vunpack.c.l.b16 %v3578
    %v3645 = vunpack.c.h.b16 %v3578
    %v3646 = vunpack.c.l.b16 %v3579
    %v3647 = vunpack.c.l.b16 %v3580
    %v3648 = vunpack.c.h.b16 %v3580
    %v3649 = vunpack.c.l.b16 %v3581
    %v3650 = vunpack.c.l.b16 %v3582
    %v3651 = vunpack.c.h.b16 %v3582
    %v3652 = vunpack.c.l.b16 %v3583
    %v3653 = vunpack.c.l.b16 %v3584
    %v3654 = vunpack.c.h.b16 %v3584
    %v3655 = vunpack.c.l.b16 %v3585
    %v3656 = vunpack.c.l.b16 %v3586
    %v3657 = vunpack.c.h.b16 %v3586
    %v3658 = vunpack.c.l.b16 %v3587
    %v3659 = vunpack.c.l.b16 %v3588
    %v3660 = vunpack.c.h.b16 %v3588
    %v3661 = vunpack.c.l.b16 %v3589
    %v3662 = vunpack.c.l.b16 %v3590
    %v3663 = vunpack.c.h.b16 %v3590
    %v3664 = vunpack.c.l.b16 %v3591
    %v3665 = vunpack.c.l.b16 %v3592
    %v3666 = vunpack.c.h.b16 %v3592
    %v3667 = vunpack.c.l.b16 %v3593
    %v3668 = vunpack.c.l.b16 %v3594
    %v3669 = vunpack.c.h.b16 %v3594
    %v3670 = vunpack.c.l.b16 %v3595
    %v3671 = vunpack.c.l.b16 %v3596
    %v3672 = vunpack.c.h.b16 %v3596
    %v3673 = vunpack.c.l.b16 %v3597
    %v3674 = vunpack.c.l.b16 %v3598
    %v3675 = vunpack.c.h.b16 %v3598
    %v3676 = vunpack.c.l.b16 %v3599
    %v3677 = vunpack.c.l.b16 %v3600
    %v3678 = vunpack.c.h.b16 %v3600
    %v3679 = vunpack.c.l.b16 %v3601
    %v3680 = vunpack.c.l.b16 %v3602
    %v3681 = vunpack.c.h.b16 %v3602
    %v3682 = vunpack.c.l.b16 %v3603
    %v3683 = vunpack.c.l.b16 %v3604
    %v3684 = vunpack.c.h.b16 %v3604
    %v3685 = vunpack.c.l.b16 %v3605
    %v3686 = vpack.c.b16 %v3641, %v3638
    %v3687 = vpack.c.b16 %v3642, %v3639
    %v3688 = vpack.c.b16 %v3643, %v3640
    %v3689 = vpack.c.b16 %v3647, %v3644
    %v3690 = vpack.c.b16 %v3648, %v3645
    %v3691 = vpack.c.b16 %v3649, %v3646
    %v3692 = vpack.c.b16 %v3653, %v3650
    %v3693 = vpack.c.b16 %v3654, %v3651
    %v3694 = vpack.c.b16 %v3655, %v3652
    %v3695 = vpack.c.b16 %v3659, %v3656
    %v3696 = vpack.c.b16 %v3660, %v3657
    %v3697 = vpack.c.b16 %v3661, %v3658
    %v3698 = vpack.c.b16 %v3665, %v3662
    %v3699 = vpack.c.b16 %v3666, %v3663
    %v3700 = vpack.c.b16 %v3667, %v3664
    %v3701 = vpack.c.b16 %v3671, %v3668
    %v3702 = vpack.c.b16 %v3672, %v3669
    %v3703 = vpack.c.b16 %v3673, %v3670
    %v3704 = vpack.c.b16 %v3677, %v3674
    %v3705 = vpack.c.b16 %v3678, %v3675
    %v3706 = vpack.c.b16 %v3679, %v3676
    %v3707 = vpack.c.b16 %v3683, %v3680
    %v3708 = vpack.c.b16 %v3684, %v3681
    %v3709 = vpack.c.b16 %v3685, %v3682
    %3734 = vmatprep.subr.bf16.mxu0 %v3687
    %3735 = vmatpush1.bf16.msra.mxu0 %v3686
    %3736 = vmatprep.subr.bf16.mxu0 %v3690
    %3737 = vmatpush1.bf16.msra.mxu0 %v3689
    %3738 = vmatprep.subr.bf16.mxu0 %v3693
    %3739 = vmatpush1.bf16.msra.mxu0 %v3692
    %3740 = vmatprep.subr.bf16.mxu0 %v3696
    %3741 = vmatpush1.bf16.msra.mxu0 %v3695
    %3742 = vmatprep.subr.bf16.mxu0 %v3699
    %3743 = vmatpush1.bf16.msra.mxu0 %v3698
    %3744 = vmatprep.subr.bf16.mxu0 %v3702
    %3745 = vmatpush1.bf16.msra.mxu0 %v3701
    %3746 = vmatprep.subr.bf16.mxu0 %v3705
    %3747 = vmatpush1.bf16.msra.mxu0 %v3704
    %3748 = vmatprep.subr.bf16.mxu0 %v3708
    %3749 = vmatpush1.bf16.msra.mxu0 %v3707
    %3750 = vmatprep.subr.bf16.mxu0 0
    %3751 = vmatpush1.bf16.msra.mxu0 0
    %3752 = vmatprep.subr.bf16.mxu0 0
    %3753 = vmatpush1.bf16.msra.mxu0 0
    %3754 = vmatprep.subr.bf16.mxu0 0
    %3755 = vmatpush1.bf16.msra.mxu0 0
    %3756 = vmatprep.subr.bf16.mxu0 0
    %3757 = vmatpush1.bf16.msra.mxu0 0
    %3758 = vmatprep.subr.bf16.mxu0 0
    %3759 = vmatpush1.bf16.msra.mxu0 0
    %3760 = vmatprep.subr.bf16.mxu0 0
    %3761 = vmatpush1.bf16.msra.mxu0 0
    %3762 = vmatprep.subr.bf16.mxu0 0
    %3763 = vmatpush1.bf16.msra.mxu0 0
    %3764 = vmatprep.subr.bf16.mxu0 0
    %3765 = vmatpush1.bf16.msra.mxu0 0
    %3766 = vmatprep.mubr.bf16.mxu0 0
    %3767 = vmatmul.mubr.bf16.gmra.mrb[0].mxu0 %v3324
    %v3768 = vpop.f32.mrb[0].mxu0
    %v3769 = vadd.f32 0.0, %v3768
    %v3770 = vpop.f32.mrb[0].mxu0
    %v3771 = vadd.f32 0.0, %v3770
    %v3772 = vpop.f32.mrb[0].mxu0
    %v3773 = vpop.f32.mrb[0].mxu0
    %3774 = vdwg.mxu0
    %3775 = vmatprep.subr.bf16.mxu0 0
    %3776 = vmatpush1.bf16.msra.mxu0 %v3688
    %3777 = vmatprep.subr.bf16.mxu0 0
    %3778 = vmatpush1.bf16.msra.mxu0 %v3691
    %3779 = vmatprep.subr.bf16.mxu0 0
    %3780 = vmatpush1.bf16.msra.mxu0 %v3694
    %3781 = vmatprep.subr.bf16.mxu0 0
    %3782 = vmatpush1.bf16.msra.mxu0 %v3697
    %3783 = vmatprep.subr.bf16.mxu0 0
    %3784 = vmatpush1.bf16.msra.mxu0 %v3700
    %3785 = vmatprep.subr.bf16.mxu0 0
    %3786 = vmatpush1.bf16.msra.mxu0 %v3703
    %3787 = vmatprep.subr.bf16.mxu0 0
    %3788 = vmatpush1.bf16.msra.mxu0 %v3706
    %3789 = vmatprep.subr.bf16.mxu0 0
    %3790 = vmatpush1.bf16.msra.mxu0 %v3709
    %3791 = vmatprep.subr.bf16.mxu0 0
    %3792 = vmatpush1.bf16.msra.mxu0 0
    %3793 = vmatprep.subr.bf16.mxu0 0
    %3794 = vmatpush1.bf16.msra.mxu0 0
    %3795 = vmatprep.subr.bf16.mxu0 0
    %3796 = vmatpush1.bf16.msra.mxu0 0
    %3797 = vmatprep.subr.bf16.mxu0 0
    %3798 = vmatpush1.bf16.msra.mxu0 0
    %3799 = vmatprep.subr.bf16.mxu0 0
    %3800 = vmatpush1.bf16.msra.mxu0 0
    %3801 = vmatprep.subr.bf16.mxu0 0
    %3802 = vmatpush1.bf16.msra.mxu0 0
    %3803 = vmatprep.subr.bf16.mxu0 0
    %3804 = vmatpush1.bf16.msra.mxu0 0
    %3805 = vmatprep.subr.bf16.mxu0 0
    %3806 = vmatpush1.bf16.msra.mxu0 0
    %3807 = vmatprep.mubr.bf16.mxu0 0
    %3808 = vmatmul.mubr.bf16.gmra.mrb[0].mxu0 %v3324
    %v3809 = vpop.f32.mrb[0].mxu0
    %v3810 = vadd.f32 0.0, %v3809
    %v3811 = vpop.f32.mrb[0].mxu0
    %v3812 = vpop.f32.mrb[0].mxu0
    %v3813 = vpop.f32.mrb[0].mxu0
    %3814 = vdwg.mxu0
    %v3815 = vadd.f32 %v3571, %v3769
    %v3816 = vxor.u32 %v3815, 2147483648
    %v3817 = vmul.f32 %v3816, 1.442695
    %v3818 = vpow.pop %v3817
    %v3819 = vadd.f32 %v3818, 1.0
    %v3820 = vrcp.pop %v3819
    %v3821 = vmul.f32 1.0, %v3820
    %v3822 = vadd.f32 %v3572, %v3771
    %v3823 = vxor.u32 %v3822, 2147483648
    %v3824 = vmul.f32 %v3823, 1.442695
    %v3825 = vpow.pop %v3824
    %v3826 = vadd.f32 %v3825, 1.0
    %v3827 = vrcp.pop %v3826
    %v3828 = vmul.f32 1.0, %v3827
    %v3829 = vadd.f32 %v3810, %v481
    %v3830 = vmul.f32 %v3821, %v3829
    %v3831 = vadd.f32 %v3573, %v3830
    %v3832 = vtanh.pop %v3831
    %v3833 = vsub.f32 %v3323, %v3832
    %v3834 = vmul.f32 %v3828, %v3833
    %v3835 = vadd.f32 %v3832, %v3834
    %v3836 = vpack.c.bf16 %v3835, %v3835
    %v3837 = vld [vmem:[#allocation8] sm:$0xff]
    %v3838 = vld [vmem:[#allocation8 + $0x8] sm:$0xf]
    %v3839 = vld [vmem:[#allocation8 + $0xc] sm:$0xff]
    %v3840 = vld [vmem:[#allocation8 + $0x14] sm:$0xf]
    %v3841 = vld [vmem:[#allocation8 + $0x18] sm:$0xff]
    %v3842 = vld [vmem:[#allocation8 + $0x20] sm:$0xf]
    %v3843 = vld [vmem:[#allocation8 + $0x24] sm:$0xff]
    %v3844 = vld [vmem:[#allocation8 + $0x2c] sm:$0xf]
    %v3845 = vld [vmem:[#allocation8 + $0x30] sm:$0xff]
    %v3846 = vld [vmem:[#allocation8 + $0x38] sm:$0xf]
    %v3847 = vld [vmem:[#allocation8 + $0x3c] sm:$0xff]
    %v3848 = vld [vmem:[#allocation8 + $0x44] sm:$0xf]
    %v3849 = vld [vmem:[#allocation8 + $0x48] sm:$0xff]
    %v3850 = vld [vmem:[#allocation8 + $0x50] sm:$0xf]
    %v3851 = vld [vmem:[#allocation8 + $0x54] sm:$0xff]
    %v3852 = vld [vmem:[#allocation8 + $0x5c] sm:$0xf]
    %v3853 = vld [vmem:[#allocation8 + $0x60] sm:$0xff]
    %v3854 = vld [vmem:[#allocation8 + $0x68] sm:$0xf]
    %v3855 = vld [vmem:[#allocation8 + $0x6c] sm:$0xff]
    %v3856 = vld [vmem:[#allocation8 + $0x74] sm:$0xf]
    %v3857 = vld [vmem:[#allocation8 + $0x78] sm:$0xff]
    %v3858 = vld [vmem:[#allocation8 + $0x80] sm:$0xf]
    %v3859 = vld [vmem:[#allocation8 + $0x84] sm:$0xff]
    %v3860 = vld [vmem:[#allocation8 + $0x8c] sm:$0xf]
    %v3861 = vld [vmem:[#allocation8 + $0x90] sm:$0xff]
    %v3862 = vld [vmem:[#allocation8 + $0x98] sm:$0xf]
    %v3863 = vld [vmem:[#allocation8 + $0x9c] sm:$0xff]
    %v3864 = vld [vmem:[#allocation8 + $0xa4] sm:$0xf]
    %v3865 = vld [vmem:[#allocation8 + $0xa8] sm:$0xff]
    %v3866 = vld [vmem:[#allocation8 + $0xb0] sm:$0xf]
    %v3867 = vld [vmem:[#allocation8 + $0xb4] sm:$0xff]
    %v3868 = vld [vmem:[#allocation8 + $0xbc] sm:$0xf]
    %v3901 = vunpack.c.l.b16 %v3837
    %v3902 = vunpack.c.h.b16 %v3837
    %v3903 = vunpack.c.l.b16 %v3838
    %v3904 = vunpack.c.l.b16 %v3839
    %v3905 = vunpack.c.h.b16 %v3839
    %v3906 = vunpack.c.l.b16 %v3840
    %v3907 = vunpack.c.l.b16 %v3841
    %v3908 = vunpack.c.h.b16 %v3841
    %v3909 = vunpack.c.l.b16 %v3842
    %v3910 = vunpack.c.l.b16 %v3843
    %v3911 = vunpack.c.h.b16 %v3843
    %v3912 = vunpack.c.l.b16 %v3844
    %v3913 = vunpack.c.l.b16 %v3845
    %v3914 = vunpack.c.h.b16 %v3845
    %v3915 = vunpack.c.l.b16 %v3846
    %v3916 = vunpack.c.l.b16 %v3847
    %v3917 = vunpack.c.h.b16 %v3847
    %v3918 = vunpack.c.l.b16 %v3848
    %v3919 = vunpack.c.l.b16 %v3849
    %v3920 = vunpack.c.h.b16 %v3849
    %v3921 = vunpack.c.l.b16 %v3850
    %v3922 = vunpack.c.l.b16 %v3851
    %v3923 = vunpack.c.h.b16 %v3851
    %v3924 = vunpack.c.l.b16 %v3852
    %v3925 = vunpack.c.l.b16 %v3853
    %v3926 = vunpack.c.h.b16 %v3853
    %v3927 = vunpack.c.l.b16 %v3854
    %v3928 = vunpack.c.l.b16 %v3855
    %v3929 = vunpack.c.h.b16 %v3855
    %v3930 = vunpack.c.l.b16 %v3856
    %v3931 = vunpack.c.l.b16 %v3857
    %v3932 = vunpack.c.h.b16 %v3857
    %v3933 = vunpack.c.l.b16 %v3858
    %v3934 = vunpack.c.l.b16 %v3859
    %v3935 = vunpack.c.h.b16 %v3859
    %v3936 = vunpack.c.l.b16 %v3860
    %v3937 = vunpack.c.l.b16 %v3861
    %v3938 = vunpack.c.h.b16 %v3861
    %v3939 = vunpack.c.l.b16 %v3862
    %v3940 = vunpack.c.l.b16 %v3863
    %v3941 = vunpack.c.h.b16 %v3863
    %v3942 = vunpack.c.l.b16 %v3864
    %v3943 = vunpack.c.l.b16 %v3865
    %v3944 = vunpack.c.h.b16 %v3865
    %v3945 = vunpack.c.l.b16 %v3866
    %v3946 = vunpack.c.l.b16 %v3867
    %v3947 = vunpack.c.h.b16 %v3867
    %v3948 = vunpack.c.l.b16 %v3868
    %v3949 = vpack.c.b16 %v3904, %v3901
    %v3950 = vpack.c.b16 %v3905, %v3902
    %v3951 = vpack.c.b16 %v3906, %v3903
    %v3952 = vpack.c.b16 %v3910, %v3907
    %v3953 = vpack.c.b16 %v3911, %v3908
    %v3954 = vpack.c.b16 %v3912, %v3909
    %v3955 = vpack.c.b16 %v3916, %v3913
    %v3956 = vpack.c.b16 %v3917, %v3914
    %v3957 = vpack.c.b16 %v3918, %v3915
    %v3958 = vpack.c.b16 %v3922, %v3919
    %v3959 = vpack.c.b16 %v3923, %v3920
    %v3960 = vpack.c.b16 %v3924, %v3921
    %v3961 = vpack.c.b16 %v3928, %v3925
    %v3962 = vpack.c.b16 %v3929, %v3926
    %v3963 = vpack.c.b16 %v3930, %v3927
    %v3964 = vpack.c.b16 %v3934, %v3931
    %v3965 = vpack.c.b16 %v3935, %v3932
    %v3966 = vpack.c.b16 %v3936, %v3933
    %v3967 = vpack.c.b16 %v3940, %v3937
    %v3968 = vpack.c.b16 %v3941, %v3938
    %v3969 = vpack.c.b16 %v3942, %v3939
    %v3970 = vpack.c.b16 %v3946, %v3943
    %v3971 = vpack.c.b16 %v3947, %v3944
    %v3972 = vpack.c.b16 %v3948, %v3945
    %3997 = vmatprep.subr.bf16.mxu0 %v3950
    %3998 = vmatpush1.bf16.msra.mxu0 %v3949
    %3999 = vmatprep.subr.bf16.mxu0 %v3953
    %4000 = vmatpush1.bf16.msra.mxu0 %v3952
    %4001 = vmatprep.subr.bf16.mxu0 %v3956
    %4002 = vmatpush1.bf16.msra.mxu0 %v3955
    %4003 = vmatprep.subr.bf16.mxu0 %v3959
    %4004 = vmatpush1.bf16.msra.mxu0 %v3958
    %4005 = vmatprep.subr.bf16.mxu0 %v3962
    %4006 = vmatpush1.bf16.msra.mxu0 %v3961
    %4007 = vmatprep.subr.bf16.mxu0 %v3965
    %4008 = vmatpush1.bf16.msra.mxu0 %v3964
    %4009 = vmatprep.subr.bf16.mxu0 %v3968
    %4010 = vmatpush1.bf16.msra.mxu0 %v3967
    %4011 = vmatprep.subr.bf16.mxu0 %v3971
    %4012 = vmatpush1.bf16.msra.mxu0 %v3970
    %4013 = vmatprep.subr.bf16.mxu0 0
    %4014 = vmatpush1.bf16.msra.mxu0 0
    %4015 = vmatprep.subr.bf16.mxu0 0
    %4016 = vmatpush1.bf16.msra.mxu0 0
    %4017 = vmatprep.subr.bf16.mxu0 0
    %4018 = vmatpush1.bf16.msra.mxu0 0
    %4019 = vmatprep.subr.bf16.mxu0 0
    %4020 = vmatpush1.bf16.msra.mxu0 0
    %4021 = vmatprep.subr.bf16.mxu0 0
    %4022 = vmatpush1.bf16.msra.mxu0 0
    %4023 = vmatprep.subr.bf16.mxu0 0
    %4024 = vmatpush1.bf16.msra.mxu0 0
    %4025 = vmatprep.subr.bf16.mxu0 0
    %4026 = vmatpush1.bf16.msra.mxu0 0
    %4027 = vmatprep.subr.bf16.mxu0 0
    %4028 = vmatpush1.bf16.msra.mxu0 0
    %4029 = vmatprep.mubr.bf16.mxu0 0
    %4030 = vmatmul.mubr.bf16.gmra.mrb[0].mxu0 %v3836
    %v4031 = vpop.f32.mrb[0].mxu0
    %v4032 = vadd.f32 %v488, %v4031
    %v4033 = vpop.f32.mrb[0].mxu0
    %v4034 = vadd.f32 %v492, %v4033
    %v4035 = vpop.f32.mrb[0].mxu0
    %v4036 = vpop.f32.mrb[0].mxu0
    %4037 = vdwg.mxu0
    %4038 = vmatprep.subr.bf16.mxu0 0
    %4039 = vmatpush1.bf16.msra.mxu0 %v3951
    %4040 = vmatprep.subr.bf16.mxu0 0
    %4041 = vmatpush1.bf16.msra.mxu0 %v3954
    %4042 = vmatprep.subr.bf16.mxu0 0
    %4043 = vmatpush1.bf16.msra.mxu0 %v3957
    %4044 = vmatprep.subr.bf16.mxu0 0
    %4045 = vmatpush1.bf16.msra.mxu0 %v3960
    %4046 = vmatprep.subr.bf16.mxu0 0
    %4047 = vmatpush1.bf16.msra.mxu0 %v3963
    %4048 = vmatprep.subr.bf16.mxu0 0
    %4049 = vmatpush1.bf16.msra.mxu0 %v3966
    %4050 = vmatprep.subr.bf16.mxu0 0
    %4051 = vmatpush1.bf16.msra.mxu0 %v3969
    %4052 = vmatprep.subr.bf16.mxu0 0
    %4053 = vmatpush1.bf16.msra.mxu0 %v3972
    %4054 = vmatprep.subr.bf16.mxu0 0
    %4055 = vmatpush1.bf16.msra.mxu0 0
    %4056 = vmatprep.subr.bf16.mxu0 0
    %4057 = vmatpush1.bf16.msra.mxu0 0
    %4058 = vmatprep.subr.bf16.mxu0 0
    %4059 = vmatpush1.bf16.msra.mxu0 0
    %4060 = vmatprep.subr.bf16.mxu0 0
    %4061 = vmatpush1.bf16.msra.mxu0 0
    %4062 = vmatprep.subr.bf16.mxu0 0
    %4063 = vmatpush1.bf16.msra.mxu0 0
    %4064 = vmatprep.subr.bf16.mxu0 0
    %4065 = vmatpush1.bf16.msra.mxu0 0
    %4066 = vmatprep.subr.bf16.mxu0 0
    %4067 = vmatpush1.bf16.msra.mxu0 0
    %4068 = vmatprep.subr.bf16.mxu0 0
    %4069 = vmatpush1.bf16.msra.mxu0 0
    %4070 = vmatprep.mubr.bf16.mxu0 0
    %4071 = vmatmul.mubr.bf16.gmra.mrb[0].mxu0 %v3836
    %v4072 = vpop.f32.mrb[0].mxu0
    %v4073 = vadd.f32 %v496, %v4072
    %v4074 = vpop.f32.mrb[0].mxu0
    %v4075 = vpop.f32.mrb[0].mxu0
    %v4076 = vpop.f32.mrb[0].mxu0
    %4077 = vdwg.mxu0
    %s4078 = scalar_lea.vmem [#allocation3], 144
    %4079 = vst [vmem:[%s4078] sm:$0xff] %v4032
    %4080 = vst [vmem:[%s4078 + $0x8] sm:$0xff] %v4034
    %4081 = vst [vmem:[%s4078 + $0x10] sm:$0xff] %v4073
    %s4082 = scalar_lea.vmem [#allocation2], 168
    %v4083 = vld [vmem:[%s4082] sm:$0xff]
    %v4084 = vld [vmem:[%s4082 + $0x8] sm:$0xff]
    %v4085 = vld [vmem:[%s4082 + $0x10] sm:$0xff]
    %v4086 = vld [vmem:[#allocation6] sm:$0xff]
    %v4087 = vld [vmem:[#allocation6 + $0x8] sm:$0xf]
    %v4088 = vld [vmem:[#allocation6 + $0xc] sm:$0xff]
    %v4089 = vld [vmem:[#allocation6 + $0x14] sm:$0xf]
    %v4090 = vld [vmem:[#allocation6 + $0x18] sm:$0xff]
    %v4091 = vld [vmem:[#allocation6 + $0x20] sm:$0xf]
    %v4092 = vld [vmem:[#allocation6 + $0x24] sm:$0xff]
    %v4093 = vld [vmem:[#allocation6 + $0x2c] sm:$0xf]
    %v4094 = vld [vmem:[#allocation6 + $0x30] sm:$0xff]
    %v4095 = vld [vmem:[#allocation6 + $0x38] sm:$0xf]
    %v4096 = vld [vmem:[#allocation6 + $0x3c] sm:$0xff]
    %v4097 = vld [vmem:[#allocation6 + $0x44] sm:$0xf]
    %v4098 = vld [vmem:[#allocation6 + $0x48] sm:$0xff]
    %v4099 = vld [vmem:[#allocation6 + $0x50] sm:$0xf]
    %v4100 = vld [vmem:[#allocation6 + $0x54] sm:$0xff]
    %v4101 = vld [vmem:[#allocation6 + $0x5c] sm:$0xf]
    %v4102 = vld [vmem:[#allocation6 + $0x60] sm:$0xff]
    %v4103 = vld [vmem:[#allocation6 + $0x68] sm:$0xf]
    %v4104 = vld [vmem:[#allocation6 + $0x6c] sm:$0xff]
    %v4105 = vld [vmem:[#allocation6 + $0x74] sm:$0xf]
    %v4106 = vld [vmem:[#allocation6 + $0x78] sm:$0xff]
    %v4107 = vld [vmem:[#allocation6 + $0x80] sm:$0xf]
    %v4108 = vld [vmem:[#allocation6 + $0x84] sm:$0xff]
    %v4109 = vld [vmem:[#allocation6 + $0x8c] sm:$0xf]
    %v4110 = vld [vmem:[#allocation6 + $0x90] sm:$0xff]
    %v4111 = vld [vmem:[#allocation6 + $0x98] sm:$0xf]
    %v4112 = vld [vmem:[#allocation6 + $0x9c] sm:$0xff]
    %v4113 = vld [vmem:[#allocation6 + $0xa4] sm:$0xf]
    %v4114 = vld [vmem:[#allocation6 + $0xa8] sm:$0xff]
    %v4115 = vld [vmem:[#allocation6 + $0xb0] sm:$0xf]
    %v4116 = vld [vmem:[#allocation6 + $0xb4] sm:$0xff]
    %v4117 = vld [vmem:[#allocation6 + $0xbc] sm:$0xf]
    %v4150 = vunpack.c.l.b16 %v4086
    %v4151 = vunpack.c.h.b16 %v4086
    %v4152 = vunpack.c.l.b16 %v4087
    %v4153 = vunpack.c.l.b16 %v4088
    %v4154 = vunpack.c.h.b16 %v4088
    %v4155 = vunpack.c.l.b16 %v4089
    %v4156 = vunpack.c.l.b16 %v4090
    %v4157 = vunpack.c.h.b16 %v4090
    %v4158 = vunpack.c.l.b16 %v4091
    %v4159 = vunpack.c.l.b16 %v4092
    %v4160 = vunpack.c.h.b16 %v4092
    %v4161 = vunpack.c.l.b16 %v4093
    %v4162 = vunpack.c.l.b16 %v4094
    %v4163 = vunpack.c.h.b16 %v4094
    %v4164 = vunpack.c.l.b16 %v4095
    %v4165 = vunpack.c.l.b16 %v4096
    %v4166 = vunpack.c.h.b16 %v4096
    %v4167 = vunpack.c.l.b16 %v4097
    %v4168 = vunpack.c.l.b16 %v4098
    %v4169 = vunpack.c.h.b16 %v4098
    %v4170 = vunpack.c.l.b16 %v4099
    %v4171 = vunpack.c.l.b16 %v4100
    %v4172 = vunpack.c.h.b16 %v4100
    %v4173 = vunpack.c.l.b16 %v4101
    %v4174 = vunpack.c.l.b16 %v4102
    %v4175 = vunpack.c.h.b16 %v4102
    %v4176 = vunpack.c.l.b16 %v4103
    %v4177 = vunpack.c.l.b16 %v4104
    %v4178 = vunpack.c.h.b16 %v4104
    %v4179 = vunpack.c.l.b16 %v4105
    %v4180 = vunpack.c.l.b16 %v4106
    %v4181 = vunpack.c.h.b16 %v4106
    %v4182 = vunpack.c.l.b16 %v4107
    %v4183 = vunpack.c.l.b16 %v4108
    %v4184 = vunpack.c.h.b16 %v4108
    %v4185 = vunpack.c.l.b16 %v4109
    %v4186 = vunpack.c.l.b16 %v4110
    %v4187 = vunpack.c.h.b16 %v4110
    %v4188 = vunpack.c.l.b16 %v4111
    %v4189 = vunpack.c.l.b16 %v4112
    %v4190 = vunpack.c.h.b16 %v4112
    %v4191 = vunpack.c.l.b16 %v4113
    %v4192 = vunpack.c.l.b16 %v4114
    %v4193 = vunpack.c.h.b16 %v4114
    %v4194 = vunpack.c.l.b16 %v4115
    %v4195 = vunpack.c.l.b16 %v4116
    %v4196 = vunpack.c.h.b16 %v4116
    %v4197 = vunpack.c.l.b16 %v4117
    %v4198 = vpack.c.b16 %v4153, %v4150
    %v4199 = vpack.c.b16 %v4154, %v4151
    %v4200 = vpack.c.b16 %v4155, %v4152
    %v4201 = vpack.c.b16 %v4159, %v4156
    %v4202 = vpack.c.b16 %v4160, %v4157
    %v4203 = vpack.c.b16 %v4161, %v4158
    %v4204 = vpack.c.b16 %v4165, %v4162
    %v4205 = vpack.c.b16 %v4166, %v4163
    %v4206 = vpack.c.b16 %v4167, %v4164
    %v4207 = vpack.c.b16 %v4171, %v4168
    %v4208 = vpack.c.b16 %v4172, %v4169
    %v4209 = vpack.c.b16 %v4173, %v4170
    %v4210 = vpack.c.b16 %v4177, %v4174
    %v4211 = vpack.c.b16 %v4178, %v4175
    %v4212 = vpack.c.b16 %v4179, %v4176
    %v4213 = vpack.c.b16 %v4183, %v4180
    %v4214 = vpack.c.b16 %v4184, %v4181
    %v4215 = vpack.c.b16 %v4185, %v4182
    %v4216 = vpack.c.b16 %v4189, %v4186
    %v4217 = vpack.c.b16 %v4190, %v4187
    %v4218 = vpack.c.b16 %v4191, %v4188
    %v4219 = vpack.c.b16 %v4195, %v4192
    %v4220 = vpack.c.b16 %v4196, %v4193
    %v4221 = vpack.c.b16 %v4197, %v4194
    %4246 = vmatprep.subr.bf16.mxu0 %v4199
    %4247 = vmatpush1.bf16.msra.mxu0 %v4198
    %4248 = vmatprep.subr.bf16.mxu0 %v4202
    %4249 = vmatpush1.bf16.msra.mxu0 %v4201
    %4250 = vmatprep.subr.bf16.mxu0 %v4205
    %4251 = vmatpush1.bf16.msra.mxu0 %v4204
    %4252 = vmatprep.subr.bf16.mxu0 %v4208
    %4253 = vmatpush1.bf16.msra.mxu0 %v4207
    %4254 = vmatprep.subr.bf16.mxu0 %v4211
    %4255 = vmatpush1.bf16.msra.mxu0 %v4210
    %4256 = vmatprep.subr.bf16.mxu0 %v4214
    %4257 = vmatpush1.bf16.msra.mxu0 %v4213
    %4258 = vmatprep.subr.bf16.mxu0 %v4217
    %4259 = vmatpush1.bf16.msra.mxu0 %v4216
    %4260 = vmatprep.subr.bf16.mxu0 %v4220
    %4261 = vmatpush1.bf16.msra.mxu0 %v4219
    %4262 = vmatprep.subr.bf16.mxu0 0
    %4263 = vmatpush1.bf16.msra.mxu0 0
    %4264 = vmatprep.subr.bf16.mxu0 0
    %4265 = vmatpush1.bf16.msra.mxu0 0
    %4266 = vmatprep.subr.bf16.mxu0 0
    %4267 = vmatpush1.bf16.msra.mxu0 0
    %4268 = vmatprep.subr.bf16.mxu0 0
    %4269 = vmatpush1.bf16.msra.mxu0 0
    %4270 = vmatprep.subr.bf16.mxu0 0
    %4271 = vmatpush1.bf16.msra.mxu0 0
    %4272 = vmatprep.subr.bf16.mxu0 0
    %4273 = vmatpush1.bf16.msra.mxu0 0
    %4274 = vmatprep.subr.bf16.mxu0 0
    %4275 = vmatpush1.bf16.msra.mxu0 0
    %4276 = vmatprep.subr.bf16.mxu0 0
    %4277 = vmatpush1.bf16.msra.mxu0 0
    %4278 = vmatprep.mubr.bf16.mxu0 0
    %4279 = vmatmul.mubr.bf16.gmra.mrb[0].mxu0 %v3836
    %v4280 = vpop.f32.mrb[0].mxu0
    %v4281 = vadd.f32 0.0, %v4280
    %v4282 = vpop.f32.mrb[0].mxu0
    %v4283 = vadd.f32 0.0, %v4282
    %v4284 = vpop.f32.mrb[0].mxu0
    %v4285 = vpop.f32.mrb[0].mxu0
    %4286 = vdwg.mxu0
    %4287 = vmatprep.subr.bf16.mxu0 0
    %4288 = vmatpush1.bf16.msra.mxu0 %v4200
    %4289 = vmatprep.subr.bf16.mxu0 0
    %4290 = vmatpush1.bf16.msra.mxu0 %v4203
    %4291 = vmatprep.subr.bf16.mxu0 0
    %4292 = vmatpush1.bf16.msra.mxu0 %v4206
    %4293 = vmatprep.subr.bf16.mxu0 0
    %4294 = vmatpush1.bf16.msra.mxu0 %v4209
    %4295 = vmatprep.subr.bf16.mxu0 0
    %4296 = vmatpush1.bf16.msra.mxu0 %v4212
    %4297 = vmatprep.subr.bf16.mxu0 0
    %4298 = vmatpush1.bf16.msra.mxu0 %v4215
    %4299 = vmatprep.subr.bf16.mxu0 0
    %4300 = vmatpush1.bf16.msra.mxu0 %v4218
    %4301 = vmatprep.subr.bf16.mxu0 0
    %4302 = vmatpush1.bf16.msra.mxu0 %v4221
    %4303 = vmatprep.subr.bf16.mxu0 0
    %4304 = vmatpush1.bf16.msra.mxu0 0
    %4305 = vmatprep.subr.bf16.mxu0 0
    %4306 = vmatpush1.bf16.msra.mxu0 0
    %4307 = vmatprep.subr.bf16.mxu0 0
    %4308 = vmatpush1.bf16.msra.mxu0 0
    %4309 = vmatprep.subr.bf16.mxu0 0
    %4310 = vmatpush1.bf16.msra.mxu0 0
    %4311 = vmatprep.subr.bf16.mxu0 0
    %4312 = vmatpush1.bf16.msra.mxu0 0
    %4313 = vmatprep.subr.bf16.mxu0 0
    %4314 = vmatpush1.bf16.msra.mxu0 0
    %4315 = vmatprep.subr.bf16.mxu0 0
    %4316 = vmatpush1.bf16.msra.mxu0 0
    %4317 = vmatprep.subr.bf16.mxu0 0
    %4318 = vmatpush1.bf16.msra.mxu0 0
    %4319 = vmatprep.mubr.bf16.mxu0 0
    %4320 = vmatmul.mubr.bf16.gmra.mrb[0].mxu0 %v3836
    %v4321 = vpop.f32.mrb[0].mxu0
    %v4322 = vadd.f32 0.0, %v4321
    %v4323 = vpop.f32.mrb[0].mxu0
    %v4324 = vpop.f32.mrb[0].mxu0
    %v4325 = vpop.f32.mrb[0].mxu0
    %4326 = vdwg.mxu0
    %v4327 = vadd.f32 %v4083, %v4281
    %v4328 = vxor.u32 %v4327, 2147483648
    %v4329 = vmul.f32 %v4328, 1.442695
    %v4330 = vpow.pop %v4329
    %v4331 = vadd.f32 %v4330, 1.0
    %v4332 = vrcp.pop %v4331
    %v4333 = vmul.f32 1.0, %v4332
    %v4334 = vadd.f32 %v4084, %v4283
    %v4335 = vxor.u32 %v4334, 2147483648
    %v4336 = vmul.f32 %v4335, 1.442695
    %v4337 = vpow.pop %v4336
    %v4338 = vadd.f32 %v4337, 1.0
    %v4339 = vrcp.pop %v4338
    %v4340 = vmul.f32 1.0, %v4339
    %v4341 = vadd.f32 %v4322, %v481
    %v4342 = vmul.f32 %v4333, %v4341
    %v4343 = vadd.f32 %v4085, %v4342
    %v4344 = vtanh.pop %v4343
    %v4345 = vsub.f32 %v3835, %v4344
    %v4346 = vmul.f32 %v4340, %v4345
    %v4347 = vadd.f32 %v4344, %v4346
    %v4348 = vpack.c.bf16 %v4347, %v4347
    %v4349 = vld [vmem:[#allocation8] sm:$0xff]
    %v4350 = vld [vmem:[#allocation8 + $0x8] sm:$0xf]
    %v4351 = vld [vmem:[#allocation8 + $0xc] sm:$0xff]
    %v4352 = vld [vmem:[#allocation8 + $0x14] sm:$0xf]
    %v4353 = vld [vmem:[#allocation8 + $0x18] sm:$0xff]
    %v4354 = vld [vmem:[#allocation8 + $0x20] sm:$0xf]
    %v4355 = vld [vmem:[#allocation8 + $0x24] sm:$0xff]
    %v4356 = vld [vmem:[#allocation8 + $0x2c] sm:$0xf]
    %v4357 = vld [vmem:[#allocation8 + $0x30] sm:$0xff]
    %v4358 = vld [vmem:[#allocation8 + $0x38] sm:$0xf]
    %v4359 = vld [vmem:[#allocation8 + $0x3c] sm:$0xff]
    %v4360 = vld [vmem:[#allocation8 + $0x44] sm:$0xf]
    %v4361 = vld [vmem:[#allocation8 + $0x48] sm:$0xff]
    %v4362 = vld [vmem:[#allocation8 + $0x50] sm:$0xf]
    %v4363 = vld [vmem:[#allocation8 + $0x54] sm:$0xff]
    %v4364 = vld [vmem:[#allocation8 + $0x5c] sm:$0xf]
    %v4365 = vld [vmem:[#allocation8 + $0x60] sm:$0xff]
    %v4366 = vld [vmem:[#allocation8 + $0x68] sm:$0xf]
    %v4367 = vld [vmem:[#allocation8 + $0x6c] sm:$0xff]
    %v4368 = vld [vmem:[#allocation8 + $0x74] sm:$0xf]
    %v4369 = vld [vmem:[#allocation8 + $0x78] sm:$0xff]
    %v4370 = vld [vmem:[#allocation8 + $0x80] sm:$0xf]
    %v4371 = vld [vmem:[#allocation8 + $0x84] sm:$0xff]
    %v4372 = vld [vmem:[#allocation8 + $0x8c] sm:$0xf]
    %v4373 = vld [vmem:[#allocation8 + $0x90] sm:$0xff]
    %v4374 = vld [vmem:[#allocation8 + $0x98] sm:$0xf]
    %v4375 = vld [vmem:[#allocation8 + $0x9c] sm:$0xff]
    %v4376 = vld [vmem:[#allocation8 + $0xa4] sm:$0xf]
    %v4377 = vld [vmem:[#allocation8 + $0xa8] sm:$0xff]
    %v4378 = vld [vmem:[#allocation8 + $0xb0] sm:$0xf]
    %v4379 = vld [vmem:[#allocation8 + $0xb4] sm:$0xff]
    %v4380 = vld [vmem:[#allocation8 + $0xbc] sm:$0xf]
    %v4413 = vunpack.c.l.b16 %v4349
    %v4414 = vunpack.c.h.b16 %v4349
    %v4415 = vunpack.c.l.b16 %v4350
    %v4416 = vunpack.c.l.b16 %v4351
    %v4417 = vunpack.c.h.b16 %v4351
    %v4418 = vunpack.c.l.b16 %v4352
    %v4419 = vunpack.c.l.b16 %v4353
    %v4420 = vunpack.c.h.b16 %v4353
    %v4421 = vunpack.c.l.b16 %v4354
    %v4422 = vunpack.c.l.b16 %v4355
    %v4423 = vunpack.c.h.b16 %v4355
    %v4424 = vunpack.c.l.b16 %v4356
    %v4425 = vunpack.c.l.b16 %v4357
    %v4426 = vunpack.c.h.b16 %v4357
    %v4427 = vunpack.c.l.b16 %v4358
    %v4428 = vunpack.c.l.b16 %v4359
    %v4429 = vunpack.c.h.b16 %v4359
    %v4430 = vunpack.c.l.b16 %v4360
    %v4431 = vunpack.c.l.b16 %v4361
    %v4432 = vunpack.c.h.b16 %v4361
    %v4433 = vunpack.c.l.b16 %v4362
    %v4434 = vunpack.c.l.b16 %v4363
    %v4435 = vunpack.c.h.b16 %v4363
    %v4436 = vunpack.c.l.b16 %v4364
    %v4437 = vunpack.c.l.b16 %v4365
    %v4438 = vunpack.c.h.b16 %v4365
    %v4439 = vunpack.c.l.b16 %v4366
    %v4440 = vunpack.c.l.b16 %v4367
    %v4441 = vunpack.c.h.b16 %v4367
    %v4442 = vunpack.c.l.b16 %v4368
    %v4443 = vunpack.c.l.b16 %v4369
    %v4444 = vunpack.c.h.b16 %v4369
    %v4445 = vunpack.c.l.b16 %v4370
    %v4446 = vunpack.c.l.b16 %v4371
    %v4447 = vunpack.c.h.b16 %v4371
    %v4448 = vunpack.c.l.b16 %v4372
    %v4449 = vunpack.c.l.b16 %v4373
    %v4450 = vunpack.c.h.b16 %v4373
    %v4451 = vunpack.c.l.b16 %v4374
    %v4452 = vunpack.c.l.b16 %v4375
    %v4453 = vunpack.c.h.b16 %v4375
    %v4454 = vunpack.c.l.b16 %v4376
    %v4455 = vunpack.c.l.b16 %v4377
    %v4456 = vunpack.c.h.b16 %v4377
    %v4457 = vunpack.c.l.b16 %v4378
    %v4458 = vunpack.c.l.b16 %v4379
    %v4459 = vunpack.c.h.b16 %v4379
    %v4460 = vunpack.c.l.b16 %v4380
    %v4461 = vpack.c.b16 %v4416, %v4413
    %v4462 = vpack.c.b16 %v4417, %v4414
    %v4463 = vpack.c.b16 %v4418, %v4415
    %v4464 = vpack.c.b16 %v4422, %v4419
    %v4465 = vpack.c.b16 %v4423, %v4420
    %v4466 = vpack.c.b16 %v4424, %v4421
    %v4467 = vpack.c.b16 %v4428, %v4425
    %v4468 = vpack.c.b16 %v4429, %v4426
    %v4469 = vpack.c.b16 %v4430, %v4427
    %v4470 = vpack.c.b16 %v4434, %v4431
    %v4471 = vpack.c.b16 %v4435, %v4432
    %v4472 = vpack.c.b16 %v4436, %v4433
    %v4473 = vpack.c.b16 %v4440, %v4437
    %v4474 = vpack.c.b16 %v4441, %v4438
    %v4475 = vpack.c.b16 %v4442, %v4439
    %v4476 = vpack.c.b16 %v4446, %v4443
    %v4477 = vpack.c.b16 %v4447, %v4444
    %v4478 = vpack.c.b16 %v4448, %v4445
    %v4479 = vpack.c.b16 %v4452, %v4449
    %v4480 = vpack.c.b16 %v4453, %v4450
    %v4481 = vpack.c.b16 %v4454, %v4451
    %v4482 = vpack.c.b16 %v4458, %v4455
    %v4483 = vpack.c.b16 %v4459, %v4456
    %v4484 = vpack.c.b16 %v4460, %v4457
    %4509 = vmatprep.subr.bf16.mxu0 %v4462
    %4510 = vmatpush1.bf16.msra.mxu0 %v4461
    %4511 = vmatprep.subr.bf16.mxu0 %v4465
    %4512 = vmatpush1.bf16.msra.mxu0 %v4464
    %4513 = vmatprep.subr.bf16.mxu0 %v4468
    %4514 = vmatpush1.bf16.msra.mxu0 %v4467
    %4515 = vmatprep.subr.bf16.mxu0 %v4471
    %4516 = vmatpush1.bf16.msra.mxu0 %v4470
    %4517 = vmatprep.subr.bf16.mxu0 %v4474
    %4518 = vmatpush1.bf16.msra.mxu0 %v4473
    %4519 = vmatprep.subr.bf16.mxu0 %v4477
    %4520 = vmatpush1.bf16.msra.mxu0 %v4476
    %4521 = vmatprep.subr.bf16.mxu0 %v4480
    %4522 = vmatpush1.bf16.msra.mxu0 %v4479
    %4523 = vmatprep.subr.bf16.mxu0 %v4483
    %4524 = vmatpush1.bf16.msra.mxu0 %v4482
    %4525 = vmatprep.subr.bf16.mxu0 0
    %4526 = vmatpush1.bf16.msra.mxu0 0
    %4527 = vmatprep.subr.bf16.mxu0 0
    %4528 = vmatpush1.bf16.msra.mxu0 0
    %4529 = vmatprep.subr.bf16.mxu0 0
    %4530 = vmatpush1.bf16.msra.mxu0 0
    %4531 = vmatprep.subr.bf16.mxu0 0
    %4532 = vmatpush1.bf16.msra.mxu0 0
    %4533 = vmatprep.subr.bf16.mxu0 0
    %4534 = vmatpush1.bf16.msra.mxu0 0
    %4535 = vmatprep.subr.bf16.mxu0 0
    %4536 = vmatpush1.bf16.msra.mxu0 0
    %4537 = vmatprep.subr.bf16.mxu0 0
    %4538 = vmatpush1.bf16.msra.mxu0 0
    %4539 = vmatprep.subr.bf16.mxu0 0
    %4540 = vmatpush1.bf16.msra.mxu0 0
    %4541 = vmatprep.mubr.bf16.mxu0 0
    %4542 = vmatmul.mubr.bf16.gmra.mrb[0].mxu0 %v4348
    %v4543 = vpop.f32.mrb[0].mxu0
    %v4544 = vadd.f32 %v488, %v4543
    %v4545 = vpop.f32.mrb[0].mxu0
    %v4546 = vadd.f32 %v492, %v4545
    %v4547 = vpop.f32.mrb[0].mxu0
    %v4548 = vpop.f32.mrb[0].mxu0
    %4549 = vdwg.mxu0
    %4550 = vmatprep.subr.bf16.mxu0 0
    %4551 = vmatpush1.bf16.msra.mxu0 %v4463
    %4552 = vmatprep.subr.bf16.mxu0 0
    %4553 = vmatpush1.bf16.msra.mxu0 %v4466
    %4554 = vmatprep.subr.bf16.mxu0 0
    %4555 = vmatpush1.bf16.msra.mxu0 %v4469
    %4556 = vmatprep.subr.bf16.mxu0 0
    %4557 = vmatpush1.bf16.msra.mxu0 %v4472
    %4558 = vmatprep.subr.bf16.mxu0 0
    %4559 = vmatpush1.bf16.msra.mxu0 %v4475
    %4560 = vmatprep.subr.bf16.mxu0 0
    %4561 = vmatpush1.bf16.msra.mxu0 %v4478
    %4562 = vmatprep.subr.bf16.mxu0 0
    %4563 = vmatpush1.bf16.msra.mxu0 %v4481
    %4564 = vmatprep.subr.bf16.mxu0 0
    %4565 = vmatpush1.bf16.msra.mxu0 %v4484
    %4566 = vmatprep.subr.bf16.mxu0 0
    %4567 = vmatpush1.bf16.msra.mxu0 0
    %4568 = vmatprep.subr.bf16.mxu0 0
    %4569 = vmatpush1.bf16.msra.mxu0 0
    %4570 = vmatprep.subr.bf16.mxu0 0
    %4571 = vmatpush1.bf16.msra.mxu0 0
    %4572 = vmatprep.subr.bf16.mxu0 0
    %4573 = vmatpush1.bf16.msra.mxu0 0
    %4574 = vmatprep.subr.bf16.mxu0 0
    %4575 = vmatpush1.bf16.msra.mxu0 0
    %4576 = vmatprep.subr.bf16.mxu0 0
    %4577 = vmatpush1.bf16.msra.mxu0 0
    %4578 = vmatprep.subr.bf16.mxu0 0
    %4579 = vmatpush1.bf16.msra.mxu0 0
    %4580 = vmatprep.subr.bf16.mxu0 0
    %4581 = vmatpush1.bf16.msra.mxu0 0
    %4582 = vmatprep.mubr.bf16.mxu0 0
    %4583 = vmatmul.mubr.bf16.gmra.mrb[0].mxu0 %v4348
    %v4584 = vpop.f32.mrb[0].mxu0
    %v4585 = vadd.f32 %v496, %v4584
    %v4586 = vpop.f32.mrb[0].mxu0
    %v4587 = vpop.f32.mrb[0].mxu0
    %v4588 = vpop.f32.mrb[0].mxu0
    %4589 = vdwg.mxu0
    %s4590 = scalar_lea.vmem [#allocation3], 168
    %4591 = vst [vmem:[%s4590] sm:$0xff] %v4544
    %4592 = vst [vmem:[%s4590 + $0x8] sm:$0xff] %v4546
    %4593 = vst [vmem:[%s4590 + $0x10] sm:$0xff] %v4585
    %v4594 = vld [vmem:[%s8] sm:$0x1]
    %v4596 = vlaneseq
    %v4597 = vshrl.u32 %v4596, 7
    %v4598 = vsub.s32 0, %v4597
    %v4599 = vrot.slane %v4594, %v4598
    %v4601 = vld [vmem:[#allocation3] sm:$0xff]
    %v4602 = vld [vmem:[#allocation3 + $0x8] sm:$0xff]
    %v4603 = vld [vmem:[#allocation3 + $0x10] sm:$0xff]
    %v4604 = vld [vmem:[#allocation9] sm:$0xff]
    %v4605 = vld [vmem:[#allocation9 + $0x8] sm:$0xf]
    %v4606 = vld [vmem:[#allocation9 + $0xc] sm:$0xff]
    %v4607 = vld [vmem:[#allocation9 + $0x14] sm:$0xf]
    %v4608 = vld [vmem:[#allocation9 + $0x18] sm:$0xff]
    %v4609 = vld [vmem:[#allocation9 + $0x20] sm:$0xf]
    %v4610 = vld [vmem:[#allocation9 + $0x24] sm:$0xff]
    %v4611 = vld [vmem:[#allocation9 + $0x2c] sm:$0xf]
    %v4612 = vld [vmem:[#allocation9 + $0x30] sm:$0xff]
    %v4613 = vld [vmem:[#allocation9 + $0x38] sm:$0xf]
    %v4614 = vld [vmem:[#allocation9 + $0x3c] sm:$0xff]
    %v4615 = vld [vmem:[#allocation9 + $0x44] sm:$0xf]
    %v4616 = vld [vmem:[#allocation9 + $0x48] sm:$0xff]
    %v4617 = vld [vmem:[#allocation9 + $0x50] sm:$0xf]
    %v4618 = vld [vmem:[#allocation9 + $0x54] sm:$0xff]
    %v4619 = vld [vmem:[#allocation9 + $0x5c] sm:$0xf]
    %v4620 = vld [vmem:[#allocation9 + $0x60] sm:$0xff]
    %v4621 = vld [vmem:[#allocation9 + $0x68] sm:$0xf]
    %v4622 = vld [vmem:[#allocation9 + $0x6c] sm:$0xff]
    %v4623 = vld [vmem:[#allocation9 + $0x74] sm:$0xf]
    %v4624 = vld [vmem:[#allocation9 + $0x78] sm:$0xff]
    %v4625 = vld [vmem:[#allocation9 + $0x80] sm:$0xf]
    %v4626 = vld [vmem:[#allocation9 + $0x84] sm:$0xff]
    %v4627 = vld [vmem:[#allocation9 + $0x8c] sm:$0xf]
    %v4628 = vld [vmem:[#allocation9 + $0x90] sm:$0xff]
    %v4629 = vld [vmem:[#allocation9 + $0x98] sm:$0xf]
    %v4630 = vld [vmem:[#allocation9 + $0x9c] sm:$0xff]
    %v4631 = vld [vmem:[#allocation9 + $0xa4] sm:$0xf]
    %v4632 = vld [vmem:[#allocation9 + $0xa8] sm:$0xff]
    %v4633 = vld [vmem:[#allocation9 + $0xb0] sm:$0xf]
    %v4634 = vld [vmem:[#allocation9 + $0xb4] sm:$0xff]
    %v4635 = vld [vmem:[#allocation9 + $0xbc] sm:$0xf]
    %v4668 = vunpack.c.l.b16 %v4604
    %v4669 = vunpack.c.h.b16 %v4604
    %v4670 = vunpack.c.l.b16 %v4605
    %v4671 = vunpack.c.l.b16 %v4606
    %v4672 = vunpack.c.h.b16 %v4606
    %v4673 = vunpack.c.l.b16 %v4607
    %v4674 = vunpack.c.l.b16 %v4608
    %v4675 = vunpack.c.h.b16 %v4608
    %v4676 = vunpack.c.l.b16 %v4609
    %v4677 = vunpack.c.l.b16 %v4610
    %v4678 = vunpack.c.h.b16 %v4610
    %v4679 = vunpack.c.l.b16 %v4611
    %v4680 = vunpack.c.l.b16 %v4612
    %v4681 = vunpack.c.h.b16 %v4612
    %v4682 = vunpack.c.l.b16 %v4613
    %v4683 = vunpack.c.l.b16 %v4614
    %v4684 = vunpack.c.h.b16 %v4614
    %v4685 = vunpack.c.l.b16 %v4615
    %v4686 = vunpack.c.l.b16 %v4616
    %v4687 = vunpack.c.h.b16 %v4616
    %v4688 = vunpack.c.l.b16 %v4617
    %v4689 = vunpack.c.l.b16 %v4618
    %v4690 = vunpack.c.h.b16 %v4618
    %v4691 = vunpack.c.l.b16 %v4619
    %v4692 = vunpack.c.l.b16 %v4620
    %v4693 = vunpack.c.h.b16 %v4620
    %v4694 = vunpack.c.l.b16 %v4621
    %v4695 = vunpack.c.l.b16 %v4622
    %v4696 = vunpack.c.h.b16 %v4622
    %v4697 = vunpack.c.l.b16 %v4623
    %v4698 = vunpack.c.l.b16 %v4624
    %v4699 = vunpack.c.h.b16 %v4624
    %v4700 = vunpack.c.l.b16 %v4625
    %v4701 = vunpack.c.l.b16 %v4626
    %v4702 = vunpack.c.h.b16 %v4626
    %v4703 = vunpack.c.l.b16 %v4627
    %v4704 = vunpack.c.l.b16 %v4628
    %v4705 = vunpack.c.h.b16 %v4628
    %v4706 = vunpack.c.l.b16 %v4629
    %v4707 = vunpack.c.l.b16 %v4630
    %v4708 = vunpack.c.h.b16 %v4630
    %v4709 = vunpack.c.l.b16 %v4631
    %v4710 = vunpack.c.l.b16 %v4632
    %v4711 = vunpack.c.h.b16 %v4632
    %v4712 = vunpack.c.l.b16 %v4633
    %v4713 = vunpack.c.l.b16 %v4634
    %v4714 = vunpack.c.h.b16 %v4634
    %v4715 = vunpack.c.l.b16 %v4635
    %v4716 = vpack.c.b16 %v4671, %v4668
    %v4717 = vpack.c.b16 %v4672, %v4669
    %v4718 = vpack.c.b16 %v4673, %v4670
    %v4719 = vpack.c.b16 %v4677, %v4674
    %v4720 = vpack.c.b16 %v4678, %v4675
    %v4721 = vpack.c.b16 %v4679, %v4676
    %v4722 = vpack.c.b16 %v4683, %v4680
    %v4723 = vpack.c.b16 %v4684, %v4681
    %v4724 = vpack.c.b16 %v4685, %v4682
    %v4725 = vpack.c.b16 %v4689, %v4686
    %v4726 = vpack.c.b16 %v4690, %v4687
    %v4727 = vpack.c.b16 %v4691, %v4688
    %v4728 = vpack.c.b16 %v4695, %v4692
    %v4729 = vpack.c.b16 %v4696, %v4693
    %v4730 = vpack.c.b16 %v4697, %v4694
    %v4731 = vpack.c.b16 %v4701, %v4698
    %v4732 = vpack.c.b16 %v4702, %v4699
    %v4733 = vpack.c.b16 %v4703, %v4700
    %v4734 = vpack.c.b16 %v4707, %v4704
    %v4735 = vpack.c.b16 %v4708, %v4705
    %v4736 = vpack.c.b16 %v4709, %v4706
    %v4737 = vpack.c.b16 %v4713, %v4710
    %v4738 = vpack.c.b16 %v4714, %v4711
    %v4739 = vpack.c.b16 %v4715, %v4712
    %4764 = vmatprep.subr.bf16.mxu0 %v4717
    %4765 = vmatpush1.bf16.msra.mxu0 %v4716
    %4766 = vmatprep.subr.bf16.mxu0 %v4720
    %4767 = vmatpush1.bf16.msra.mxu0 %v4719
    %4768 = vmatprep.subr.bf16.mxu0 %v4723
    %4769 = vmatpush1.bf16.msra.mxu0 %v4722
    %4770 = vmatprep.subr.bf16.mxu0 %v4726
    %4771 = vmatpush1.bf16.msra.mxu0 %v4725
    %4772 = vmatprep.subr.bf16.mxu0 %v4729
    %4773 = vmatpush1.bf16.msra.mxu0 %v4728
    %4774 = vmatprep.subr.bf16.mxu0 %v4732
    %4775 = vmatpush1.bf16.msra.mxu0 %v4731
    %4776 = vmatprep.subr.bf16.mxu0 %v4735
    %4777 = vmatpush1.bf16.msra.mxu0 %v4734
    %4778 = vmatprep.subr.bf16.mxu0 %v4738
    %4779 = vmatpush1.bf16.msra.mxu0 %v4737
    %4780 = vmatprep.subr.bf16.mxu0 0
    %4781 = vmatpush1.bf16.msra.mxu0 0
    %4782 = vmatprep.subr.bf16.mxu0 0
    %4783 = vmatpush1.bf16.msra.mxu0 0
    %4784 = vmatprep.subr.bf16.mxu0 0
    %4785 = vmatpush1.bf16.msra.mxu0 0
    %4786 = vmatprep.subr.bf16.mxu0 0
    %4787 = vmatpush1.bf16.msra.mxu0 0
    %4788 = vmatprep.subr.bf16.mxu0 0
    %4789 = vmatpush1.bf16.msra.mxu0 0
    %4790 = vmatprep.subr.bf16.mxu0 0
    %4791 = vmatpush1.bf16.msra.mxu0 0
    %4792 = vmatprep.subr.bf16.mxu0 0
    %4793 = vmatpush1.bf16.msra.mxu0 0
    %4794 = vmatprep.subr.bf16.mxu0 0
    %4795 = vmatpush1.bf16.msra.mxu0 0
    %4796 = vmatprep.mubr.bf16.mxu0 0
    %4797 = vmatmul.mubr.bf16.gmra.mrb[0].mxu0 0
    %v4798 = vpop.f32.mrb[0].mxu0
    %v4799 = vadd.f32 0.0, %v4798
    %v4800 = vpop.f32.mrb[0].mxu0
    %v4801 = vadd.f32 0.0, %v4800
    %v4802 = vpop.f32.mrb[0].mxu0
    %v4803 = vpop.f32.mrb[0].mxu0
    %4804 = vdwg.mxu0
    %4805 = vmatprep.subr.bf16.mxu0 0
    %4806 = vmatpush1.bf16.msra.mxu0 %v4718
    %4807 = vmatprep.subr.bf16.mxu0 0
    %4808 = vmatpush1.bf16.msra.mxu0 %v4721
    %4809 = vmatprep.subr.bf16.mxu0 0
    %4810 = vmatpush1.bf16.msra.mxu0 %v4724
    %4811 = vmatprep.subr.bf16.mxu0 0
    %4812 = vmatpush1.bf16.msra.mxu0 %v4727
    %4813 = vmatprep.subr.bf16.mxu0 0
    %4814 = vmatpush1.bf16.msra.mxu0 %v4730
    %4815 = vmatprep.subr.bf16.mxu0 0
    %4816 = vmatpush1.bf16.msra.mxu0 %v4733
    %4817 = vmatprep.subr.bf16.mxu0 0
    %4818 = vmatpush1.bf16.msra.mxu0 %v4736
    %4819 = vmatprep.subr.bf16.mxu0 0
    %4820 = vmatpush1.bf16.msra.mxu0 %v4739
    %4821 = vmatprep.subr.bf16.mxu0 0
    %4822 = vmatpush1.bf16.msra.mxu0 0
    %4823 = vmatprep.subr.bf16.mxu0 0
    %4824 = vmatpush1.bf16.msra.mxu0 0
    %4825 = vmatprep.subr.bf16.mxu0 0
    %4826 = vmatpush1.bf16.msra.mxu0 0
    %4827 = vmatprep.subr.bf16.mxu0 0
    %4828 = vmatpush1.bf16.msra.mxu0 0
    %4829 = vmatprep.subr.bf16.mxu0 0
    %4830 = vmatpush1.bf16.msra.mxu0 0
    %4831 = vmatprep.subr.bf16.mxu0 0
    %4832 = vmatpush1.bf16.msra.mxu0 0
    %4833 = vmatprep.subr.bf16.mxu0 0
    %4834 = vmatpush1.bf16.msra.mxu0 0
    %4835 = vmatprep.subr.bf16.mxu0 0
    %4836 = vmatpush1.bf16.msra.mxu0 0
    %4837 = vmatprep.mubr.bf16.mxu0 0
    %4838 = vmatmul.mubr.bf16.gmra.mrb[0].mxu0 0
    %v4839 = vpop.f32.mrb[0].mxu0
    %v4840 = vadd.f32 0.0, %v4839
    %v4841 = vpop.f32.mrb[0].mxu0
    %v4842 = vpop.f32.mrb[0].mxu0
    %v4843 = vpop.f32.mrb[0].mxu0
    %4844 = vdwg.mxu0
    %v4845 = vadd.f32 %v4601, %v4799
    %v4846 = vxor.u32 %v4845, 2147483648
    %v4847 = vmul.f32 %v4846, 1.442695
    %v4848 = vpow.pop %v4847
    %v4849 = vadd.f32 %v4848, 1.0
    %v4850 = vrcp.pop %v4849
    %v4851 = vmul.f32 1.0, %v4850
    %v4852 = vadd.f32 %v4602, %v4801
    %v4853 = vxor.u32 %v4852, 2147483648
    %v4854 = vmul.f32 %v4853, 1.442695
    %v4855 = vpow.pop %v4854
    %v4856 = vadd.f32 %v4855, 1.0
    %v4857 = vrcp.pop %v4856
    %v4858 = vmul.f32 1.0, %v4857
    %v4859 = vadd.f32 %v4840, %v4599
    %v4860 = vmul.f32 %v4851, %v4859
    %v4861 = vadd.f32 %v4603, %v4860
    %v4862 = vtanh.pop %v4861
    %v4863 = vsub.f32 0.0, %v4862
    %v4864 = vmul.f32 %v4858, %v4863
    %v4865 = vadd.f32 %v4862, %v4864
    %v4866 = vld [vmem:[%s1518] sm:$0xff]
    %v4867 = vld [vmem:[%s1518 + $0x8] sm:$0xff]
    %v4868 = vld [vmem:[%s1518 + $0x10] sm:$0xff]
    %v4869 = vpack.c.bf16 %v4865, %v4865
    %4870 = vmatprep.subr.bf16.mxu0 %v4717
    %4871 = vmatpush1.bf16.msra.mxu0 %v4716
    %4872 = vmatprep.subr.bf16.mxu0 %v4720
    %4873 = vmatpush1.bf16.msra.mxu0 %v4719
    %4874 = vmatprep.subr.bf16.mxu0 %v4723
    %4875 = vmatpush1.bf16.msra.mxu0 %v4722
    %4876 = vmatprep.subr.bf16.mxu0 %v4726
    %4877 = vmatpush1.bf16.msra.mxu0 %v4725
    %4878 = vmatprep.subr.bf16.mxu0 %v4729
    %4879 = vmatpush1.bf16.msra.mxu0 %v4728
    %4880 = vmatprep.subr.bf16.mxu0 %v4732
    %4881 = vmatpush1.bf16.msra.mxu0 %v4731
    %4882 = vmatprep.subr.bf16.mxu0 %v4735
    %4883 = vmatpush1.bf16.msra.mxu0 %v4734
    %4884 = vmatprep.subr.bf16.mxu0 %v4738
    %4885 = vmatpush1.bf16.msra.mxu0 %v4737
    %4886 = vmatprep.subr.bf16.mxu0 0
    %4887 = vmatpush1.bf16.msra.mxu0 0
    %4888 = vmatprep.subr.bf16.mxu0 0
    %4889 = vmatpush1.bf16.msra.mxu0 0
    %4890 = vmatprep.subr.bf16.mxu0 0
    %4891 = vmatpush1.bf16.msra.mxu0 0
    %4892 = vmatprep.subr.bf16.mxu0 0
    %4893 = vmatpush1.bf16.msra.mxu0 0
    %4894 = vmatprep.subr.bf16.mxu0 0
    %4895 = vmatpush1.bf16.msra.mxu0 0
    %4896 = vmatprep.subr.bf16.mxu0 0
    %4897 = vmatpush1.bf16.msra.mxu0 0
    %4898 = vmatprep.subr.bf16.mxu0 0
    %4899 = vmatpush1.bf16.msra.mxu0 0
    %4900 = vmatprep.subr.bf16.mxu0 0
    %4901 = vmatpush1.bf16.msra.mxu0 0
    %4902 = vmatprep.mubr.bf16.mxu0 0
    %4903 = vmatmul.mubr.bf16.gmra.mrb[0].mxu0 %v4869
    %v4904 = vpop.f32.mrb[0].mxu0
    %v4905 = vadd.f32 0.0, %v4904
    %v4906 = vpop.f32.mrb[0].mxu0
    %v4907 = vadd.f32 0.0, %v4906
    %v4908 = vpop.f32.mrb[0].mxu0
    %v4909 = vpop.f32.mrb[0].mxu0
    %4910 = vdwg.mxu0
    %4911 = vmatprep.subr.bf16.mxu0 0
    %4912 = vmatpush1.bf16.msra.mxu0 %v4718
    %4913 = vmatprep.subr.bf16.mxu0 0
    %4914 = vmatpush1.bf16.msra.mxu0 %v4721
    %4915 = vmatprep.subr.bf16.mxu0 0
    %4916 = vmatpush1.bf16.msra.mxu0 %v4724
    %4917 = vmatprep.subr.bf16.mxu0 0
    %4918 = vmatpush1.bf16.msra.mxu0 %v4727
    %4919 = vmatprep.subr.bf16.mxu0 0
    %4920 = vmatpush1.bf16.msra.mxu0 %v4730
    %4921 = vmatprep.subr.bf16.mxu0 0
    %4922 = vmatpush1.bf16.msra.mxu0 %v4733
    %4923 = vmatprep.subr.bf16.mxu0 0
    %4924 = vmatpush1.bf16.msra.mxu0 %v4736
    %4925 = vmatprep.subr.bf16.mxu0 0
    %4926 = vmatpush1.bf16.msra.mxu0 %v4739
    %4927 = vmatprep.subr.bf16.mxu0 0
    %4928 = vmatpush1.bf16.msra.mxu0 0
    %4929 = vmatprep.subr.bf16.mxu0 0
    %4930 = vmatpush1.bf16.msra.mxu0 0
    %4931 = vmatprep.subr.bf16.mxu0 0
    %4932 = vmatpush1.bf16.msra.mxu0 0
    %4933 = vmatprep.subr.bf16.mxu0 0
    %4934 = vmatpush1.bf16.msra.mxu0 0
    %4935 = vmatprep.subr.bf16.mxu0 0
    %4936 = vmatpush1.bf16.msra.mxu0 0
    %4937 = vmatprep.subr.bf16.mxu0 0
    %4938 = vmatpush1.bf16.msra.mxu0 0
    %4939 = vmatprep.subr.bf16.mxu0 0
    %4940 = vmatpush1.bf16.msra.mxu0 0
    %4941 = vmatprep.subr.bf16.mxu0 0
    %4942 = vmatpush1.bf16.msra.mxu0 0
    %4943 = vmatprep.mubr.bf16.mxu0 0
    %4944 = vmatmul.mubr.bf16.gmra.mrb[0].mxu0 %v4869
    %v4945 = vpop.f32.mrb[0].mxu0
    %v4946 = vadd.f32 0.0, %v4945
    %v4947 = vpop.f32.mrb[0].mxu0
    %v4948 = vpop.f32.mrb[0].mxu0
    %v4949 = vpop.f32.mrb[0].mxu0
    %4950 = vdwg.mxu0
    %v4951 = vadd.f32 %v4866, %v4905
    %v4952 = vxor.u32 %v4951, 2147483648
    %v4953 = vmul.f32 %v4952, 1.442695
    %v4954 = vpow.pop %v4953
    %v4955 = vadd.f32 %v4954, 1.0
    %v4956 = vrcp.pop %v4955
    %v4957 = vmul.f32 1.0, %v4956
    %v4958 = vadd.f32 %v4867, %v4907
    %v4959 = vxor.u32 %v4958, 2147483648
    %v4960 = vmul.f32 %v4959, 1.442695
    %v4961 = vpow.pop %v4960
    %v4962 = vadd.f32 %v4961, 1.0
    %v4963 = vrcp.pop %v4962
    %v4964 = vmul.f32 1.0, %v4963
    %v4965 = vadd.f32 %v4946, %v4599
    %v4966 = vmul.f32 %v4957, %v4965
    %v4967 = vadd.f32 %v4868, %v4966
    %v4968 = vtanh.pop %v4967
    %v4969 = vsub.f32 %v4865, %v4968
    %v4970 = vmul.f32 %v4964, %v4969
    %v4971 = vadd.f32 %v4968, %v4970
    %v4972 = vld [vmem:[%s2030] sm:$0xff]
    %v4973 = vld [vmem:[%s2030 + $0x8] sm:$0xff]
    %v4974 = vld [vmem:[%s2030 + $0x10] sm:$0xff]
    %v4975 = vpack.c.bf16 %v4971, %v4971
    %4976 = vmatprep.subr.bf16.mxu0 %v4717
    %4977 = vmatpush1.bf16.msra.mxu0 %v4716
    %4978 = vmatprep.subr.bf16.mxu0 %v4720
    %4979 = vmatpush1.bf16.msra.mxu0 %v4719
    %4980 = vmatprep.subr.bf16.mxu0 %v4723
    %4981 = vmatpush1.bf16.msra.mxu0 %v4722
    %4982 = vmatprep.subr.bf16.mxu0 %v4726
    %4983 = vmatpush1.bf16.msra.mxu0 %v4725
    %4984 = vmatprep.subr.bf16.mxu0 %v4729
    %4985 = vmatpush1.bf16.msra.mxu0 %v4728
    %4986 = vmatprep.subr.bf16.mxu0 %v4732
    %4987 = vmatpush1.bf16.msra.mxu0 %v4731
    %4988 = vmatprep.subr.bf16.mxu0 %v4735
    %4989 = vmatpush1.bf16.msra.mxu0 %v4734
    %4990 = vmatprep.subr.bf16.mxu0 %v4738
    %4991 = vmatpush1.bf16.msra.mxu0 %v4737
    %4992 = vmatprep.subr.bf16.mxu0 0
    %4993 = vmatpush1.bf16.msra.mxu0 0
    %4994 = vmatprep.subr.bf16.mxu0 0
    %4995 = vmatpush1.bf16.msra.mxu0 0
    %4996 = vmatprep.subr.bf16.mxu0 0
    %4997 = vmatpush1.bf16.msra.mxu0 0
    %4998 = vmatprep.subr.bf16.mxu0 0
    %4999 = vmatpush1.bf16.msra.mxu0 0
    %5000 = vmatprep.subr.bf16.mxu0 0
    %5001 = vmatpush1.bf16.msra.mxu0 0
    %5002 = vmatprep.subr.bf16.mxu0 0
    %5003 = vmatpush1.bf16.msra.mxu0 0
    %5004 = vmatprep.subr.bf16.mxu0 0
    %5005 = vmatpush1.bf16.msra.mxu0 0
    %5006 = vmatprep.subr.bf16.mxu0 0
    %5007 = vmatpush1.bf16.msra.mxu0 0
    %5008 = vmatprep.mubr.bf16.mxu0 0
    %5009 = vmatmul.mubr.bf16.gmra.mrb[0].mxu0 %v4975
    %v5010 = vpop.f32.mrb[0].mxu0
    %v5011 = vadd.f32 0.0, %v5010
    %v5012 = vpop.f32.mrb[0].mxu0
    %v5013 = vadd.f32 0.0, %v5012
    %v5014 = vpop.f32.mrb[0].mxu0
    %v5015 = vpop.f32.mrb[0].mxu0
    %5016 = vdwg.mxu0
    %5017 = vmatprep.subr.bf16.mxu0 0
    %5018 = vmatpush1.bf16.msra.mxu0 %v4718
    %5019 = vmatprep.subr.bf16.mxu0 0
    %5020 = vmatpush1.bf16.msra.mxu0 %v4721
    %5021 = vmatprep.subr.bf16.mxu0 0
    %5022 = vmatpush1.bf16.msra.mxu0 %v4724
    %5023 = vmatprep.subr.bf16.mxu0 0
    %5024 = vmatpush1.bf16.msra.mxu0 %v4727
    %5025 = vmatprep.subr.bf16.mxu0 0
    %5026 = vmatpush1.bf16.msra.mxu0 %v4730
    %5027 = vmatprep.subr.bf16.mxu0 0
    %5028 = vmatpush1.bf16.msra.mxu0 %v4733
    %5029 = vmatprep.subr.bf16.mxu0 0
    %5030 = vmatpush1.bf16.msra.mxu0 %v4736
    %5031 = vmatprep.subr.bf16.mxu0 0
    %5032 = vmatpush1.bf16.msra.mxu0 %v4739
    %5033 = vmatprep.subr.bf16.mxu0 0
    %5034 = vmatpush1.bf16.msra.mxu0 0
    %5035 = vmatprep.subr.bf16.mxu0 0
    %5036 = vmatpush1.bf16.msra.mxu0 0
    %5037 = vmatprep.subr.bf16.mxu0 0
    %5038 = vmatpush1.bf16.msra.mxu0 0
    %5039 = vmatprep.subr.bf16.mxu0 0
    %5040 = vmatpush1.bf16.msra.mxu0 0
    %5041 = vmatprep.subr.bf16.mxu0 0
    %5042 = vmatpush1.bf16.msra.mxu0 0
    %5043 = vmatprep.subr.bf16.mxu0 0
    %5044 = vmatpush1.bf16.msra.mxu0 0
    %5045 = vmatprep.subr.bf16.mxu0 0
    %5046 = vmatpush1.bf16.msra.mxu0 0
    %5047 = vmatprep.subr.bf16.mxu0 0
    %5048 = vmatpush1.bf16.msra.mxu0 0
    %5049 = vmatprep.mubr.bf16.mxu0 0
    %5050 = vmatmul.mubr.bf16.gmra.mrb[0].mxu0 %v4975
    %v5051 = vpop.f32.mrb[0].mxu0
    %v5052 = vadd.f32 0.0, %v5051
    %v5053 = vpop.f32.mrb[0].mxu0
    %v5054 = vpop.f32.mrb[0].mxu0
    %v5055 = vpop.f32.mrb[0].mxu0
    %5056 = vdwg.mxu0
    %v5057 = vadd.f32 %v4972, %v5011
    %v5058 = vxor.u32 %v5057, 2147483648
    %v5059 = vmul.f32 %v5058, 1.442695
    %v5060 = vpow.pop %v5059
    %v5061 = vadd.f32 %v5060, 1.0
    %v5062 = vrcp.pop %v5061
    %v5063 = vmul.f32 1.0, %v5062
    %v5064 = vadd.f32 %v4973, %v5013
    %v5065 = vxor.u32 %v5064, 2147483648
    %v5066 = vmul.f32 %v5065, 1.442695
    %v5067 = vpow.pop %v5066
    %v5068 = vadd.f32 %v5067, 1.0
    %v5069 = vrcp.pop %v5068
    %v5070 = vmul.f32 1.0, %v5069
    %v5071 = vadd.f32 %v5052, %v4599
    %v5072 = vmul.f32 %v5063, %v5071
    %v5073 = vadd.f32 %v4974, %v5072
    %v5074 = vtanh.pop %v5073
    %v5075 = vsub.f32 %v4971, %v5074
    %v5076 = vmul.f32 %v5070, %v5075
    %v5077 = vadd.f32 %v5074, %v5076
    %v5078 = vld [vmem:[%s2542] sm:$0xff]
    %v5079 = vld [vmem:[%s2542 + $0x8] sm:$0xff]
    %v5080 = vld [vmem:[%s2542 + $0x10] sm:$0xff]
    %v5081 = vpack.c.bf16 %v5077, %v5077
    %5082 = vmatprep.subr.bf16.mxu0 %v4717
    %5083 = vmatpush1.bf16.msra.mxu0 %v4716
    %5084 = vmatprep.subr.bf16.mxu0 %v4720
    %5085 = vmatpush1.bf16.msra.mxu0 %v4719
    %5086 = vmatprep.subr.bf16.mxu0 %v4723
    %5087 = vmatpush1.bf16.msra.mxu0 %v4722
    %5088 = vmatprep.subr.bf16.mxu0 %v4726
    %5089 = vmatpush1.bf16.msra.mxu0 %v4725
    %5090 = vmatprep.subr.bf16.mxu0 %v4729
    %5091 = vmatpush1.bf16.msra.mxu0 %v4728
    %5092 = vmatprep.subr.bf16.mxu0 %v4732
    %5093 = vmatpush1.bf16.msra.mxu0 %v4731
    %5094 = vmatprep.subr.bf16.mxu0 %v4735
    %5095 = vmatpush1.bf16.msra.mxu0 %v4734
    %5096 = vmatprep.subr.bf16.mxu0 %v4738
    %5097 = vmatpush1.bf16.msra.mxu0 %v4737
    %5098 = vmatprep.subr.bf16.mxu0 0
    %5099 = vmatpush1.bf16.msra.mxu0 0
    %5100 = vmatprep.subr.bf16.mxu0 0
    %5101 = vmatpush1.bf16.msra.mxu0 0
    %5102 = vmatprep.subr.bf16.mxu0 0
    %5103 = vmatpush1.bf16.msra.mxu0 0
    %5104 = vmatprep.subr.bf16.mxu0 0
    %5105 = vmatpush1.bf16.msra.mxu0 0
    %5106 = vmatprep.subr.bf16.mxu0 0
    %5107 = vmatpush1.bf16.msra.mxu0 0
    %5108 = vmatprep.subr.bf16.mxu0 0
    %5109 = vmatpush1.bf16.msra.mxu0 0
    %5110 = vmatprep.subr.bf16.mxu0 0
    %5111 = vmatpush1.bf16.msra.mxu0 0
    %5112 = vmatprep.subr.bf16.mxu0 0
    %5113 = vmatpush1.bf16.msra.mxu0 0
    %5114 = vmatprep.mubr.bf16.mxu0 0
    %5115 = vmatmul.mubr.bf16.gmra.mrb[0].mxu0 %v5081
    %v5116 = vpop.f32.mrb[0].mxu0
    %v5117 = vadd.f32 0.0, %v5116
    %v5118 = vpop.f32.mrb[0].mxu0
    %v5119 = vadd.f32 0.0, %v5118
    %v5120 = vpop.f32.mrb[0].mxu0
    %v5121 = vpop.f32.mrb[0].mxu0
    %5122 = vdwg.mxu0
    %5123 = vmatprep.subr.bf16.mxu0 0
    %5124 = vmatpush1.bf16.msra.mxu0 %v4718
    %5125 = vmatprep.subr.bf16.mxu0 0
    %5126 = vmatpush1.bf16.msra.mxu0 %v4721
    %5127 = vmatprep.subr.bf16.mxu0 0
    %5128 = vmatpush1.bf16.msra.mxu0 %v4724
    %5129 = vmatprep.subr.bf16.mxu0 0
    %5130 = vmatpush1.bf16.msra.mxu0 %v4727
    %5131 = vmatprep.subr.bf16.mxu0 0
    %5132 = vmatpush1.bf16.msra.mxu0 %v4730
    %5133 = vmatprep.subr.bf16.mxu0 0
    %5134 = vmatpush1.bf16.msra.mxu0 %v4733
    %5135 = vmatprep.subr.bf16.mxu0 0
    %5136 = vmatpush1.bf16.msra.mxu0 %v4736
    %5137 = vmatprep.subr.bf16.mxu0 0
    %5138 = vmatpush1.bf16.msra.mxu0 %v4739
    %5139 = vmatprep.subr.bf16.mxu0 0
    %5140 = vmatpush1.bf16.msra.mxu0 0
    %5141 = vmatprep.subr.bf16.mxu0 0
    %5142 = vmatpush1.bf16.msra.mxu0 0
    %5143 = vmatprep.subr.bf16.mxu0 0
    %5144 = vmatpush1.bf16.msra.mxu0 0
    %5145 = vmatprep.subr.bf16.mxu0 0
    %5146 = vmatpush1.bf16.msra.mxu0 0
    %5147 = vmatprep.subr.bf16.mxu0 0
    %5148 = vmatpush1.bf16.msra.mxu0 0
    %5149 = vmatprep.subr.bf16.mxu0 0
    %5150 = vmatpush1.bf16.msra.mxu0 0
    %5151 = vmatprep.subr.bf16.mxu0 0
    %5152 = vmatpush1.bf16.msra.mxu0 0
    %5153 = vmatprep.subr.bf16.mxu0 0
    %5154 = vmatpush1.bf16.msra.mxu0 0
    %5155 = vmatprep.mubr.bf16.mxu0 0
    %5156 = vmatmul.mubr.bf16.gmra.mrb[0].mxu0 %v5081
    %v5157 = vpop.f32.mrb[0].mxu0
    %v5158 = vadd.f32 0.0, %v5157
    %v5159 = vpop.f32.mrb[0].mxu0
    %v5160 = vpop.f32.mrb[0].mxu0
    %v5161 = vpop.f32.mrb[0].mxu0
    %5162 = vdwg.mxu0
    %v5163 = vadd.f32 %v5078, %v5117
    %v5164 = vxor.u32 %v5163, 2147483648
    %v5165 = vmul.f32 %v5164, 1.442695
    %v5166 = vpow.pop %v5165
    %v5167 = vadd.f32 %v5166, 1.0
    %v5168 = vrcp.pop %v5167
    %v5169 = vmul.f32 1.0, %v5168
    %v5170 = vadd.f32 %v5079, %v5119
    %v5171 = vxor.u32 %v5170, 2147483648
    %v5172 = vmul.f32 %v5171, 1.442695
    %v5173 = vpow.pop %v5172
    %v5174 = vadd.f32 %v5173, 1.0
    %v5175 = vrcp.pop %v5174
    %v5176 = vmul.f32 1.0, %v5175
    %v5177 = vadd.f32 %v5158, %v4599
    %v5178 = vmul.f32 %v5169, %v5177
    %v5179 = vadd.f32 %v5080, %v5178
    %v5180 = vtanh.pop %v5179
    %v5181 = vsub.f32 %v5077, %v5180
    %v5182 = vmul.f32 %v5176, %v5181
    %v5183 = vadd.f32 %v5180, %v5182
    %v5184 = vld [vmem:[%s3054] sm:$0xff]
    %v5185 = vld [vmem:[%s3054 + $0x8] sm:$0xff]
    %v5186 = vld [vmem:[%s3054 + $0x10] sm:$0xff]
    %v5187 = vpack.c.bf16 %v5183, %v5183
    %5188 = vmatprep.subr.bf16.mxu0 %v4717
    %5189 = vmatpush1.bf16.msra.mxu0 %v4716
    %5190 = vmatprep.subr.bf16.mxu0 %v4720
    %5191 = vmatpush1.bf16.msra.mxu0 %v4719
    %5192 = vmatprep.subr.bf16.mxu0 %v4723
    %5193 = vmatpush1.bf16.msra.mxu0 %v4722
    %5194 = vmatprep.subr.bf16.mxu0 %v4726
    %5195 = vmatpush1.bf16.msra.mxu0 %v4725
    %5196 = vmatprep.subr.bf16.mxu0 %v4729
    %5197 = vmatpush1.bf16.msra.mxu0 %v4728
    %5198 = vmatprep.subr.bf16.mxu0 %v4732
    %5199 = vmatpush1.bf16.msra.mxu0 %v4731
    %5200 = vmatprep.subr.bf16.mxu0 %v4735
    %5201 = vmatpush1.bf16.msra.mxu0 %v4734
    %5202 = vmatprep.subr.bf16.mxu0 %v4738
    %5203 = vmatpush1.bf16.msra.mxu0 %v4737
    %5204 = vmatprep.subr.bf16.mxu0 0
    %5205 = vmatpush1.bf16.msra.mxu0 0
    %5206 = vmatprep.subr.bf16.mxu0 0
    %5207 = vmatpush1.bf16.msra.mxu0 0
    %5208 = vmatprep.subr.bf16.mxu0 0
    %5209 = vmatpush1.bf16.msra.mxu0 0
    %5210 = vmatprep.subr.bf16.mxu0 0
    %5211 = vmatpush1.bf16.msra.mxu0 0
    %5212 = vmatprep.subr.bf16.mxu0 0
    %5213 = vmatpush1.bf16.msra.mxu0 0
    %5214 = vmatprep.subr.bf16.mxu0 0
    %5215 = vmatpush1.bf16.msra.mxu0 0
    %5216 = vmatprep.subr.bf16.mxu0 0
    %5217 = vmatpush1.bf16.msra.mxu0 0
    %5218 = vmatprep.subr.bf16.mxu0 0
    %5219 = vmatpush1.bf16.msra.mxu0 0
    %5220 = vmatprep.mubr.bf16.mxu0 0
    %5221 = vmatmul.mubr.bf16.gmra.mrb[0].mxu0 %v5187
    %v5222 = vpop.f32.mrb[0].mxu0
    %v5223 = vadd.f32 0.0, %v5222
    %v5224 = vpop.f32.mrb[0].mxu0
    %v5225 = vadd.f32 0.0, %v5224
    %v5226 = vpop.f32.mrb[0].mxu0
    %v5227 = vpop.f32.mrb[0].mxu0
    %5228 = vdwg.mxu0
    %5229 = vmatprep.subr.bf16.mxu0 0
    %5230 = vmatpush1.bf16.msra.mxu0 %v4718
    %5231 = vmatprep.subr.bf16.mxu0 0
    %5232 = vmatpush1.bf16.msra.mxu0 %v4721
    %5233 = vmatprep.subr.bf16.mxu0 0
    %5234 = vmatpush1.bf16.msra.mxu0 %v4724
    %5235 = vmatprep.subr.bf16.mxu0 0
    %5236 = vmatpush1.bf16.msra.mxu0 %v4727
    %5237 = vmatprep.subr.bf16.mxu0 0
    %5238 = vmatpush1.bf16.msra.mxu0 %v4730
    %5239 = vmatprep.subr.bf16.mxu0 0
    %5240 = vmatpush1.bf16.msra.mxu0 %v4733
    %5241 = vmatprep.subr.bf16.mxu0 0
    %5242 = vmatpush1.bf16.msra.mxu0 %v4736
    %5243 = vmatprep.subr.bf16.mxu0 0
    %5244 = vmatpush1.bf16.msra.mxu0 %v4739
    %5245 = vmatprep.subr.bf16.mxu0 0
    %5246 = vmatpush1.bf16.msra.mxu0 0
    %5247 = vmatprep.subr.bf16.mxu0 0
    %5248 = vmatpush1.bf16.msra.mxu0 0
    %5249 = vmatprep.subr.bf16.mxu0 0
    %5250 = vmatpush1.bf16.msra.mxu0 0
    %5251 = vmatprep.subr.bf16.mxu0 0
    %5252 = vmatpush1.bf16.msra.mxu0 0
    %5253 = vmatprep.subr.bf16.mxu0 0
    %5254 = vmatpush1.bf16.msra.mxu0 0
    %5255 = vmatprep.subr.bf16.mxu0 0
    %5256 = vmatpush1.bf16.msra.mxu0 0
    %5257 = vmatprep.subr.bf16.mxu0 0
    %5258 = vmatpush1.bf16.msra.mxu0 0
    %5259 = vmatprep.subr.bf16.mxu0 0
    %5260 = vmatpush1.bf16.msra.mxu0 0
    %5261 = vmatprep.mubr.bf16.mxu0 0
    %5262 = vmatmul.mubr.bf16.gmra.mrb[0].mxu0 %v5187
    %v5263 = vpop.f32.mrb[0].mxu0
    %v5264 = vadd.f32 0.0, %v5263
    %v5265 = vpop.f32.mrb[0].mxu0
    %v5266 = vpop.f32.mrb[0].mxu0
    %v5267 = vpop.f32.mrb[0].mxu0
    %5268 = vdwg.mxu0
    %v5269 = vadd.f32 %v5184, %v5223
    %v5270 = vxor.u32 %v5269, 2147483648
    %v5271 = vmul.f32 %v5270, 1.442695
    %v5272 = vpow.pop %v5271
    %v5273 = vadd.f32 %v5272, 1.0
    %v5274 = vrcp.pop %v5273
    %v5275 = vmul.f32 1.0, %v5274
    %v5276 = vadd.f32 %v5185, %v5225
    %v5277 = vxor.u32 %v5276, 2147483648
    %v5278 = vmul.f32 %v5277, 1.442695
    %v5279 = vpow.pop %v5278
    %v5280 = vadd.f32 %v5279, 1.0
    %v5281 = vrcp.pop %v5280
    %v5282 = vmul.f32 1.0, %v5281
    %v5283 = vadd.f32 %v5264, %v4599
    %v5284 = vmul.f32 %v5275, %v5283
    %v5285 = vadd.f32 %v5186, %v5284
    %v5286 = vtanh.pop %v5285
    %v5287 = vsub.f32 %v5183, %v5286
    %v5288 = vmul.f32 %v5282, %v5287
    %v5289 = vadd.f32 %v5286, %v5288
    %v5290 = vld [vmem:[%s3566] sm:$0xff]
    %v5291 = vld [vmem:[%s3566 + $0x8] sm:$0xff]
    %v5292 = vld [vmem:[%s3566 + $0x10] sm:$0xff]
    %v5293 = vpack.c.bf16 %v5289, %v5289
    %5294 = vmatprep.subr.bf16.mxu0 %v4717
    %5295 = vmatpush1.bf16.msra.mxu0 %v4716
    %5296 = vmatprep.subr.bf16.mxu0 %v4720
    %5297 = vmatpush1.bf16.msra.mxu0 %v4719
    %5298 = vmatprep.subr.bf16.mxu0 %v4723
    %5299 = vmatpush1.bf16.msra.mxu0 %v4722
    %5300 = vmatprep.subr.bf16.mxu0 %v4726
    %5301 = vmatpush1.bf16.msra.mxu0 %v4725
    %5302 = vmatprep.subr.bf16.mxu0 %v4729
    %5303 = vmatpush1.bf16.msra.mxu0 %v4728
    %5304 = vmatprep.subr.bf16.mxu0 %v4732
    %5305 = vmatpush1.bf16.msra.mxu0 %v4731
    %5306 = vmatprep.subr.bf16.mxu0 %v4735
    %5307 = vmatpush1.bf16.msra.mxu0 %v4734
    %5308 = vmatprep.subr.bf16.mxu0 %v4738
    %5309 = vmatpush1.bf16.msra.mxu0 %v4737
    %5310 = vmatprep.subr.bf16.mxu0 0
    %5311 = vmatpush1.bf16.msra.mxu0 0
    %5312 = vmatprep.subr.bf16.mxu0 0
    %5313 = vmatpush1.bf16.msra.mxu0 0
    %5314 = vmatprep.subr.bf16.mxu0 0
    %5315 = vmatpush1.bf16.msra.mxu0 0
    %5316 = vmatprep.subr.bf16.mxu0 0
    %5317 = vmatpush1.bf16.msra.mxu0 0
    %5318 = vmatprep.subr.bf16.mxu0 0
    %5319 = vmatpush1.bf16.msra.mxu0 0
    %5320 = vmatprep.subr.bf16.mxu0 0
    %5321 = vmatpush1.bf16.msra.mxu0 0
    %5322 = vmatprep.subr.bf16.mxu0 0
    %5323 = vmatpush1.bf16.msra.mxu0 0
    %5324 = vmatprep.subr.bf16.mxu0 0
    %5325 = vmatpush1.bf16.msra.mxu0 0
    %5326 = vmatprep.mubr.bf16.mxu0 0
    %5327 = vmatmul.mubr.bf16.gmra.mrb[0].mxu0 %v5293
    %v5328 = vpop.f32.mrb[0].mxu0
    %v5329 = vadd.f32 0.0, %v5328
    %v5330 = vpop.f32.mrb[0].mxu0
    %v5331 = vadd.f32 0.0, %v5330
    %v5332 = vpop.f32.mrb[0].mxu0
    %v5333 = vpop.f32.mrb[0].mxu0
    %5334 = vdwg.mxu0
    %5335 = vmatprep.subr.bf16.mxu0 0
    %5336 = vmatpush1.bf16.msra.mxu0 %v4718
    %5337 = vmatprep.subr.bf16.mxu0 0
    %5338 = vmatpush1.bf16.msra.mxu0 %v4721
    %5339 = vmatprep.subr.bf16.mxu0 0
    %5340 = vmatpush1.bf16.msra.mxu0 %v4724
    %5341 = vmatprep.subr.bf16.mxu0 0
    %5342 = vmatpush1.bf16.msra.mxu0 %v4727
    %5343 = vmatprep.subr.bf16.mxu0 0
    %5344 = vmatpush1.bf16.msra.mxu0 %v4730
    %5345 = vmatprep.subr.bf16.mxu0 0
    %5346 = vmatpush1.bf16.msra.mxu0 %v4733
    %5347 = vmatprep.subr.bf16.mxu0 0
    %5348 = vmatpush1.bf16.msra.mxu0 %v4736
    %5349 = vmatprep.subr.bf16.mxu0 0
    %5350 = vmatpush1.bf16.msra.mxu0 %v4739
    %5351 = vmatprep.subr.bf16.mxu0 0
    %5352 = vmatpush1.bf16.msra.mxu0 0
    %5353 = vmatprep.subr.bf16.mxu0 0
    %5354 = vmatpush1.bf16.msra.mxu0 0
    %5355 = vmatprep.subr.bf16.mxu0 0
    %5356 = vmatpush1.bf16.msra.mxu0 0
    %5357 = vmatprep.subr.bf16.mxu0 0
    %5358 = vmatpush1.bf16.msra.mxu0 0
    %5359 = vmatprep.subr.bf16.mxu0 0
    %5360 = vmatpush1.bf16.msra.mxu0 0
    %5361 = vmatprep.subr.bf16.mxu0 0
    %5362 = vmatpush1.bf16.msra.mxu0 0
    %5363 = vmatprep.subr.bf16.mxu0 0
    %5364 = vmatpush1.bf16.msra.mxu0 0
    %5365 = vmatprep.subr.bf16.mxu0 0
    %5366 = vmatpush1.bf16.msra.mxu0 0
    %5367 = vmatprep.mubr.bf16.mxu0 0
    %5368 = vmatmul.mubr.bf16.gmra.mrb[0].mxu0 %v5293
    %v5369 = vpop.f32.mrb[0].mxu0
    %v5370 = vadd.f32 0.0, %v5369
    %v5371 = vpop.f32.mrb[0].mxu0
    %v5372 = vpop.f32.mrb[0].mxu0
    %v5373 = vpop.f32.mrb[0].mxu0
    %5374 = vdwg.mxu0
    %v5375 = vadd.f32 %v5290, %v5329
    %v5376 = vxor.u32 %v5375, 2147483648
    %v5377 = vmul.f32 %v5376, 1.442695
    %v5378 = vpow.pop %v5377
    %v5379 = vadd.f32 %v5378, 1.0
    %v5380 = vrcp.pop %v5379
    %v5381 = vmul.f32 1.0, %v5380
    %v5382 = vadd.f32 %v5291, %v5331
    %v5383 = vxor.u32 %v5382, 2147483648
    %v5384 = vmul.f32 %v5383, 1.442695
    %v5385 = vpow.pop %v5384
    %v5386 = vadd.f32 %v5385, 1.0
    %v5387 = vrcp.pop %v5386
    %v5388 = vmul.f32 1.0, %v5387
    %v5389 = vadd.f32 %v5370, %v4599
    %v5390 = vmul.f32 %v5381, %v5389
    %v5391 = vadd.f32 %v5292, %v5390
    %v5392 = vtanh.pop %v5391
    %v5393 = vsub.f32 %v5289, %v5392
    %v5394 = vmul.f32 %v5388, %v5393
    %v5395 = vadd.f32 %v5392, %v5394
    %v5396 = vld [vmem:[%s4078] sm:$0xff]
    %v5397 = vld [vmem:[%s4078 + $0x8] sm:$0xff]
    %v5398 = vld [vmem:[%s4078 + $0x10] sm:$0xff]
    %v5399 = vpack.c.bf16 %v5395, %v5395
    %5400 = vmatprep.subr.bf16.mxu0 %v4717
    %5401 = vmatpush1.bf16.msra.mxu0 %v4716
    %5402 = vmatprep.subr.bf16.mxu0 %v4720
    %5403 = vmatpush1.bf16.msra.mxu0 %v4719
    %5404 = vmatprep.subr.bf16.mxu0 %v4723
    %5405 = vmatpush1.bf16.msra.mxu0 %v4722
    %5406 = vmatprep.subr.bf16.mxu0 %v4726
    %5407 = vmatpush1.bf16.msra.mxu0 %v4725
    %5408 = vmatprep.subr.bf16.mxu0 %v4729
    %5409 = vmatpush1.bf16.msra.mxu0 %v4728
    %5410 = vmatprep.subr.bf16.mxu0 %v4732
    %5411 = vmatpush1.bf16.msra.mxu0 %v4731
    %5412 = vmatprep.subr.bf16.mxu0 %v4735
    %5413 = vmatpush1.bf16.msra.mxu0 %v4734
    %5414 = vmatprep.subr.bf16.mxu0 %v4738
    %5415 = vmatpush1.bf16.msra.mxu0 %v4737
    %5416 = vmatprep.subr.bf16.mxu0 0
    %5417 = vmatpush1.bf16.msra.mxu0 0
    %5418 = vmatprep.subr.bf16.mxu0 0
    %5419 = vmatpush1.bf16.msra.mxu0 0
    %5420 = vmatprep.subr.bf16.mxu0 0
    %5421 = vmatpush1.bf16.msra.mxu0 0
    %5422 = vmatprep.subr.bf16.mxu0 0
    %5423 = vmatpush1.bf16.msra.mxu0 0
    %5424 = vmatprep.subr.bf16.mxu0 0
    %5425 = vmatpush1.bf16.msra.mxu0 0
    %5426 = vmatprep.subr.bf16.mxu0 0
    %5427 = vmatpush1.bf16.msra.mxu0 0
    %5428 = vmatprep.subr.bf16.mxu0 0
    %5429 = vmatpush1.bf16.msra.mxu0 0
    %5430 = vmatprep.subr.bf16.mxu0 0
    %5431 = vmatpush1.bf16.msra.mxu0 0
    %5432 = vmatprep.mubr.bf16.mxu0 0
    %5433 = vmatmul.mubr.bf16.gmra.mrb[0].mxu0 %v5399
    %v5434 = vpop.f32.mrb[0].mxu0
    %v5435 = vadd.f32 0.0, %v5434
    %v5436 = vpop.f32.mrb[0].mxu0
    %v5437 = vadd.f32 0.0, %v5436
    %v5438 = vpop.f32.mrb[0].mxu0
    %v5439 = vpop.f32.mrb[0].mxu0
    %5440 = vdwg.mxu0
    %5441 = vmatprep.subr.bf16.mxu0 0
    %5442 = vmatpush1.bf16.msra.mxu0 %v4718
    %5443 = vmatprep.subr.bf16.mxu0 0
    %5444 = vmatpush1.bf16.msra.mxu0 %v4721
    %5445 = vmatprep.subr.bf16.mxu0 0
    %5446 = vmatpush1.bf16.msra.mxu0 %v4724
    %5447 = vmatprep.subr.bf16.mxu0 0
    %5448 = vmatpush1.bf16.msra.mxu0 %v4727
    %5449 = vmatprep.subr.bf16.mxu0 0
    %5450 = vmatpush1.bf16.msra.mxu0 %v4730
    %5451 = vmatprep.subr.bf16.mxu0 0
    %5452 = vmatpush1.bf16.msra.mxu0 %v4733
    %5453 = vmatprep.subr.bf16.mxu0 0
    %5454 = vmatpush1.bf16.msra.mxu0 %v4736
    %5455 = vmatprep.subr.bf16.mxu0 0
    %5456 = vmatpush1.bf16.msra.mxu0 %v4739
    %5457 = vmatprep.subr.bf16.mxu0 0
    %5458 = vmatpush1.bf16.msra.mxu0 0
    %5459 = vmatprep.subr.bf16.mxu0 0
    %5460 = vmatpush1.bf16.msra.mxu0 0
    %5461 = vmatprep.subr.bf16.mxu0 0
    %5462 = vmatpush1.bf16.msra.mxu0 0
    %5463 = vmatprep.subr.bf16.mxu0 0
    %5464 = vmatpush1.bf16.msra.mxu0 0
    %5465 = vmatprep.subr.bf16.mxu0 0
    %5466 = vmatpush1.bf16.msra.mxu0 0
    %5467 = vmatprep.subr.bf16.mxu0 0
    %5468 = vmatpush1.bf16.msra.mxu0 0
    %5469 = vmatprep.subr.bf16.mxu0 0
    %5470 = vmatpush1.bf16.msra.mxu0 0
    %5471 = vmatprep.subr.bf16.mxu0 0
    %5472 = vmatpush1.bf16.msra.mxu0 0
    %5473 = vmatprep.mubr.bf16.mxu0 0
    %5474 = vmatmul.mubr.bf16.gmra.mrb[0].mxu0 %v5399
    %v5475 = vpop.f32.mrb[0].mxu0
    %v5476 = vadd.f32 0.0, %v5475
    %v5477 = vpop.f32.mrb[0].mxu0
    %v5478 = vpop.f32.mrb[0].mxu0
    %v5479 = vpop.f32.mrb[0].mxu0
    %5480 = vdwg.mxu0
    %v5481 = vadd.f32 %v5396, %v5435
    %v5482 = vxor.u32 %v5481, 2147483648
    %v5483 = vmul.f32 %v5482, 1.442695
    %v5484 = vpow.pop %v5483
    %v5485 = vadd.f32 %v5484, 1.0
    %v5486 = vrcp.pop %v5485
    %v5487 = vmul.f32 1.0, %v5486
    %v5488 = vadd.f32 %v5397, %v5437
    %v5489 = vxor.u32 %v5488, 2147483648
    %v5490 = vmul.f32 %v5489, 1.442695
    %v5491 = vpow.pop %v5490
    %v5492 = vadd.f32 %v5491, 1.0
    %v5493 = vrcp.pop %v5492
    %v5494 = vmul.f32 1.0, %v5493
    %v5495 = vadd.f32 %v5476, %v4599
    %v5496 = vmul.f32 %v5487, %v5495
    %v5497 = vadd.f32 %v5398, %v5496
    %v5498 = vtanh.pop %v5497
    %v5499 = vsub.f32 %v5395, %v5498
    %v5500 = vmul.f32 %v5494, %v5499
    %v5501 = vadd.f32 %v5498, %v5500
    %v5502 = vld [vmem:[%s4590] sm:$0xff]
    %v5503 = vld [vmem:[%s4590 + $0x8] sm:$0xff]
    %v5504 = vld [vmem:[%s4590 + $0x10] sm:$0xff]
    %v5505 = vpack.c.bf16 %v5501, %v5501
    %5506 = vmatprep.subr.bf16.mxu0 %v4717
    %5507 = vmatpush1.bf16.msra.mxu0 %v4716
    %5508 = vmatprep.subr.bf16.mxu0 %v4720
    %5509 = vmatpush1.bf16.msra.mxu0 %v4719
    %5510 = vmatprep.subr.bf16.mxu0 %v4723
    %5511 = vmatpush1.bf16.msra.mxu0 %v4722
    %5512 = vmatprep.subr.bf16.mxu0 %v4726
    %5513 = vmatpush1.bf16.msra.mxu0 %v4725
    %5514 = vmatprep.subr.bf16.mxu0 %v4729
    %5515 = vmatpush1.bf16.msra.mxu0 %v4728
    %5516 = vmatprep.subr.bf16.mxu0 %v4732
    %5517 = vmatpush1.bf16.msra.mxu0 %v4731
    %5518 = vmatprep.subr.bf16.mxu0 %v4735
    %5519 = vmatpush1.bf16.msra.mxu0 %v4734
    %5520 = vmatprep.subr.bf16.mxu0 %v4738
    %5521 = vmatpush1.bf16.msra.mxu0 %v4737
    %5522 = vmatprep.subr.bf16.mxu0 0
    %5523 = vmatpush1.bf16.msra.mxu0 0
    %5524 = vmatprep.subr.bf16.mxu0 0
    %5525 = vmatpush1.bf16.msra.mxu0 0
    %5526 = vmatprep.subr.bf16.mxu0 0
    %5527 = vmatpush1.bf16.msra.mxu0 0
    %5528 = vmatprep.subr.bf16.mxu0 0
    %5529 = vmatpush1.bf16.msra.mxu0 0
    %5530 = vmatprep.subr.bf16.mxu0 0
    %5531 = vmatpush1.bf16.msra.mxu0 0
    %5532 = vmatprep.subr.bf16.mxu0 0
    %5533 = vmatpush1.bf16.msra.mxu0 0
    %5534 = vmatprep.subr.bf16.mxu0 0
    %5535 = vmatpush1.bf16.msra.mxu0 0
    %5536 = vmatprep.subr.bf16.mxu0 0
    %5537 = vmatpush1.bf16.msra.mxu0 0
    %5538 = vmatprep.mubr.bf16.mxu0 0
    %5539 = vmatmul.mubr.bf16.gmra.mrb[0].mxu0 %v5505
    %v5540 = vpop.f32.mrb[0].mxu0
    %v5541 = vadd.f32 0.0, %v5540
    %v5542 = vpop.f32.mrb[0].mxu0
    %v5543 = vadd.f32 0.0, %v5542
    %v5544 = vpop.f32.mrb[0].mxu0
    %v5545 = vpop.f32.mrb[0].mxu0
    %5546 = vdwg.mxu0
    %5547 = vmatprep.subr.bf16.mxu0 0
    %5548 = vmatpush1.bf16.msra.mxu0 %v4718
    %5549 = vmatprep.subr.bf16.mxu0 0
    %5550 = vmatpush1.bf16.msra.mxu0 %v4721
    %5551 = vmatprep.subr.bf16.mxu0 0
    %5552 = vmatpush1.bf16.msra.mxu0 %v4724
    %5553 = vmatprep.subr.bf16.mxu0 0
    %5554 = vmatpush1.bf16.msra.mxu0 %v4727
    %5555 = vmatprep.subr.bf16.mxu0 0
    %5556 = vmatpush1.bf16.msra.mxu0 %v4730
    %5557 = vmatprep.subr.bf16.mxu0 0
    %5558 = vmatpush1.bf16.msra.mxu0 %v4733
    %5559 = vmatprep.subr.bf16.mxu0 0
    %5560 = vmatpush1.bf16.msra.mxu0 %v4736
    %5561 = vmatprep.subr.bf16.mxu0 0
    %5562 = vmatpush1.bf16.msra.mxu0 %v4739
    %5563 = vmatprep.subr.bf16.mxu0 0
    %5564 = vmatpush1.bf16.msra.mxu0 0
    %5565 = vmatprep.subr.bf16.mxu0 0
    %5566 = vmatpush1.bf16.msra.mxu0 0
    %5567 = vmatprep.subr.bf16.mxu0 0
    %5568 = vmatpush1.bf16.msra.mxu0 0
    %5569 = vmatprep.subr.bf16.mxu0 0
    %5570 = vmatpush1.bf16.msra.mxu0 0
    %5571 = vmatprep.subr.bf16.mxu0 0
    %5572 = vmatpush1.bf16.msra.mxu0 0
    %5573 = vmatprep.subr.bf16.mxu0 0
    %5574 = vmatpush1.bf16.msra.mxu0 0
    %5575 = vmatprep.subr.bf16.mxu0 0
    %5576 = vmatpush1.bf16.msra.mxu0 0
    %5577 = vmatprep.subr.bf16.mxu0 0
    %5578 = vmatpush1.bf16.msra.mxu0 0
    %5579 = vmatprep.mubr.bf16.mxu0 0
    %5580 = vmatmul.mubr.bf16.gmra.mrb[0].mxu0 %v5505
    %v5581 = vpop.f32.mrb[0].mxu0
    %v5582 = vadd.f32 0.0, %v5581
    %v5583 = vpop.f32.mrb[0].mxu0
    %v5584 = vpop.f32.mrb[0].mxu0
    %v5585 = vpop.f32.mrb[0].mxu0
    %5586 = vdwg.mxu0
    %v5587 = vadd.f32 %v5502, %v5541
    %v5588 = vxor.u32 %v5587, 2147483648
    %v5589 = vmul.f32 %v5588, 1.442695
    %v5590 = vpow.pop %v5589
    %v5591 = vadd.f32 %v5590, 1.0
    %v5592 = vrcp.pop %v5591
    %v5593 = vmul.f32 1.0, %v5592
    %v5594 = vadd.f32 %v5503, %v5543
    %v5595 = vxor.u32 %v5594, 2147483648
    %v5596 = vmul.f32 %v5595, 1.442695
    %v5597 = vpow.pop %v5596
    %v5598 = vadd.f32 %v5597, 1.0
    %v5599 = vrcp.pop %v5598
    %v5600 = vmul.f32 1.0, %v5599
    %v5601 = vadd.f32 %v5582, %v4599
    %v5602 = vmul.f32 %v5593, %v5601
    %v5603 = vadd.f32 %v5504, %v5602
    %v5604 = vtanh.pop %v5603
    %v5605 = vsub.f32 %v5501, %v5604
    %v5606 = vmul.f32 %v5600, %v5605
    %v5607 = vadd.f32 %v5604, %v5606
    %v5608 = vpack.c.bf16 %v5607, %v5607
    %v5609 = vld [vmem:[%s9] sm:$0xf]
    %v5610 = vld [vmem:[%s9 + $0x4] sm:$0xf]
    %v5611 = vld [vmem:[%s9 + $0x8] sm:$0xf]
    %v5612 = vld [vmem:[%s9 + $0xc] sm:$0xf]
    %v5613 = vld [vmem:[%s9 + $0x10] sm:$0xf]
    %v5614 = vld [vmem:[%s9 + $0x14] sm:$0xf]
    %v5615 = vld [vmem:[%s9 + $0x18] sm:$0xf]
    %v5616 = vld [vmem:[%s9 + $0x1c] sm:$0xf]
    %v5617 = vld [vmem:[%s9 + $0x20] sm:$0xf]
    %v5618 = vld [vmem:[%s9 + $0x24] sm:$0xf]
    %v5619 = vld [vmem:[%s9 + $0x28] sm:$0xf]
    %v5620 = vld [vmem:[%s9 + $0x2c] sm:$0xf]
    %v5621 = vld [vmem:[%s9 + $0x30] sm:$0xf]
    %v5622 = vld [vmem:[%s9 + $0x34] sm:$0xf]
    %v5623 = vld [vmem:[%s9 + $0x38] sm:$0xf]
    %v5624 = vld [vmem:[%s9 + $0x3c] sm:$0xf]
    %v5625 = vld [vmem:[#allocation11] sm:$0x1]
    %v5627 = vlaneseq
    %v5628 = vshrl.u32 %v5627, 7
    %v5629 = vsub.s32 0, %v5628
    %v5630 = vrot.slane %v5625, %v5629
    %v5648 = vunpack.c.l.b16 %v5609
    %v5649 = vunpack.c.l.b16 %v5610
    %v5650 = vunpack.c.l.b16 %v5611
    %v5651 = vunpack.c.l.b16 %v5612
    %v5652 = vunpack.c.l.b16 %v5613
    %v5653 = vunpack.c.l.b16 %v5614
    %v5654 = vunpack.c.l.b16 %v5615
    %v5655 = vunpack.c.l.b16 %v5616
    %v5656 = vunpack.c.l.b16 %v5617
    %v5657 = vunpack.c.l.b16 %v5618
    %v5658 = vunpack.c.l.b16 %v5619
    %v5659 = vunpack.c.l.b16 %v5620
    %v5660 = vunpack.c.l.b16 %v5621
    %v5661 = vunpack.c.l.b16 %v5622
    %v5662 = vunpack.c.l.b16 %v5623
    %v5663 = vunpack.c.l.b16 %v5624
    %v5664 = vpack.c.b16 %v5649, %v5648
    %v5665 = vpack.c.b16 %v5651, %v5650
    %v5666 = vpack.c.b16 %v5653, %v5652
    %v5667 = vpack.c.b16 %v5655, %v5654
    %v5668 = vpack.c.b16 %v5657, %v5656
    %v5669 = vpack.c.b16 %v5659, %v5658
    %v5670 = vpack.c.b16 %v5661, %v5660
    %v5671 = vpack.c.b16 %v5663, %v5662
    %5680 = vmatprep.subr.bf16.mxu0 0
    %5681 = vmatpush1.bf16.msra.mxu0 %v5664
    %5682 = vmatprep.subr.bf16.mxu0 0
    %5683 = vmatpush1.bf16.msra.mxu0 %v5665
    %5684 = vmatprep.subr.bf16.mxu0 0
    %5685 = vmatpush1.bf16.msra.mxu0 %v5666
    %5686 = vmatprep.subr.bf16.mxu0 0
    %5687 = vmatpush1.bf16.msra.mxu0 %v5667
    %5688 = vmatprep.subr.bf16.mxu0 0
    %5689 = vmatpush1.bf16.msra.mxu0 %v5668
    %5690 = vmatprep.subr.bf16.mxu0 0
    %5691 = vmatpush1.bf16.msra.mxu0 %v5669
    %5692 = vmatprep.subr.bf16.mxu0 0
    %5693 = vmatpush1.bf16.msra.mxu0 %v5670
    %5694 = vmatprep.subr.bf16.mxu0 0
    %5695 = vmatpush1.bf16.msra.mxu0 %v5671
    %5696 = vmatprep.subr.bf16.mxu0 0
    %5697 = vmatpush1.bf16.msra.mxu0 0
    %5698 = vmatprep.subr.bf16.mxu0 0
    %5699 = vmatpush1.bf16.msra.mxu0 0
    %5700 = vmatprep.subr.bf16.mxu0 0
    %5701 = vmatpush1.bf16.msra.mxu0 0
    %5702 = vmatprep.subr.bf16.mxu0 0
    %5703 = vmatpush1.bf16.msra.mxu0 0
    %5704 = vmatprep.subr.bf16.mxu0 0
    %5705 = vmatpush1.bf16.msra.mxu0 0
    %5706 = vmatprep.subr.bf16.mxu0 0
    %5707 = vmatpush1.bf16.msra.mxu0 0
    %5708 = vmatprep.subr.bf16.mxu0 0
    %5709 = vmatpush1.bf16.msra.mxu0 0
    %5710 = vmatprep.subr.bf16.mxu0 0
    %5711 = vmatpush1.bf16.msra.mxu0 0
    %5712 = vmatprep.mubr.bf16.mxu0 0
    %5713 = vmatmul.mubr.bf16.gmra.mrb[0].mxu0 %v5608
    %v5714 = vpop.f32.mrb[0].mxu0
    %v5715 = vadd.f32 %v5630, %v5714
    %v5716 = vpop.f32.mrb[0].mxu0
    %v5717 = vpop.f32.mrb[0].mxu0
    %v5718 = vpop.f32.mrb[0].mxu0
    %5719 = vdwg.mxu0
    %5720 = vst [vmem:[%s11] sm:$0xff] %v5715
    // Predicated region
    $region66: #{gru_forward.1} parent=1 // pred_check
      _
    $region67: #{gru_forward.1} parent=1 // pred_check_branch
      %5722 = sbr.rel (0) target = $region69
    $region68: #{gru_forward.1} parent=1 // pred_region
      _
    $region69: #{gru_forward.1} parent=1 // pred_fallthru
      _
    // Predicated region
    $region70: #{gru_forward.1} parent=1 // pred_check
      _
    $region71: #{gru_forward.1} parent=1 // pred_check_branch
      %5724 = sbr.rel (0) target = $region73
    $region72: #{gru_forward.1} parent=1 // pred_region
      _
    $region73: #{gru_forward.1} parent=1 // pred_fallthru
      _
    %5725 = vsyncpa [#allocation5], 1
    %5726 = vsyncpa [#allocation7], 1
    %5727 = vsyncpa [#allocation10], 1

</llo_original>
